<compile_context>
chip_gen: v7x
topology: tpu7x:2x2x1
jax: 0.10.0
libtpu: 0.0.40
codegen_flags: <defaults>
</compile_context>

<pallas_src>
import jax
import jax.numpy as jnp
from jax import lax
from jax.experimental import pallas as pl
from jax.experimental.pallas import tpu as pltpu

# ---- model configuration (small, consistent with the module) ----
D_MODEL = 64
N_HEADS = 2
HEAD_K = D_MODEL // N_HEADS
LORA_H = 32          # DDLerp LoRA hidden (hard-coded 32 in the module)
DECAY_H = 64         # decay LoRA hidden (hard-coded 64 in the module)
D_FFN = 224          # 3.5 * d_model, standard RWKV-6 channel-mixer hidden
D_FFN_PAD = 256      # padded to a lane-dense multiple of 128
LN_EPS = 1e-5
GN_EPS = 0.00064
B, T = 1, 8


# ======================= single fused Layer kernel =======================

def _layer_kernel(x_ref, tm_xs_ref, kv0_ref, cm_xs_ref,
                  tm_ln_g_ref, tm_ln_b_ref, premix_ref,
                  dd_wa_ref, dd_wb_ref, dd_base_ref,
                  w5_ref, dec_wb_ref, dec_base_ref,
                  u_ref, gn_g_ref, gn_b_ref, wo_ref,
                  cm_ln_g_ref, cm_ln_b_ref, cm_mu_ref,
                  cm_w1_ref, cm_wout_ref,
                  y_ref, tm_xlast_ref, kvT_ref, cm_xlast_ref):
    f32 = jnp.float32
    T_ = x_ref.shape[1]
    C = x_ref.shape[2]
    H = N_HEADS
    K = C // H

    def ln(z, g, b):
        m = jnp.mean(z, axis=-1, keepdims=True)
        zc = z - m
        v = jnp.mean(zc * zc, axis=-1, keepdims=True)
        return zc * lax.rsqrt(v + LN_EPS) * g + b

    def sigmoid(z):
        return pl.reciprocal(1.0 + jnp.exp(-z), approx=True)   # EUP, not VPU divide

    row = lax.broadcasted_iota(jnp.int32, (T_, C), 0)

    # ============================ TimeMixer ============================
    x = x_ref[0]                                            # (T, C)
    xn = ln(x, tm_ln_g_ref[...], tm_ln_b_ref[...])
    # token shift built from xn directly: row 0 <- x_state (already-normalized last token
    # of the previous chunk), rows 1..T-1 <- xn shifted down by one.
    xs = jnp.where(row == 0, tm_xs_ref[...], pltpu.roll(xn, shift=1, axis=0))
    dxs = xs - xn
    xp = xn + premix_ref[...] * dxs                         # torch.lerp premix

    # ---- 5 DDLerp LoRAs fused: one wide tanh matmul + block-diag second stage ----
    hdd = jnp.tanh(jnp.dot(xp, dd_wa_ref[...].astype(f32),
                           preferred_element_type=f32))     # (T, 5*LORA_H)
    mu = dd_base_ref[...] + jnp.dot(hdd, dd_wb_ref[...].astype(f32),
                                    preferred_element_type=f32)   # (T, 5C)

    # ---- r/k/v/g projections + decay-LoRA first stage: ONE 320x320 block-diag matmul ----
    xn5 = jnp.concatenate([xn] * 5, axis=1)                 # (T, 5C)
    dxs5 = jnp.concatenate([dxs] * 5, axis=1)
    mix5 = xn5 + mu * dxs5                                  # [rx|kx|vx|gx|wx]
    proj = jnp.dot(mix5, w5_ref[...].astype(f32), preferred_element_type=f32)  # (T, 5C)
    r_ = proj[:, 0 * C:1 * C]
    k_ = proj[:, 1 * C:2 * C]
    v_ = proj[:, 2 * C:3 * C]
    g_ = proj[:, 3 * C:4 * C]
    hd = jnp.tanh(proj[:, 4 * C:4 * C + DECAY_H])
    wraw = dec_base_ref[...] + jnp.dot(hd, dec_wb_ref[...].astype(f32),
                                       preferred_element_type=f32)   # (T, C)

    # ---- WKV: exact chunked linear-attention rewrite of the serial recurrence ----
    # Per head:  S_{t+1} = w_t ∘_rows S_t + k_t v_t^T ,  out_t = r_t @ (S_t + u ∘ k_t v_t^T)
    # w_t = exp(-E_t), E = exp(wraw);  Λ_t = Π_{τ<t} w_τ = exp(-Σ_{τ<t} E_τ)
    # TODO(synk): per-chunk factorization assumes exp(Σ_t E_t) stays finite in f32
    #             (true for T=8 and typical decay ranges; subtract a per-channel offset
    #             if extremely fast decays are ever needed).
    E = jnp.exp(wraw)                                                   # (T, C)
    trow = lax.broadcasted_iota(jnp.int32, (T_, T_), 0)
    tcol = lax.broadcasted_iota(jnp.int32, (T_, T_), 1)
    strict_lower = tcol < trow                                          # s < t
    cums_excl = jnp.dot(strict_lower.astype(f32), E,
                        preferred_element_type=f32)                     # Σ_{τ<t} E_τ
    cums_incl = cums_excl + E
    lam = jnp.exp(-cums_excl)                                           # Λ_t
    lamT_row = jnp.exp(-cums_incl[T_ - 1:T_, :])                        # Λ_T, (1, C)
    r_t = r_ * lam                                                      # R~
    k_t = k_ * jnp.exp(cums_incl)                                       # K~ = k / Λ_{t+1}
    k_hat = k_t * lamT_row                                              # K^ = k Λ_T / Λ_{t+1}
    k_hatT = jnp.transpose(k_hat)                                       # (C, T), hoisted
    rku = r_ * k_ * u_ref[...]                                          # u-bonus split
    lam_full = lamT_row[0]                                              # (C,)
    lam_cols = [lam_full[h * K:(h + 1) * K][:, None] for h in range(H)]  # (K,1) each

    outs = []
    for h in range(H):
        sl = slice(h * K, (h + 1) * K)
        Rh = r_t[:, sl]                                                 # (T, K)
        Vh = v_[:, sl]                                                  # (T, K)
        S0h = kv0_ref[0, h]                                             # (K, K)
        # intra-chunk attention-like matrix A[t,s] = Σ_i R~[t,i] K~[s,i]
        A = lax.dot_general(Rh, k_t[:, sl], (((1,), (1,)), ((), ())),
                            preferred_element_type=f32)                 # (T, T)
        A = jnp.where(strict_lower, A, 0.0)
        bonus = jnp.sum(rku[:, sl], axis=1, keepdims=True)              # (T, 1)
        Yh = (jnp.dot(A, Vh, preferred_element_type=f32)
              + jnp.dot(Rh, S0h, preferred_element_type=f32)
              + bonus * Vh)
        outs.append(Yh)
        # final state:  S_T = Λ_T ∘_rows S0 + K^^T @ V
        kvT_ref[0, h] = (lam_cols[h] * S0h
                         + jnp.dot(k_hatT[sl, :], Vh, preferred_element_type=f32))
    out2d = jnp.concatenate(outs, axis=1)                               # (T, C)

    # ---- GroupNorm (groups == heads) + silu(gate) + Wo projection + residual ----
    gsegs = []
    for h in range(H):
        seg = out2d[:, h * K:(h + 1) * K]
        m = jnp.mean(seg, axis=-1, keepdims=True)
        cz = seg - m
        v = jnp.mean(cz * cz, axis=-1, keepdims=True)
        gsegs.append(cz * lax.rsqrt(v + GN_EPS))
    gnorm = jnp.concatenate(gsegs, axis=1) * gn_g_ref[...] + gn_b_ref[...]
    sil = g_ * sigmoid(g_)                                              # silu(gate)
    att = jnp.dot(gnorm * sil, wo_ref[...].astype(f32), preferred_element_type=f32)
    x_tm = xn + att                           # reference adds the *normalized* x
    tm_xlast_ref[...] = xn[T_ - 1:T_, :]

    # =========================== ChannelMixer ===========================
    # TODO(synk): ChannelMixer source was not provided with the module; this implements the
    # standard RWKV-6 channel mixer (prenorm, token-shift lerps, relu^2 MLP, sigmoid
    # receptance gate), identical to the previous accepted version.
    xn2 = ln(x_tm, cm_ln_g_ref[...], cm_ln_b_ref[...])
    xs2 = jnp.where(row == 0, cm_xs_ref[...], pltpu.roll(xn2, shift=1, axis=0))
    dxs2 = xs2 - xn2
    # [xk | xr] built with one tiled lerp, then one block-diag matmul for W_in (padded) + W_rec
    xkr = (jnp.concatenate([xn2, xn2], axis=1)
           + cm_mu_ref[...] * jnp.concatenate([dxs2, dxs2], axis=1))    # (T, 2C)
    h_all = jnp.dot(xkr, cm_w1_ref[...].astype(f32),
                    preferred_element_type=f32)                         # (T, 256 + C)
    hin = jnp.maximum(h_all[:, :D_FFN_PAD], 0.0)
    hin = hin * hin                                                     # relu^2
    vmlp = jnp.dot(hin, cm_wout_ref[...].astype(f32),
                   preferred_element_type=f32)                          # (T, C)
    rgate = sigmoid(h_all[:, D_FFN_PAD:D_FFN_PAD + C])

    y_ref[0] = xn2 + rgate * vmlp
    cm_xlast_ref[...] = xn2[T_ - 1:T_, :]


def layer_forward_pallas(pp, x, tm_x_state, kv_state, cm_x_state):
    B_, T_, C = x.shape
    assert B_ == 1  # reference code's w.view(T, H, K, 1) requires B == 1
    return pl.pallas_call(
        _layer_kernel,
        out_shape=(jax.ShapeDtypeStruct((B_, T_, C), jnp.float32),
                   jax.ShapeDtypeStruct((B_, C), jnp.float32),
                   jax.ShapeDtypeStruct((B_, N_HEADS, HEAD_K, HEAD_K), jnp.float32),
                   jax.ShapeDtypeStruct((B_, C), jnp.float32)),
    )(x, tm_x_state, kv_state, cm_x_state,
      pp["tm_ln_g"], pp["tm_ln_b"], pp["premix"],
      pp["dd_wa"], pp["dd_wb"], pp["dd_base"],
      pp["w5"], pp["dec_wb"], pp["dec_base"],
      pp["u"], pp["gn_g"], pp["gn_b"], pp["w_o_T"],
      pp["cm_ln_g"], pp["cm_ln_b"], pp["cm_mu"],
      pp["cm_w1"], pp["cm_w_out_T"])


@jax.jit
def layer_forward(pp, x, tm_x_state, kv_state, cm_x_state):
    return layer_forward_pallas(pp, x, tm_x_state, kv_state, cm_x_state)


# ======================= parameter init + one-time kernel-layout prep =======================

def init_params(key):
    ks = iter(jax.random.split(key, 48))

    def rnd(shape, scale):
        return jax.random.normal(next(ks), shape, jnp.float32) * scale

    C, Hh = D_MODEL, N_HEADS
    p = {}
    p["tm_ln_g"] = 1.0 + rnd((C,), 0.02)
    p["tm_ln_b"] = rnd((C,), 0.02)
    p["w_premix"] = rnd((C,), 0.1)
    p["ddlerp"] = [
        {"base": rnd((C,), 0.1),
         "wa": rnd((LORA_H, C), 1.0 / (C ** 0.5)),
         "wb": rnd((C, LORA_H), 1.0 / (LORA_H ** 0.5))}
        for _ in range(5)
    ]
    p["decay"] = {"base": 1.0 + rnd((C,), 0.05),
                  "wa": rnd((DECAY_H, C), 1.0 / (C ** 0.5)),
                  "wb": rnd((C, DECAY_H), 1.0 / (DECAY_H ** 0.5))}
    for nm in ("w_r", "w_k", "w_v", "w_g", "w_o"):
        p[nm] = rnd((C, C), 1.0 / (C ** 0.5))
    p["u"] = 1.0 + rnd((Hh, HEAD_K), 0.05)
    p["gn_g"] = 1.0 + rnd((C,), 0.02)
    p["gn_b"] = rnd((C,), 0.02)
    # channel mixer
    p["cm_ln_g"] = 1.0 + rnd((C,), 0.02)
    p["cm_ln_b"] = rnd((C,), 0.02)
    p["mu_k"] = rnd((C,), 0.1)
    p["mu_r"] = rnd((C,), 0.1)
    p["cm_w_in"] = rnd((D_FFN, C), 1.0 / (C ** 0.5))
    p["cm_w_out"] = rnd((C, D_FFN), 1.0 / (D_FFN ** 0.5))
    p["cm_w_rec"] = rnd((C, C), 1.0 / (C ** 0.5))
    return p


def _block_diag(blocks):
    rows = sum(b.shape[0] for b in blocks)
    cols = sum(b.shape[1] for b in blocks)
    out = jnp.zeros((rows, cols), jnp.float32)
    r = c = 0
    for b in blocks:
        out = out.at[r:r + b.shape[0], c:c + b.shape[1]].set(b)
        r += b.shape[0]
        c += b.shape[1]
    return out


def prepare_params(p):
    """One-time (outside jit) re-layout: transpose, concat, block-diag, pad, bf16 weights."""
    C = D_MODEL
    f32, bf16 = jnp.float32, jnp.bfloat16

    def row(v):
        return jnp.asarray(v, f32).reshape(1, -1)

    pp = {}
    # time mixer
    pp["tm_ln_g"] = row(p["tm_ln_g"])
    pp["tm_ln_b"] = row(p["tm_ln_b"])
    pp["premix"] = row(p["w_premix"])
    pp["dd_wa"] = jnp.concatenate([d["wa"].T for d in p["ddlerp"]], axis=1).astype(bf16)  # (C, 5*LORA_H)
    pp["dd_wb"] = _block_diag([d["wb"].T for d in p["ddlerp"]]).astype(bf16)              # (5*LORA_H, 5C)
    pp["dd_base"] = jnp.concatenate([d["base"] for d in p["ddlerp"]]).reshape(1, 5 * C).astype(f32)
    # r / k / v / g projections + decay-LoRA first stage, one (5C, 4C + DECAY_H) block-diag
    pp["w5"] = _block_diag([p["w_r"].T, p["w_k"].T, p["w_v"].T, p["w_g"].T,
                            p["decay"]["wa"].T]).astype(bf16)
    pp["dec_wb"] = p["decay"]["wb"].T.astype(bf16)                                        # (DECAY_H, C)
    pp["dec_base"] = row(p["decay"]["base"])
    pp["u"] = row(p["u"].reshape(-1))                                                     # (1, C), head-blocked
    pp["gn_g"] = row(p["gn_g"])
    pp["gn_b"] = row(p["gn_b"])
    pp["w_o_T"] = p["w_o"].T.astype(bf16)
    # channel mixer
    pp["cm_ln_g"] = row(p["cm_ln_g"])
    pp["cm_ln_b"] = row(p["cm_ln_b"])
    pp["cm_mu"] = jnp.concatenate([row(p["mu_k"]), row(p["mu_r"])], axis=1)               # (1, 2C)
    w_in_T = jnp.pad(p["cm_w_in"].T, ((0, 0), (0, D_FFN_PAD - D_FFN)))                    # (C, 256)
    pp["cm_w1"] = _block_diag([w_in_T, p["cm_w_rec"].T]).astype(bf16)                     # (2C, 256 + C)
    pp["cm_w_out_T"] = jnp.pad(p["cm_w_out"].T,
                               ((0, D_FFN_PAD - D_FFN), (0, 0))).astype(bf16)             # (256, C)
    return pp


if __name__ == "__main__":
    key = jax.random.PRNGKey(0)
    pkey, xkey, k1, k2, k3 = jax.random.split(key, 5)
    params = init_params(pkey)
    kparams = prepare_params(params)

    x = jax.random.normal(xkey, (B, T, D_MODEL), jnp.float32)
    tm_x_state = jax.random.normal(k1, (B, D_MODEL), jnp.float32)
    cm_x_state = jax.random.normal(k2, (B, D_MODEL), jnp.float32)
    kv_state = jax.random.normal(k3, (B, N_HEADS, HEAD_K, HEAD_K), jnp.float32) * 0.1

    y, new_tm_state, new_kv, new_cm_state = layer_forward(
        kparams, x, tm_x_state, kv_state, cm_x_state)
    jax.block_until_ready((y, new_tm_state, new_kv, new_cm_state))
    print("KERNEL_OK")
</pallas_src>

<mosaic_0001>
module attributes {stable_mosaic.version = 11 : i64} {
  func.func @_layer_kernel(%arg0: memref<1x8x64xf32, #tpu.memory_space<vmem>>, %arg1: memref<1x64xf32, #tpu.memory_space<vmem>>, %arg2: memref<1x2x32x32xf32, #tpu.memory_space<vmem>>, %arg3: memref<1x64xf32, #tpu.memory_space<vmem>>, %arg4: memref<1x64xf32, #tpu.memory_space<vmem>>, %arg5: memref<1x64xf32, #tpu.memory_space<vmem>>, %arg6: memref<1x64xf32, #tpu.memory_space<vmem>>, %arg7: memref<64x160xbf16, #tpu.memory_space<vmem>>, %arg8: memref<160x320xbf16, #tpu.memory_space<vmem>>, %arg9: memref<1x320xf32, #tpu.memory_space<vmem>>, %arg10: memref<320x320xbf16, #tpu.memory_space<vmem>>, %arg11: memref<64x64xbf16, #tpu.memory_space<vmem>>, %arg12: memref<1x64xf32, #tpu.memory_space<vmem>>, %arg13: memref<1x64xf32, #tpu.memory_space<vmem>>, %arg14: memref<1x64xf32, #tpu.memory_space<vmem>>, %arg15: memref<1x64xf32, #tpu.memory_space<vmem>>, %arg16: memref<64x64xbf16, #tpu.memory_space<vmem>>, %arg17: memref<1x64xf32, #tpu.memory_space<vmem>>, %arg18: memref<1x64xf32, #tpu.memory_space<vmem>>, %arg19: memref<1x128xf32, #tpu.memory_space<vmem>>, %arg20: memref<128x320xbf16, #tpu.memory_space<vmem>>, %arg21: memref<256x64xbf16, #tpu.memory_space<vmem>>, %arg22: memref<1x8x64xf32, #tpu.memory_space<vmem>>, %arg23: memref<1x64xf32, #tpu.memory_space<vmem>>, %arg24: memref<1x2x32x32xf32, #tpu.memory_space<vmem>>, %arg25: memref<1x64xf32, #tpu.memory_space<vmem>>) attributes {dimension_semantics = [], scalar_prefetch = 0 : i64, scratch_operands = 0 : i64, tpu.core_type = #tpu.core_type<tc>} {
    %0 = tpu.iota {dimensions = array<i32: 0>} : vector<8x64xi32>
    %c0 = arith.constant 0 : index
    %c0_0 = arith.constant 0 : index
    %c0_1 = arith.constant 0 : index
    %1 = vector.load %arg0[%c0, %c0_0, %c0_1] : memref<1x8x64xf32, #tpu.memory_space<vmem>>, vector<1x8x64xf32>
    %2 = vector.shape_cast %1 : vector<1x8x64xf32> to vector<8x64xf32>
    %c0_2 = arith.constant 0 : index
    %c0_3 = arith.constant 0 : index
    %3 = vector.load %arg4[%c0_2, %c0_3] : memref<1x64xf32, #tpu.memory_space<vmem>>, vector<1x64xf32>
    %c0_4 = arith.constant 0 : index
    %c0_5 = arith.constant 0 : index
    %4 = vector.load %arg5[%c0_4, %c0_5] : memref<1x64xf32, #tpu.memory_space<vmem>>, vector<1x64xf32>
    %cst = arith.constant dense<0.000000e+00> : vector<8xf32>
    %5 = vector.multi_reduction <add>, %2, %cst [1] : vector<8x64xf32> to vector<8xf32>
    %6 = vector.shape_cast %5 : vector<8xf32> to vector<8x1xf32>
    %cst_6 = arith.constant 6.400000e+01 : f32
    %7 = vector.broadcast %cst_6 : f32 to vector<8x1xf32>
    %8 = arith.divf %6, %7 : vector<8x1xf32>
    %9 = vector.broadcast %8 : vector<8x1xf32> to vector<8x64xf32>
    %10 = arith.subf %2, %9 : vector<8x64xf32>
    %11 = arith.mulf %10, %10 : vector<8x64xf32>
    %cst_7 = arith.constant dense<0.000000e+00> : vector<8xf32>
    %12 = vector.multi_reduction <add>, %11, %cst_7 [1] : vector<8x64xf32> to vector<8xf32>
    %13 = vector.shape_cast %12 : vector<8xf32> to vector<8x1xf32>
    %cst_8 = arith.constant 6.400000e+01 : f32
    %14 = vector.broadcast %cst_8 : f32 to vector<8x1xf32>
    %15 = arith.divf %13, %14 : vector<8x1xf32>
    %cst_9 = arith.constant 9.99999974E-6 : f32
    %16 = vector.broadcast %cst_9 : f32 to vector<8x1xf32>
    %17 = arith.addf %15, %16 : vector<8x1xf32>
    %18 = math.rsqrt %17 : vector<8x1xf32>
    %19 = vector.broadcast %18 : vector<8x1xf32> to vector<8x64xf32>
    %20 = arith.mulf %10, %19 : vector<8x64xf32>
    %21 = vector.broadcast %3 : vector<1x64xf32> to vector<8x64xf32>
    %22 = arith.mulf %20, %21 : vector<8x64xf32>
    %23 = vector.broadcast %4 : vector<1x64xf32> to vector<8x64xf32>
    %24 = arith.addf %22, %23 : vector<8x64xf32>
    %c0_i32 = arith.constant 0 : i32
    %25 = vector.broadcast %c0_i32 : i32 to vector<8x64xi32>
    %26 = arith.cmpi eq, %0, %25 : vector<8x64xi32>
    %c0_10 = arith.constant 0 : index
    %c0_11 = arith.constant 0 : index
    %27 = vector.load %arg1[%c0_10, %c0_11] : memref<1x64xf32, #tpu.memory_space<vmem>>, vector<1x64xf32>
    %c1_i32 = arith.constant 1 : i32
    %28 = tpu.dynamic_rotate %24 by %c1_i32 dim 0 : vector<8x64xf32>, i32 -> vector<8x64xf32>
    %29 = vector.shape_cast %27 : vector<1x64xf32> to vector<1x64xf32>
    %30 = vector.broadcast %29 : vector<1x64xf32> to vector<8x64xf32>
    %31 = arith.select %26, %30, %28 : vector<8x64xi1>, vector<8x64xf32>
    %32 = arith.subf %31, %24 : vector<8x64xf32>
    %c0_12 = arith.constant 0 : index
    %c0_13 = arith.constant 0 : index
    %33 = vector.load %arg6[%c0_12, %c0_13] : memref<1x64xf32, #tpu.memory_space<vmem>>, vector<1x64xf32>
    %34 = vector.broadcast %33 : vector<1x64xf32> to vector<8x64xf32>
    %35 = arith.mulf %34, %32 : vector<8x64xf32>
    %36 = arith.addf %24, %35 : vector<8x64xf32>
    %c0_14 = arith.constant 0 : index
    %c0_15 = arith.constant 0 : index
    %37 = vector.load %arg7[%c0_14, %c0_15] : memref<64x160xbf16, #tpu.memory_space<vmem>>, vector<64x160xbf16>
    %38 = arith.extf %37 : vector<64x160xbf16> to vector<64x160xf32>
    %cst_16 = arith.constant dense<0.000000e+00> : vector<8x160xf32>
    %39 = tpu.matmul %36, %38, %cst_16 {dimension_numbers = #tpu.dot_dimension_numbers<[1], [0], [0], [1], [0, 0, 1, 1], [], []>} : vector<8x64xf32>, vector<64x160xf32>, vector<8x160xf32> -> vector<8x160xf32>
    %40 = math.tanh %39 : vector<8x160xf32>
    %c0_17 = arith.constant 0 : index
    %c0_18 = arith.constant 0 : index
    %41 = vector.load %arg9[%c0_17, %c0_18] : memref<1x320xf32, #tpu.memory_space<vmem>>, vector<1x320xf32>
    %c0_19 = arith.constant 0 : index
    %c0_20 = arith.constant 0 : index
    %42 = vector.load %arg8[%c0_19, %c0_20] : memref<160x320xbf16, #tpu.memory_space<vmem>>, vector<160x320xbf16>
    %43 = arith.extf %42 : vector<160x320xbf16> to vector<160x320xf32>
    %cst_21 = arith.constant dense<0.000000e+00> : vector<8x320xf32>
    %44 = tpu.matmul %40, %43, %cst_21 {dimension_numbers = #tpu.dot_dimension_numbers<[1], [0], [0], [1], [0, 0, 1, 1], [], []>} : vector<8x160xf32>, vector<160x320xf32>, vector<8x320xf32> -> vector<8x320xf32>
    %45 = vector.broadcast %41 : vector<1x320xf32> to vector<8x320xf32>
    %46 = arith.addf %45, %44 : vector<8x320xf32>
    %47 = tpu.concatenate %24, %24, %24, %24, %24 in 1 : vector<8x64xf32>, vector<8x64xf32>, vector<8x64xf32>, vector<8x64xf32>, vector<8x64xf32> -> vector<8x320xf32>
    %48 = tpu.concatenate %32, %32, %32, %32, %32 in 1 : vector<8x64xf32>, vector<8x64xf32>, vector<8x64xf32>, vector<8x64xf32>, vector<8x64xf32> -> vector<8x320xf32>
    %49 = arith.mulf %46, %48 : vector<8x320xf32>
    %50 = arith.addf %47, %49 : vector<8x320xf32>
    %c0_22 = arith.constant 0 : index
    %c0_23 = arith.constant 0 : index
    %51 = vector.load %arg10[%c0_22, %c0_23] : memref<320x320xbf16, #tpu.memory_space<vmem>>, vector<320x320xbf16>
    %52 = arith.extf %51 : vector<320x320xbf16> to vector<320x320xf32>
    %cst_24 = arith.constant dense<0.000000e+00> : vector<8x320xf32>
    %53 = tpu.matmul %50, %52, %cst_24 {dimension_numbers = #tpu.dot_dimension_numbers<[1], [0], [0], [1], [0, 0, 1, 1], [], []>} : vector<8x320xf32>, vector<320x320xf32>, vector<8x320xf32> -> vector<8x320xf32>
    %54 = vector.extract_strided_slice %53 {offsets = [0, 0], sizes = [8, 64], strides = [1, 1]} : vector<8x320xf32> to vector<8x64xf32>
    %55 = vector.extract_strided_slice %53 {offsets = [0, 64], sizes = [8, 64], strides = [1, 1]} : vector<8x320xf32> to vector<8x64xf32>
    %56 = vector.extract_strided_slice %53 {offsets = [0, 128], sizes = [8, 64], strides = [1, 1]} : vector<8x320xf32> to vector<8x64xf32>
    %57 = vector.extract_strided_slice %53 {offsets = [0, 192], sizes = [8, 64], strides = [1, 1]} : vector<8x320xf32> to vector<8x64xf32>
    %58 = vector.extract_strided_slice %53 {offsets = [0, 256], sizes = [8, 64], strides = [1, 1]} : vector<8x320xf32> to vector<8x64xf32>
    %59 = math.tanh %58 : vector<8x64xf32>
    %c0_25 = arith.constant 0 : index
    %c0_26 = arith.constant 0 : index
    %60 = vector.load %arg12[%c0_25, %c0_26] : memref<1x64xf32, #tpu.memory_space<vmem>>, vector<1x64xf32>
    %c0_27 = arith.constant 0 : index
    %c0_28 = arith.constant 0 : index
    %61 = vector.load %arg11[%c0_27, %c0_28] : memref<64x64xbf16, #tpu.memory_space<vmem>>, vector<64x64xbf16>
    %62 = arith.extf %61 : vector<64x64xbf16> to vector<64x64xf32>
    %cst_29 = arith.constant dense<0.000000e+00> : vector<8x64xf32>
    %63 = tpu.matmul %59, %62, %cst_29 {dimension_numbers = #tpu.dot_dimension_numbers<[1], [0], [0], [1], [0, 0, 1, 1], [], []>} : vector<8x64xf32>, vector<64x64xf32>, vector<8x64xf32> -> vector<8x64xf32>
    %64 = vector.broadcast %60 : vector<1x64xf32> to vector<8x64xf32>
    %65 = arith.addf %64, %63 : vector<8x64xf32>
    %66 = math.exp %65 : vector<8x64xf32>
    %67 = tpu.iota {dimensions = array<i32: 0>} : vector<8x8xi32>
    %68 = tpu.iota {dimensions = array<i32: 1>} : vector<8x8xi32>
    %69 = arith.cmpi slt, %68, %67 : vector<8x8xi32>
    %70 = arith.extui %69 : vector<8x8xi1> to vector<8x8xi32>
    %71 = arith.sitofp %70 : vector<8x8xi32> to vector<8x8xf32>
    %cst_30 = arith.constant dense<0.000000e+00> : vector<8x64xf32>
    %72 = tpu.matmul %71, %66, %cst_30 {dimension_numbers = #tpu.dot_dimension_numbers<[1], [0], [0], [1], [0, 0, 1, 1], [], []>} : vector<8x8xf32>, vector<8x64xf32>, vector<8x64xf32> -> vector<8x64xf32>
    %73 = arith.addf %72, %66 : vector<8x64xf32>
    %cst_31 = arith.constant 0.000000e+00 : f32
    %74 = vector.broadcast %cst_31 : f32 to vector<8x64xf32>
    %75 = arith.subf %74, %72 : vector<8x64xf32>
    %76 = math.exp %75 : vector<8x64xf32>
    %77 = vector.extract_strided_slice %73 {offsets = [7, 0], sizes = [1, 64], strides = [1, 1]} : vector<8x64xf32> to vector<1x64xf32>
    %cst_32 = arith.constant 0.000000e+00 : f32
    %78 = vector.broadcast %cst_32 : f32 to vector<1x64xf32>
    %79 = arith.subf %78, %77 : vector<1x64xf32>
    %80 = math.exp %79 : vector<1x64xf32>
    %81 = arith.mulf %54, %76 : vector<8x64xf32>
    %82 = math.exp %73 : vector<8x64xf32>
    %83 = arith.mulf %55, %82 : vector<8x64xf32>
    %84 = vector.broadcast %80 : vector<1x64xf32> to vector<8x64xf32>
    %85 = arith.mulf %83, %84 : vector<8x64xf32>
    %86 = tpu.transpose %85, [1, 0] : vector<8x64xf32> -> vector<64x8xf32>
    %87 = arith.mulf %54, %55 : vector<8x64xf32>
    %c0_33 = arith.constant 0 : index
    %c0_34 = arith.constant 0 : index
    %88 = vector.load %arg13[%c0_33, %c0_34] : memref<1x64xf32, #tpu.memory_space<vmem>>, vector<1x64xf32>
    %89 = vector.broadcast %88 : vector<1x64xf32> to vector<8x64xf32>
    %90 = arith.mulf %87, %89 : vector<8x64xf32>
    %91 = vector.shape_cast %80 : vector<1x64xf32> to vector<64xf32>
    %92 = vector.extract_strided_slice %91 {offsets = [0], sizes = [32], strides = [1]} : vector<64xf32> to vector<32xf32>
    %93 = vector.shape_cast %92 : vector<32xf32> to vector<32x1xf32>
    %94 = vector.extract_strided_slice %91 {offsets = [32], sizes = [32], strides = [1]} : vector<64xf32> to vector<32xf32>
    %95 = vector.shape_cast %94 : vector<32xf32> to vector<32x1xf32>
    %96 = vector.extract_strided_slice %81 {offsets = [0, 0], sizes = [8, 32], strides = [1, 1]} : vector<8x64xf32> to vector<8x32xf32>
    %97 = vector.extract_strided_slice %56 {offsets = [0, 0], sizes = [8, 32], strides = [1, 1]} : vector<8x64xf32> to vector<8x32xf32>
    %c0_35 = arith.constant 0 : index
    %c0_36 = arith.constant 0 : index
    %c0_37 = arith.constant 0 : index
    %c0_38 = arith.constant 0 : index
    %98 = vector.load %arg2[%c0_35, %c0_36, %c0_37, %c0_38] : memref<1x2x32x32xf32, #tpu.memory_space<vmem>>, vector<1x1x32x32xf32>
    %99 = vector.shape_cast %98 : vector<1x1x32x32xf32> to vector<32x32xf32>
    %100 = vector.extract_strided_slice %83 {offsets = [0, 0], sizes = [8, 32], strides = [1, 1]} : vector<8x64xf32> to vector<8x32xf32>
    %cst_39 = arith.constant dense<0.000000e+00> : vector<8x8xf32>
    %101 = tpu.matmul %96, %100, %cst_39 {dimension_numbers = #tpu.dot_dimension_numbers<[1], [1], [0], [0], [0, 0, 1, 0], [], []>} : vector<8x32xf32>, vector<8x32xf32>, vector<8x8xf32> -> vector<8x8xf32>
    %cst_40 = arith.constant 0.000000e+00 : f32
    %102 = vector.broadcast %cst_40 : f32 to vector<8x8xf32>
    %103 = arith.select %69, %101, %102 : vector<8x8xi1>, vector<8x8xf32>
    %104 = vector.extract_strided_slice %90 {offsets = [0, 0], sizes = [8, 32], strides = [1, 1]} : vector<8x64xf32> to vector<8x32xf32>
    %cst_41 = arith.constant dense<0.000000e+00> : vector<8xf32>
    %105 = vector.multi_reduction <add>, %104, %cst_41 [1] : vector<8x32xf32> to vector<8xf32>
    %106 = vector.shape_cast %105 : vector<8xf32> to vector<8x1xf32>
    %cst_42 = arith.constant dense<0.000000e+00> : vector<8x32xf32>
    %107 = tpu.matmul %103, %97, %cst_42 {dimension_numbers = #tpu.dot_dimension_numbers<[1], [0], [0], [1], [0, 0, 1, 1], [], []>} : vector<8x8xf32>, vector<8x32xf32>, vector<8x32xf32> -> vector<8x32xf32>
    %cst_43 = arith.constant dense<0.000000e+00> : vector<8x32xf32>
    %108 = tpu.matmul %96, %99, %cst_43 {dimension_numbers = #tpu.dot_dimension_numbers<[1], [0], [0], [1], [0, 0, 1, 1], [], []>} : vector<8x32xf32>, vector<32x32xf32>, vector<8x32xf32> -> vector<8x32xf32>
    %109 = arith.addf %107, %108 : vector<8x32xf32>
    %110 = vector.broadcast %106 : vector<8x1xf32> to vector<8x32xf32>
    %111 = arith.mulf %110, %97 : vector<8x32xf32>
    %112 = arith.addf %109, %111 : vector<8x32xf32>
    %113 = vector.broadcast %93 : vector<32x1xf32> to vector<32x32xf32>
    %114 = arith.mulf %113, %99 : vector<32x32xf32>
    %115 = vector.extract_strided_slice %86 {offsets = [0, 0], sizes = [32, 8], strides = [1, 1]} : vector<64x8xf32> to vector<32x8xf32>
    %cst_44 = arith.constant dense<0.000000e+00> : vector<32x32xf32>
    %116 = tpu.matmul %115, %97, %cst_44 {dimension_numbers = #tpu.dot_dimension_numbers<[1], [0], [0], [1], [0, 0, 1, 1], [], []>} : vector<32x8xf32>, vector<8x32xf32>, vector<32x32xf32> -> vector<32x32xf32>
    %117 = arith.addf %114, %116 : vector<32x32xf32>
    %c0_45 = arith.constant 0 : index
    %c0_46 = arith.constant 0 : index
    %c0_47 = arith.constant 0 : index
    %c0_48 = arith.constant 0 : index
    %118 = vector.load %arg24[%c0_45, %c0_46, %c0_47, %c0_48] : memref<1x2x32x32xf32, #tpu.memory_space<vmem>>, vector<1x1x32x32xf32>
    %119 = vector.shape_cast %118 : vector<1x1x32x32xf32> to vector<32x32xf32>
    %120 = vector.shape_cast %117 : vector<32x32xf32> to vector<1x1x32x32xf32>
    tpu.vector_store %arg24[%c0_45, %c0_46, %c0_47, %c0_48], %120 {strides = array<i32>} : memref<1x2x32x32xf32, #tpu.memory_space<vmem>>, vector<1x1x32x32xf32>,
    %121 = vector.extract_strided_slice %81 {offsets = [0, 32], sizes = [8, 32], strides = [1, 1]} : vector<8x64xf32> to vector<8x32xf32>
    %122 = vector.extract_strided_slice %56 {offsets = [0, 32], sizes = [8, 32], strides = [1, 1]} : vector<8x64xf32> to vector<8x32xf32>
    %c0_49 = arith.constant 0 : index
    %c1 = arith.constant 1 : index
    %c0_50 = arith.constant 0 : index
    %c0_51 = arith.constant 0 : index
    %123 = vector.load %arg2[%c0_49, %c1, %c0_50, %c0_51] : memref<1x2x32x32xf32, #tpu.memory_space<vmem>>, vector<1x1x32x32xf32>
    %124 = vector.shape_cast %123 : vector<1x1x32x32xf32> to vector<32x32xf32>
    %125 = vector.extract_strided_slice %83 {offsets = [0, 32], sizes = [8, 32], strides = [1, 1]} : vector<8x64xf32> to vector<8x32xf32>
    %cst_52 = arith.constant dense<0.000000e+00> : vector<8x8xf32>
    %126 = tpu.matmul %121, %125, %cst_52 {dimension_numbers = #tpu.dot_dimension_numbers<[1], [1], [0], [0], [0, 0, 1, 0], [], []>} : vector<8x32xf32>, vector<8x32xf32>, vector<8x8xf32> -> vector<8x8xf32>
    %cst_53 = arith.constant 0.000000e+00 : f32
    %127 = vector.broadcast %cst_53 : f32 to vector<8x8xf32>
    %128 = arith.select %69, %126, %127 : vector<8x8xi1>, vector<8x8xf32>
    %129 = vector.extract_strided_slice %90 {offsets = [0, 32], sizes = [8, 32], strides = [1, 1]} : vector<8x64xf32> to vector<8x32xf32>
    %cst_54 = arith.constant dense<0.000000e+00> : vector<8xf32>
    %130 = vector.multi_reduction <add>, %129, %cst_54 [1] : vector<8x32xf32> to vector<8xf32>
    %131 = vector.shape_cast %130 : vector<8xf32> to vector<8x1xf32>
    %cst_55 = arith.constant dense<0.000000e+00> : vector<8x32xf32>
    %132 = tpu.matmul %128, %122, %cst_55 {dimension_numbers = #tpu.dot_dimension_numbers<[1], [0], [0], [1], [0, 0, 1, 1], [], []>} : vector<8x8xf32>, vector<8x32xf32>, vector<8x32xf32> -> vector<8x32xf32>
    %cst_56 = arith.constant dense<0.000000e+00> : vector<8x32xf32>
    %133 = tpu.matmul %121, %124, %cst_56 {dimension_numbers = #tpu.dot_dimension_numbers<[1], [0], [0], [1], [0, 0, 1, 1], [], []>} : vector<8x32xf32>, vector<32x32xf32>, vector<8x32xf32> -> vector<8x32xf32>
    %134 = arith.addf %132, %133 : vector<8x32xf32>
    %135 = vector.broadcast %131 : vector<8x1xf32> to vector<8x32xf32>
    %136 = arith.mulf %135, %122 : vector<8x32xf32>
    %137 = arith.addf %134, %136 : vector<8x32xf32>
    %138 = vector.broadcast %95 : vector<32x1xf32> to vector<32x32xf32>
    %139 = arith.mulf %138, %124 : vector<32x32xf32>
    %140 = vector.extract_strided_slice %86 {offsets = [32, 0], sizes = [32, 8], strides = [1, 1]} : vector<64x8xf32> to vector<32x8xf32>
    %cst_57 = arith.constant dense<0.000000e+00> : vector<32x32xf32>
    %141 = tpu.matmul %140, %122, %cst_57 {dimension_numbers = #tpu.dot_dimension_numbers<[1], [0], [0], [1], [0, 0, 1, 1], [], []>} : vector<32x8xf32>, vector<8x32xf32>, vector<32x32xf32> -> vector<32x32xf32>
    %142 = arith.addf %139, %141 : vector<32x32xf32>
    %c0_58 = arith.constant 0 : index
    %c1_59 = arith.constant 1 : index
    %c0_60 = arith.constant 0 : index
    %c0_61 = arith.constant 0 : index
    %143 = vector.load %arg24[%c0_58, %c1_59, %c0_60, %c0_61] : memref<1x2x32x32xf32, #tpu.memory_space<vmem>>, vector<1x1x32x32xf32>
    %144 = vector.shape_cast %143 : vector<1x1x32x32xf32> to vector<32x32xf32>
    %145 = vector.shape_cast %142 : vector<32x32xf32> to vector<1x1x32x32xf32>
    tpu.vector_store %arg24[%c0_58, %c1_59, %c0_60, %c0_61], %145 {strides = array<i32>} : memref<1x2x32x32xf32, #tpu.memory_space<vmem>>, vector<1x1x32x32xf32>,
    %146 = tpu.concatenate %112, %137 in 1 : vector<8x32xf32>, vector<8x32xf32> -> vector<8x64xf32>
    %147 = vector.extract_strided_slice %146 {offsets = [0, 0], sizes = [8, 32], strides = [1, 1]} : vector<8x64xf32> to vector<8x32xf32>
    %cst_62 = arith.constant dense<0.000000e+00> : vector<8xf32>
    %148 = vector.multi_reduction <add>, %147, %cst_62 [1] : vector<8x32xf32> to vector<8xf32>
    %149 = vector.shape_cast %148 : vector<8xf32> to vector<8x1xf32>
    %cst_63 = arith.constant 3.200000e+01 : f32
    %150 = vector.broadcast %cst_63 : f32 to vector<8x1xf32>
    %151 = arith.divf %149, %150 : vector<8x1xf32>
    %152 = vector.broadcast %151 : vector<8x1xf32> to vector<8x32xf32>
    %153 = arith.subf %147, %152 : vector<8x32xf32>
    %154 = arith.mulf %153, %153 : vector<8x32xf32>
    %cst_64 = arith.constant dense<0.000000e+00> : vector<8xf32>
    %155 = vector.multi_reduction <add>, %154, %cst_64 [1] : vector<8x32xf32> to vector<8xf32>
    %156 = vector.shape_cast %155 : vector<8xf32> to vector<8x1xf32>
    %cst_65 = arith.constant 3.200000e+01 : f32
    %157 = vector.broadcast %cst_65 : f32 to vector<8x1xf32>
    %158 = arith.divf %156, %157 : vector<8x1xf32>
    %cst_66 = arith.constant 6.400000e-04 : f32
    %159 = vector.broadcast %cst_66 : f32 to vector<8x1xf32>
    %160 = arith.addf %158, %159 : vector<8x1xf32>
    %161 = math.rsqrt %160 : vector<8x1xf32>
    %162 = vector.broadcast %161 : vector<8x1xf32> to vector<8x32xf32>
    %163 = arith.mulf %153, %162 : vector<8x32xf32>
    %164 = vector.extract_strided_slice %146 {offsets = [0, 32], sizes = [8, 32], strides = [1, 1]} : vector<8x64xf32> to vector<8x32xf32>
    %cst_67 = arith.constant dense<0.000000e+00> : vector<8xf32>
    %165 = vector.multi_reduction <add>, %164, %cst_67 [1] : vector<8x32xf32> to vector<8xf32>
    %166 = vector.shape_cast %165 : vector<8xf32> to vector<8x1xf32>
    %cst_68 = arith.constant 3.200000e+01 : f32
    %167 = vector.broadcast %cst_68 : f32 to vector<8x1xf32>
    %168 = arith.divf %166, %167 : vector<8x1xf32>
    %169 = vector.broadcast %168 : vector<8x1xf32> to vector<8x32xf32>
    %170 = arith.subf %164, %169 : vector<8x32xf32>
    %171 = arith.mulf %170, %170 : vector<8x32xf32>
    %cst_69 = arith.constant dense<0.000000e+00> : vector<8xf32>
    %172 = vector.multi_reduction <add>, %171, %cst_69 [1] : vector<8x32xf32> to vector<8xf32>
    %173 = vector.shape_cast %172 : vector<8xf32> to vector<8x1xf32>
    %cst_70 = arith.constant 3.200000e+01 : f32
    %174 = vector.broadcast %cst_70 : f32 to vector<8x1xf32>
    %175 = arith.divf %173, %174 : vector<8x1xf32>
    %cst_71 = arith.constant 6.400000e-04 : f32
    %176 = vector.broadcast %cst_71 : f32 to vector<8x1xf32>
    %177 = arith.addf %175, %176 : vector<8x1xf32>
    %178 = math.rsqrt %177 : vector<8x1xf32>
    %179 = vector.broadcast %178 : vector<8x1xf32> to vector<8x32xf32>
    %180 = arith.mulf %170, %179 : vector<8x32xf32>
    %181 = tpu.concatenate %163, %180 in 1 : vector<8x32xf32>, vector<8x32xf32> -> vector<8x64xf32>
    %c0_72 = arith.constant 0 : index
    %c0_73 = arith.constant 0 : index
    %182 = vector.load %arg14[%c0_72, %c0_73] : memref<1x64xf32, #tpu.memory_space<vmem>>, vector<1x64xf32>
    %183 = vector.broadcast %182 : vector<1x64xf32> to vector<8x64xf32>
    %184 = arith.mulf %181, %183 : vector<8x64xf32>
    %c0_74 = arith.constant 0 : index
    %c0_75 = arith.constant 0 : index
    %185 = vector.load %arg15[%c0_74, %c0_75] : memref<1x64xf32, #tpu.memory_space<vmem>>, vector<1x64xf32>
    %186 = vector.broadcast %185 : vector<1x64xf32> to vector<8x64xf32>
    %187 = arith.addf %184, %186 : vector<8x64xf32>
    %cst_76 = arith.constant 0.000000e+00 : f32
    %188 = vector.broadcast %cst_76 : f32 to vector<8x64xf32>
    %189 = arith.subf %188, %57 : vector<8x64xf32>
    %190 = math.exp %189 : vector<8x64xf32>
    %cst_77 = arith.constant 1.000000e+00 : f32
    %191 = vector.broadcast %cst_77 : f32 to vector<8x64xf32>
    %192 = arith.addf %191, %190 : vector<8x64xf32>
    %193 = tpu.reciprocal %192 {approx = true} : vector<8x64xf32> -> vector<8x64xf32>
    %194 = arith.mulf %57, %193 : vector<8x64xf32>
    %195 = arith.mulf %187, %194 : vector<8x64xf32>
    %c0_78 = arith.constant 0 : index
    %c0_79 = arith.constant 0 : index
    %196 = vector.load %arg16[%c0_78, %c0_79] : memref<64x64xbf16, #tpu.memory_space<vmem>>, vector<64x64xbf16>
    %197 = arith.extf %196 : vector<64x64xbf16> to vector<64x64xf32>
    %cst_80 = arith.constant dense<0.000000e+00> : vector<8x64xf32>
    %198 = tpu.matmul %195, %197, %cst_80 {dimension_numbers = #tpu.dot_dimension_numbers<[1], [0], [0], [1], [0, 0, 1, 1], [], []>} : vector<8x64xf32>, vector<64x64xf32>, vector<8x64xf32> -> vector<8x64xf32>
    %199 = arith.addf %24, %198 : vector<8x64xf32>
    %200 = vector.extract_strided_slice %24 {offsets = [7, 0], sizes = [1, 64], strides = [1, 1]} : vector<8x64xf32> to vector<1x64xf32>
    %c0_81 = arith.constant 0 : index
    %c0_82 = arith.constant 0 : index
    %201 = vector.load %arg23[%c0_81, %c0_82] : memref<1x64xf32, #tpu.memory_space<vmem>>, vector<1x64xf32>
    tpu.vector_store %arg23[%c0_81, %c0_82], %200 {strides = array<i32>} : memref<1x64xf32, #tpu.memory_space<vmem>>, vector<1x64xf32>,
    %c0_83 = arith.constant 0 : index
    %c0_84 = arith.constant 0 : index
    %202 = vector.load %arg17[%c0_83, %c0_84] : memref<1x64xf32, #tpu.memory_space<vmem>>, vector<1x64xf32>
    %c0_85 = arith.constant 0 : index
    %c0_86 = arith.constant 0 : index
    %203 = vector.load %arg18[%c0_85, %c0_86] : memref<1x64xf32, #tpu.memory_space<vmem>>, vector<1x64xf32>
    %cst_87 = arith.constant dense<0.000000e+00> : vector<8xf32>
    %204 = vector.multi_reduction <add>, %199, %cst_87 [1] : vector<8x64xf32> to vector<8xf32>
    %205 = vector.shape_cast %204 : vector<8xf32> to vector<8x1xf32>
    %cst_88 = arith.constant 6.400000e+01 : f32
    %206 = vector.broadcast %cst_88 : f32 to vector<8x1xf32>
    %207 = arith.divf %205, %206 : vector<8x1xf32>
    %208 = vector.broadcast %207 : vector<8x1xf32> to vector<8x64xf32>
    %209 = arith.subf %199, %208 : vector<8x64xf32>
    %210 = arith.mulf %209, %209 : vector<8x64xf32>
    %cst_89 = arith.constant dense<0.000000e+00> : vector<8xf32>
    %211 = vector.multi_reduction <add>, %210, %cst_89 [1] : vector<8x64xf32> to vector<8xf32>
    %212 = vector.shape_cast %211 : vector<8xf32> to vector<8x1xf32>
    %cst_90 = arith.constant 6.400000e+01 : f32
    %213 = vector.broadcast %cst_90 : f32 to vector<8x1xf32>
    %214 = arith.divf %212, %213 : vector<8x1xf32>
    %cst_91 = arith.constant 9.99999974E-6 : f32
    %215 = vector.broadcast %cst_91 : f32 to vector<8x1xf32>
    %216 = arith.addf %214, %215 : vector<8x1xf32>
    %217 = math.rsqrt %216 : vector<8x1xf32>
    %218 = vector.broadcast %217 : vector<8x1xf32> to vector<8x64xf32>
    %219 = arith.mulf %209, %218 : vector<8x64xf32>
    %220 = vector.broadcast %202 : vector<1x64xf32> to vector<8x64xf32>
    %221 = arith.mulf %219, %220 : vector<8x64xf32>
    %222 = vector.broadcast %203 : vector<1x64xf32> to vector<8x64xf32>
    %223 = arith.addf %221, %222 : vector<8x64xf32>
    %c0_i32_92 = arith.constant 0 : i32
    %224 = vector.broadcast %c0_i32_92 : i32 to vector<8x64xi32>
    %225 = arith.cmpi eq, %0, %224 : vector<8x64xi32>
    %c0_93 = arith.constant 0 : index
    %c0_94 = arith.constant 0 : index
    %226 = vector.load %arg3[%c0_93, %c0_94] : memref<1x64xf32, #tpu.memory_space<vmem>>, vector<1x64xf32>
    %c1_i32_95 = arith.constant 1 : i32
    %227 = tpu.dynamic_rotate %223 by %c1_i32_95 dim 0 : vector<8x64xf32>, i32 -> vector<8x64xf32>
    %228 = vector.shape_cast %226 : vector<1x64xf32> to vector<1x64xf32>
    %229 = vector.broadcast %228 : vector<1x64xf32> to vector<8x64xf32>
    %230 = arith.select %225, %229, %227 : vector<8x64xi1>, vector<8x64xf32>
    %231 = arith.subf %230, %223 : vector<8x64xf32>
    %232 = tpu.concatenate %223, %223 in 1 : vector<8x64xf32>, vector<8x64xf32> -> vector<8x128xf32>
    %c0_96 = arith.constant 0 : index
    %c0_97 = arith.constant 0 : index
    %233 = vector.load %arg19[%c0_96, %c0_97] : memref<1x128xf32, #tpu.memory_space<vmem>>, vector<1x128xf32>
    %234 = tpu.concatenate %231, %231 in 1 : vector<8x64xf32>, vector<8x64xf32> -> vector<8x128xf32>
    %235 = vector.broadcast %233 : vector<1x128xf32> to vector<8x128xf32>
    %236 = arith.mulf %235, %234 : vector<8x128xf32>
    %237 = arith.addf %232, %236 : vector<8x128xf32>
    %c0_98 = arith.constant 0 : index
    %c0_99 = arith.constant 0 : index
    %238 = vector.load %arg20[%c0_98, %c0_99] : memref<128x320xbf16, #tpu.memory_space<vmem>>, vector<128x320xbf16>
    %239 = arith.extf %238 : vector<128x320xbf16> to vector<128x320xf32>
    %cst_100 = arith.constant dense<0.000000e+00> : vector<8x320xf32>
    %240 = tpu.matmul %237, %239, %cst_100 {dimension_numbers = #tpu.dot_dimension_numbers<[1], [0], [0], [1], [0, 0, 1, 1], [], []>} : vector<8x128xf32>, vector<128x320xf32>, vector<8x320xf32> -> vector<8x320xf32>
    %241 = vector.extract_strided_slice %240 {offsets = [0, 0], sizes = [8, 256], strides = [1, 1]} : vector<8x320xf32> to vector<8x256xf32>
    %cst_101 = arith.constant 0.000000e+00 : f32
    %242 = vector.broadcast %cst_101 : f32 to vector<8x256xf32>
    %243 = arith.maximumf %241, %242 : vector<8x256xf32>
    %244 = arith.mulf %243, %243 : vector<8x256xf32>
    %c0_102 = arith.constant 0 : index
    %c0_103 = arith.constant 0 : index
    %245 = vector.load %arg21[%c0_102, %c0_103] : memref<256x64xbf16, #tpu.memory_space<vmem>>, vector<256x64xbf16>
    %246 = arith.extf %245 : vector<256x64xbf16> to vector<256x64xf32>
    %cst_104 = arith.constant dense<0.000000e+00> : vector<8x64xf32>
    %247 = tpu.matmul %244, %246, %cst_104 {dimension_numbers = #tpu.dot_dimension_numbers<[1], [0], [0], [1], [0, 0, 1, 1], [], []>} : vector<8x256xf32>, vector<256x64xf32>, vector<8x64xf32> -> vector<8x64xf32>
    %248 = vector.extract_strided_slice %240 {offsets = [0, 256], sizes = [8, 64], strides = [1, 1]} : vector<8x320xf32> to vector<8x64xf32>
    %cst_105 = arith.constant 0.000000e+00 : f32
    %249 = vector.broadcast %cst_105 : f32 to vector<8x64xf32>
    %250 = arith.subf %249, %248 : vector<8x64xf32>
    %251 = math.exp %250 : vector<8x64xf32>
    %cst_106 = arith.constant 1.000000e+00 : f32
    %252 = vector.broadcast %cst_106 : f32 to vector<8x64xf32>
    %253 = arith.addf %252, %251 : vector<8x64xf32>
    %254 = tpu.reciprocal %253 {approx = true} : vector<8x64xf32> -> vector<8x64xf32>
    %255 = arith.mulf %254, %247 : vector<8x64xf32>
    %256 = arith.addf %223, %255 : vector<8x64xf32>
    %c0_107 = arith.constant 0 : index
    %c0_108 = arith.constant 0 : index
    %c0_109 = arith.constant 0 : index
    %257 = vector.load %arg22[%c0_107, %c0_108, %c0_109] : memref<1x8x64xf32, #tpu.memory_space<vmem>>, vector<1x8x64xf32>
    %258 = vector.shape_cast %257 : vector<1x8x64xf32> to vector<8x64xf32>
    %259 = vector.shape_cast %256 : vector<8x64xf32> to vector<1x8x64xf32>
    tpu.vector_store %arg22[%c0_107, %c0_108, %c0_109], %259 {strides = array<i32>} : memref<1x8x64xf32, #tpu.memory_space<vmem>>, vector<1x8x64xf32>,
    %260 = vector.extract_strided_slice %223 {offsets = [7, 0], sizes = [1, 64], strides = [1, 1]} : vector<8x64xf32> to vector<1x64xf32>
    %c0_110 = arith.constant 0 : index
    %c0_111 = arith.constant 0 : index
    %261 = vector.load %arg25[%c0_110, %c0_111] : memref<1x64xf32, #tpu.memory_space<vmem>>, vector<1x64xf32>
    tpu.vector_store %arg25[%c0_110, %c0_111], %260 {strides = array<i32>} : memref<1x64xf32, #tpu.memory_space<vmem>>, vector<1x64xf32>,
    return
  }
}

</mosaic_0001>

<llo_original>
// kernel: layer_forward.1
$region0: #{layer_forward.1}
  #allocation0 [shape = 'u32[]', space=smem, size = 0x4, offset = 0x4, fixed_abs, tag = 'smem constant byte address 0x4 - core index']
  #allocation1 [shape = 'u32[144,128]{1,0:T(1,128)}', space=vmem, size = 0x12000, scoped, tag = 'internal scratch']
  %s0 = inlined_call_operand.vmem [shape: f32[1,8,64], index: 0, kind: input, shape index: {}]
  %s1 = inlined_call_operand.vmem [shape: f32[1,64], index: 1, kind: input, shape index: {}]
  %s2 = inlined_call_operand.vmem [shape: f32[1,2,32,32], index: 2, kind: input, shape index: {}]
  %s3 = inlined_call_operand.vmem [shape: f32[1,64], index: 3, kind: input, shape index: {}]
  %s4 = inlined_call_operand.vmem [shape: f32[1,64], index: 4, kind: input, shape index: {}]
  %s5 = inlined_call_operand.vmem [shape: f32[1,64], index: 5, kind: input, shape index: {}]
  %s6 = inlined_call_operand.vmem [shape: f32[1,64], index: 6, kind: input, shape index: {}]
  %s7 = inlined_call_operand.hbm [shape: bf16[64,160], index: 7, kind: input, shape index: {}]
  %s8 = inlined_call_operand.hbm [shape: bf16[160,320], index: 8, kind: input, shape index: {}]
  %s9 = inlined_call_operand.vmem [shape: f32[1,320], index: 9, kind: input, shape index: {}]
  %s10 = inlined_call_operand.vmem [shape: bf16[320,320], index: 10, kind: input, shape index: {}]
  %s11 = inlined_call_operand.vmem [shape: bf16[64,64], index: 11, kind: input, shape index: {}]
  %s12 = inlined_call_operand.vmem [shape: f32[1,64], index: 12, kind: input, shape index: {}]
  %s13 = inlined_call_operand.vmem [shape: f32[1,64], index: 13, kind: input, shape index: {}]
  %s14 = inlined_call_operand.vmem [shape: f32[1,64], index: 14, kind: input, shape index: {}]
  %s15 = inlined_call_operand.vmem [shape: f32[1,64], index: 15, kind: input, shape index: {}]
  %s16 = inlined_call_operand.hbm [shape: bf16[64,64], index: 16, kind: input, shape index: {}]
  %s17 = inlined_call_operand.vmem [shape: f32[1,64], index: 17, kind: input, shape index: {}]
  %s18 = inlined_call_operand.vmem [shape: f32[1,64], index: 18, kind: input, shape index: {}]
  %s19 = inlined_call_operand.vmem [shape: f32[1,128], index: 19, kind: input, shape index: {}]
  %s20 = inlined_call_operand.vmem [shape: bf16[128,320], index: 20, kind: input, shape index: {}]
  %s21 = inlined_call_operand.vmem [shape: bf16[256,64], index: 21, kind: input, shape index: {}]
  %s22 = inlined_call_operand.hbm [shape: f32[1,8,64], index: 22, kind: output, shape index: {0}]
  %s23 = inlined_call_operand.hbm [shape: f32[1,64], index: 23, kind: output, shape index: {1}]
  %s24 = inlined_call_operand.hbm [shape: f32[1,2,32,32], index: 24, kind: output, shape index: {2}]
  %s25 = inlined_call_operand.hbm [shape: f32[1,64], index: 25, kind: output, shape index: {3}]
  %26 = xla_tuple %s22, %s23, %s24, %s25
  %s27 = sld [smem:[#allocation0]]
  $region134: #{layer_forward.1} parent=0
    _
  %s29 = ssub.s32 1, %s27
  %s30 = scalar_select 0, %s29, %s27
  $region1: #{layer_forward.1} parent=0
    #allocation2 [shape = 'u8[32768]{0}', space=vmem, size = 0x8000, scoped, tag = 'input window, operand 7, single buffered']
    #allocation3 [shape = 's32[1]{0}', space=sflag, size = 0x4, scoped, tag = 'scoped memory for layer_forward.1']
    #allocation4 [shape = 's32[1]{0}', space=sflag, size = 0x4, scoped, tag = 'scoped memory for layer_forward.1']
    #allocation5 [shape = 'u8[122880]{0}', space=vmem, size = 0x1e000, scoped, tag = 'input window, operand 8, single buffered']
    #allocation6 [shape = 's32[1]{0}', space=sflag, size = 0x4, scoped, tag = 'scoped memory for layer_forward.1']
    #allocation7 [shape = 'u8[16384]{0}', space=vmem, size = 0x4000, scoped, tag = 'input window, operand 16, single buffered']
    #allocation8 [shape = 'u8[4096]{0}', space=vmem, size = 0x1000, scoped, tag = 'output window, operand 0, single buffered']
    #allocation9 [shape = 'u8[512]{0}', space=vmem, size = 0x400, scoped, tag = 'output window, operand 1, single buffered']
    #allocation10 [shape = 's32[1]{0}', space=sflag, size = 0x4, scoped, tag = 'scoped memory for layer_forward.1']
    #allocation11 [shape = 'u8[32768]{0}', space=vmem, size = 0x8000, scoped, tag = 'output window, operand 2, single buffered']
    #allocation12 [shape = 'u8[512]{0}', space=vmem, size = 0x400, scoped, tag = 'output window, operand 3, single buffered']
    #allocation13 [shape = 's32[1]{0}', space=sflag, size = 0x4, scoped, tag = 'scoped memory for layer_forward.1']
    %31 = vsyncpa [#allocation3], 0
    %32 = vsyncpa [#allocation6], 0
    %33 = vsyncpa [#allocation4], 0
    %34 = vsyncpa [#allocation10], 0
    %35 = vsyncpa [#allocation13], 0
    // Predicated region
    $region2: #{layer_forward.1} parent=1 // pred_check
      _
    $region3: #{layer_forward.1} parent=1 // pred_check_branch
      %37 = sbr.rel (0) target = $region5
    $region4: #{layer_forward.1} parent=1 // pred_region
      _
    $region5: #{layer_forward.1} parent=1 // pred_fallthru
      _
    // Predicated region
    $region6: #{layer_forward.1} parent=1 // pred_check
      _
    $region7: #{layer_forward.1} parent=1 // pred_check_branch
      %39 = sbr.rel (0) target = $region9
    $region8: #{layer_forward.1} parent=1 // pred_region
      _
    $region9: #{layer_forward.1} parent=1 // pred_fallthru
      _
    // Predicated region
    $region10: #{layer_forward.1} parent=1 // pred_check
      _
    $region11: #{layer_forward.1} parent=1 // pred_check_branch
      %41 = sbr.rel (0) target = $region13
    $region12: #{layer_forward.1} parent=1 // pred_region
      _
    $region13: #{layer_forward.1} parent=1 // pred_fallthru
      _
    // Predicated region
    $region14: #{layer_forward.1} parent=1 // pred_check
      _
    $region15: #{layer_forward.1} parent=1 // pred_check_branch
      %43 = sbr.rel (0) target = $region17
    $region16: #{layer_forward.1} parent=1 // pred_region
      _
    $region17: #{layer_forward.1} parent=1 // pred_fallthru
      _
    // Predicated region
    $region18: #{layer_forward.1} parent=1 // pred_check
      _
    $region19: #{layer_forward.1} parent=1 // pred_check_branch
      %45 = sbr.rel (0) target = $region21
    $region20: #{layer_forward.1} parent=1 // pred_region
      _
    $region21: #{layer_forward.1} parent=1 // pred_fallthru
      _
    // Predicated region
    $region22: #{layer_forward.1} parent=1 // pred_check
      _
    $region23: #{layer_forward.1} parent=1 // pred_check_branch
      %47 = sbr.rel (0) target = $region25
    $region24: #{layer_forward.1} parent=1 // pred_region
      _
    $region25: #{layer_forward.1} parent=1 // pred_fallthru
      _
    // Predicated region
    $region26: #{layer_forward.1} parent=1 // pred_check
      _
    $region27: #{layer_forward.1} parent=1 // pred_check_branch
      %49 = sbr.rel (0) target = $region29
    $region28: #{layer_forward.1} parent=1 // pred_region
      _
    $region29: #{layer_forward.1} parent=1 // pred_fallthru
      _
    // Predicated region
    $region30: #{layer_forward.1} parent=1 // pred_check
      _
    $region31: #{layer_forward.1} parent=1 // pred_check_branch
      %51 = sbr.rel (0) target = $region33
    $region32: #{layer_forward.1} parent=1 // pred_region
      %s53 = ssub.s32 1024, 1024
      %54 = vsyncadd [#allocation3], %s53
      %s55 = sshll.u32 [#allocation2], 4
      %s56 = int_to_ptr.vmem [resolvable:$true] %s55
      %61 = dma.hbm_to_vmem [thread:$0]  %s7, 1024, %s56, [#allocation3], 128, 128, 8
    $region33: #{layer_forward.1} parent=1 // pred_fallthru
      _
    // Predicated region
    $region34: #{layer_forward.1} parent=1 // pred_check
      _
    $region35: #{layer_forward.1} parent=1 // pred_check_branch
      %63 = sbr.rel (0) target = $region37
    $region36: #{layer_forward.1} parent=1 // pred_region
      %s65 = ssub.s32 3840, 3840
      %66 = vsyncadd [#allocation6], %s65
      %s67 = sshll.u32 [#allocation5], 4
      %s68 = int_to_ptr.vmem [resolvable:$true] %s67
      %73 = dma.hbm_to_vmem [thread:$0]  %s8, 3840, %s68, [#allocation6], 192, 192, 12
    $region37: #{layer_forward.1} parent=1 // pred_fallthru
      _
    // Predicated region
    $region38: #{layer_forward.1} parent=1 // pred_check
      _
    $region39: #{layer_forward.1} parent=1 // pred_check_branch
      %75 = sbr.rel (0) target = $region41
    $region40: #{layer_forward.1} parent=1 // pred_region
      _
    $region41: #{layer_forward.1} parent=1 // pred_fallthru
      _
    // Predicated region
    $region42: #{layer_forward.1} parent=1 // pred_check
      _
    $region43: #{layer_forward.1} parent=1 // pred_check_branch
      %77 = sbr.rel (0) target = $region45
    $region44: #{layer_forward.1} parent=1 // pred_region
      _
    $region45: #{layer_forward.1} parent=1 // pred_fallthru
      _
    // Predicated region
    $region46: #{layer_forward.1} parent=1 // pred_check
      _
    $region47: #{layer_forward.1} parent=1 // pred_check_branch
      %79 = sbr.rel (0) target = $region49
    $region48: #{layer_forward.1} parent=1 // pred_region
      _
    $region49: #{layer_forward.1} parent=1 // pred_fallthru
      _
    // Predicated region
    $region50: #{layer_forward.1} parent=1 // pred_check
      _
    $region51: #{layer_forward.1} parent=1 // pred_check_branch
      %81 = sbr.rel (0) target = $region53
    $region52: #{layer_forward.1} parent=1 // pred_region
      _
    $region53: #{layer_forward.1} parent=1 // pred_fallthru
      _
    // Predicated region
    $region54: #{layer_forward.1} parent=1 // pred_check
      _
    $region55: #{layer_forward.1} parent=1 // pred_check_branch
      %83 = sbr.rel (0) target = $region57
    $region56: #{layer_forward.1} parent=1 // pred_region
      _
    $region57: #{layer_forward.1} parent=1 // pred_fallthru
      _
    // Predicated region
    $region58: #{layer_forward.1} parent=1 // pred_check
      _
    $region59: #{layer_forward.1} parent=1 // pred_check_branch
      %85 = sbr.rel (0) target = $region61
    $region60: #{layer_forward.1} parent=1 // pred_region
      _
    $region61: #{layer_forward.1} parent=1 // pred_fallthru
      _
    // Predicated region
    $region62: #{layer_forward.1} parent=1 // pred_check
      _
    $region63: #{layer_forward.1} parent=1 // pred_check_branch
      %87 = sbr.rel (0) target = $region65
    $region64: #{layer_forward.1} parent=1 // pred_region
      _
    $region65: #{layer_forward.1} parent=1 // pred_fallthru
      _
    // Predicated region
    $region66: #{layer_forward.1} parent=1 // pred_check
      _
    $region67: #{layer_forward.1} parent=1 // pred_check_branch
      %89 = sbr.rel (0) target = $region69
    $region68: #{layer_forward.1} parent=1 // pred_region
      %s91 = ssub.s32 512, 512
      %92 = vsyncadd [#allocation6], %s91
      %s93 = sshll.u32 [#allocation7], 4
      %s94 = int_to_ptr.vmem [resolvable:$true] %s93
      %99 = dma.hbm_to_vmem [thread:$0]  %s16, 512, %s94, [#allocation6], 64, 64, 4
    $region69: #{layer_forward.1} parent=1 // pred_fallthru
      _
    // Predicated region
    $region70: #{layer_forward.1} parent=1 // pred_check
      _
    $region71: #{layer_forward.1} parent=1 // pred_check_branch
      %101 = sbr.rel (0) target = $region73
    $region72: #{layer_forward.1} parent=1 // pred_region
      _
    $region73: #{layer_forward.1} parent=1 // pred_fallthru
      _
    // Predicated region
    $region74: #{layer_forward.1} parent=1 // pred_check
      _
    $region75: #{layer_forward.1} parent=1 // pred_check_branch
      %103 = sbr.rel (0) target = $region77
    $region76: #{layer_forward.1} parent=1 // pred_region
      _
    $region77: #{layer_forward.1} parent=1 // pred_fallthru
      _
    // Predicated region
    $region78: #{layer_forward.1} parent=1 // pred_check
      _
    $region79: #{layer_forward.1} parent=1 // pred_check_branch
      %105 = sbr.rel (0) target = $region81
    $region80: #{layer_forward.1} parent=1 // pred_region
      _
    $region81: #{layer_forward.1} parent=1 // pred_fallthru
      _
    // Predicated region
    $region82: #{layer_forward.1} parent=1 // pred_check
      _
    $region83: #{layer_forward.1} parent=1 // pred_check_branch
      %107 = sbr.rel (0) target = $region85
    $region84: #{layer_forward.1} parent=1 // pred_region
      _
    $region85: #{layer_forward.1} parent=1 // pred_fallthru
      _
    // Predicated region
    $region86: #{layer_forward.1} parent=1 // pred_check
      _
    $region87: #{layer_forward.1} parent=1 // pred_check_branch
      %109 = sbr.rel (0) target = $region89
    $region88: #{layer_forward.1} parent=1 // pred_region
      _
    $region89: #{layer_forward.1} parent=1 // pred_fallthru
      _
    // Predicated region
    $region90: #{layer_forward.1} parent=1 // pred_check
      _
    $region91: #{layer_forward.1} parent=1 // pred_check_branch
      %111 = sbr.rel (0) target = $region93
    $region92: #{layer_forward.1} parent=1 // pred_region
      %112 = dma.done [#allocation3], 1024
    $region93: #{layer_forward.1} parent=1 // pred_fallthru
      _
    // Predicated region
    $region94: #{layer_forward.1} parent=1 // pred_check
      _
    $region95: #{layer_forward.1} parent=1 // pred_check_branch
      %114 = sbr.rel (0) target = $region97
    $region96: #{layer_forward.1} parent=1 // pred_region
      %115 = dma.done [#allocation6], 3840
    $region97: #{layer_forward.1} parent=1 // pred_fallthru
      _
    // Predicated region
    $region98: #{layer_forward.1} parent=1 // pred_check
      _
    $region99: #{layer_forward.1} parent=1 // pred_check_branch
      %117 = sbr.rel (0) target = $region101
    $region100: #{layer_forward.1} parent=1 // pred_region
      %118 = dma.done [#allocation6], 512
    $region101: #{layer_forward.1} parent=1 // pred_fallthru
      _
    %v119 = vlaneseq
    %v120 = vshrl.u32 %v119, 7
    %v121 = vld [vmem:[%s0] sm:$0xff]
    %v122 = vld [vmem:[%s4] sm:$0x1]
    %v123 = vld [vmem:[%s5] sm:$0x1]
    %vm124 = vcmask 523264
    %v125 = vsel %vm124, %v121, 0.0
    %126 = vadd.xlane.f32.xlu0 %v125
    %v127 = vpop.xlane.xlu0 %126
    %v128 = vrcp.pop 64.0
    %v129 = vmul.f32 %v127, %v128
    %v130 = vsub.f32 %v121, %v129
    %v131 = vmul.f32 %v130, %v130
    %v132 = vsel %vm124, %v131, 0.0
    %133 = vadd.xlane.f32.xlu0 %v132
    %v134 = vpop.xlane.xlu0 %133
    %v135 = vmul.f32 %v134, %v128
    %v136 = vadd.f32 %v135, 1e-05
    %v137 = vrsqrt.pop %v136
    %v138 = vmul.f32 %v130, %v137
    %v140 = vlaneseq
    %v141 = vshrl.u32 %v140, 7
    %v142 = vsub.s32 0, %v141
    %v143 = vrot.slane %v122, %v142
    %v145 = vmul.f32 %v138, %v143
    %v147 = vlaneseq
    %v148 = vshrl.u32 %v147, 7
    %v149 = vsub.s32 0, %v148
    %v150 = vrot.slane %v123, %v149
    %v152 = vadd.f32 %v145, %v150
    %vm153 = vcmp.eq.s32.totalorder %v120, 0
    %v154 = vld [vmem:[%s1] sm:$0x1]
    %v155 = vrot.slane %v152, 7
    %v157 = vlaneseq
    %v158 = vshrl.u32 %v157, 7
    %v159 = vsub.s32 0, %v158
    %v160 = vrot.slane %v154, %v159
    %v162 = vsel %vm153, %v160, %v155
    %v163 = vsub.f32 %v162, %v152
    %v164 = vld [vmem:[%s6] sm:$0x1]
    %v166 = vlaneseq
    %v167 = vshrl.u32 %v166, 7
    %v168 = vsub.s32 0, %v167
    %v169 = vrot.slane %v164, %v168
    %v171 = vmul.f32 %v169, %v163
    %v172 = vadd.f32 %v152, %v171
    %v173 = vld [vmem:[#allocation2] sm:$0xff]
    %v174 = vld [vmem:[#allocation2 + $0x8] sm:$0xff]
    %v175 = vld [vmem:[#allocation2 + $0x10] sm:$0xff]
    %v176 = vld [vmem:[#allocation2 + $0x18] sm:$0xff]
    %v177 = vld [vmem:[#allocation2 + $0x20] sm:$0xff]
    %v178 = vld [vmem:[#allocation2 + $0x28] sm:$0xff]
    %v179 = vld [vmem:[#allocation2 + $0x30] sm:$0xff]
    %v180 = vld [vmem:[#allocation2 + $0x38] sm:$0xff]
    %v181 = vunpack.c.l.bf16 %v173
    %v182 = vunpack.c.h.bf16 %v173
    %v183 = vunpack.c.l.bf16 %v174
    %v184 = vunpack.c.h.bf16 %v174
    %v185 = vunpack.c.l.bf16 %v175
    %v186 = vunpack.c.h.bf16 %v175
    %v187 = vunpack.c.l.bf16 %v176
    %v188 = vunpack.c.h.bf16 %v176
    %v189 = vunpack.c.l.bf16 %v177
    %v190 = vunpack.c.h.bf16 %v177
    %v191 = vunpack.c.l.bf16 %v178
    %v192 = vunpack.c.h.bf16 %v178
    %v193 = vunpack.c.l.bf16 %v179
    %v194 = vunpack.c.h.bf16 %v179
    %v195 = vunpack.c.l.bf16 %v180
    %v196 = vunpack.c.h.bf16 %v180
    %v198 = vsel %vm124, %v172, 0
    %200 = vmatprep.subr.mxu0 %v182
    %201 = vmatpush1.msra.mxu0 %v181
    %202 = vmatprep.subr.mxu0 %v184
    %203 = vmatpush1.msra.mxu0 %v183
    %204 = vmatprep.subr.mxu0 %v186
    %205 = vmatpush1.msra.mxu0 %v185
    %206 = vmatprep.subr.mxu0 %v188
    %207 = vmatpush1.msra.mxu0 %v187
    %208 = vmatprep.subr.mxu0 %v190
    %209 = vmatpush1.msra.mxu0 %v189
    %210 = vmatprep.subr.mxu0 %v192
    %211 = vmatpush1.msra.mxu0 %v191
    %212 = vmatprep.subr.mxu0 %v194
    %213 = vmatpush1.msra.mxu0 %v193
    %214 = vmatprep.subr.mxu0 %v196
    %215 = vmatpush1.msra.mxu0 %v195
    %216 = vmatprep.subr.mxu0 0.0
    %217 = vmatpush1.msra.mxu0 0.0
    %218 = vmatprep.subr.mxu0 0.0
    %219 = vmatpush1.msra.mxu0 0.0
    %220 = vmatprep.subr.mxu0 0.0
    %221 = vmatpush1.msra.mxu0 0.0
    %222 = vmatprep.subr.mxu0 0.0
    %223 = vmatpush1.msra.mxu0 0.0
    %224 = vmatprep.subr.mxu0 0.0
    %225 = vmatpush1.msra.mxu0 0.0
    %226 = vmatprep.subr.mxu0 0.0
    %227 = vmatpush1.msra.mxu0 0.0
    %228 = vmatprep.subr.mxu0 0.0
    %229 = vmatpush1.msra.mxu0 0.0
    %230 = vmatprep.subr.mxu0 0.0
    %231 = vmatpush1.msra.mxu0 0.0
    %232 = vmatprep.subr.mxu0 0.0
    %233 = vmatpush1.msra.mxu0 0.0
    %234 = vmatprep.subr.mxu0 0.0
    %235 = vmatpush1.msra.mxu0 0.0
    %236 = vmatprep.subr.mxu0 0.0
    %237 = vmatpush1.msra.mxu0 0.0
    %238 = vmatprep.subr.mxu0 0.0
    %239 = vmatpush1.msra.mxu0 0.0
    %240 = vmatprep.subr.mxu0 0.0
    %241 = vmatpush1.msra.mxu0 0.0
    %242 = vmatprep.subr.mxu0 0.0
    %243 = vmatpush1.msra.mxu0 0.0
    %244 = vmatprep.subr.mxu0 0.0
    %245 = vmatpush1.msra.mxu0 0.0
    %246 = vmatprep.subr.mxu0 0.0
    %247 = vmatpush1.msra.mxu0 0.0
    %248 = vmatprep.subr.mxu0 0.0
    %249 = vmatpush1.msra.mxu0 0.0
    %250 = vmatprep.subr.mxu0 0.0
    %251 = vmatpush1.msra.mxu0 0.0
    %252 = vmatprep.subr.mxu0 0.0
    %253 = vmatpush1.msra.mxu0 0.0
    %254 = vmatprep.subr.mxu0 0.0
    %255 = vmatpush1.msra.mxu0 0.0
    %256 = vmatprep.subr.mxu0 0.0
    %257 = vmatpush1.msra.mxu0 0.0
    %258 = vmatprep.subr.mxu0 0.0
    %259 = vmatpush1.msra.mxu0 0.0
    %260 = vmatprep.subr.mxu0 0.0
    %261 = vmatpush1.msra.mxu0 0.0
    %262 = vmatprep.subr.mxu0 0.0
    %263 = vmatpush1.msra.mxu0 0.0
    %264 = vmatprep.mubr.f32.mxu0 0.0
    %265 = vmatmul.mubr.f32.gmra.mrb[0].mxu0 %v198
    %v266 = vpop.f32.mrb[0].mxu0
    %v267 = vadd.f32 0.0, %v266
    %v268 = vpop.f32.mrb[0].mxu0
    %v269 = vadd.f32 0.0, %v268
    %270 = vdwg.mxu0
    %v271 = vtanh.pop %v267
    %v272 = vtanh.pop %v269
    %v273 = vld [vmem:[%s9] sm:$0x7]
    %v274 = vld [vmem:[#allocation5] sm:$0xff]
    %v275 = vld [vmem:[#allocation5 + $0x8] sm:$0xf]
    %v276 = vld [vmem:[#allocation5 + $0xc] sm:$0xff]
    %v277 = vld [vmem:[#allocation5 + $0x14] sm:$0xf]
    %v278 = vld [vmem:[#allocation5 + $0x18] sm:$0xff]
    %v279 = vld [vmem:[#allocation5 + $0x20] sm:$0xf]
    %v280 = vld [vmem:[#allocation5 + $0x24] sm:$0xff]
    %v281 = vld [vmem:[#allocation5 + $0x2c] sm:$0xf]
    %v282 = vld [vmem:[#allocation5 + $0x30] sm:$0xff]
    %v283 = vld [vmem:[#allocation5 + $0x38] sm:$0xf]
    %v284 = vld [vmem:[#allocation5 + $0x3c] sm:$0xff]
    %v285 = vld [vmem:[#allocation5 + $0x44] sm:$0xf]
    %v286 = vld [vmem:[#allocation5 + $0x48] sm:$0xff]
    %v287 = vld [vmem:[#allocation5 + $0x50] sm:$0xf]
    %v288 = vld [vmem:[#allocation5 + $0x54] sm:$0xff]
    %v289 = vld [vmem:[#allocation5 + $0x5c] sm:$0xf]
    %v290 = vld [vmem:[#allocation5 + $0x60] sm:$0xff]
    %v291 = vld [vmem:[#allocation5 + $0x68] sm:$0xf]
    %v292 = vld [vmem:[#allocation5 + $0x6c] sm:$0xff]
    %v293 = vld [vmem:[#allocation5 + $0x74] sm:$0xf]
    %v294 = vld [vmem:[#allocation5 + $0x78] sm:$0xff]
    %v295 = vld [vmem:[#allocation5 + $0x80] sm:$0xf]
    %v296 = vld [vmem:[#allocation5 + $0x84] sm:$0xff]
    %v297 = vld [vmem:[#allocation5 + $0x8c] sm:$0xf]
    %v298 = vld [vmem:[#allocation5 + $0x90] sm:$0xff]
    %v299 = vld [vmem:[#allocation5 + $0x98] sm:$0xf]
    %v300 = vld [vmem:[#allocation5 + $0x9c] sm:$0xff]
    %v301 = vld [vmem:[#allocation5 + $0xa4] sm:$0xf]
    %v302 = vld [vmem:[#allocation5 + $0xa8] sm:$0xff]
    %v303 = vld [vmem:[#allocation5 + $0xb0] sm:$0xf]
    %v304 = vld [vmem:[#allocation5 + $0xb4] sm:$0xff]
    %v305 = vld [vmem:[#allocation5 + $0xbc] sm:$0xf]
    %v306 = vld [vmem:[#allocation5 + $0xc0] sm:$0xff]
    %v307 = vld [vmem:[#allocation5 + $0xc8] sm:$0xf]
    %v308 = vld [vmem:[#allocation5 + $0xcc] sm:$0xff]
    %v309 = vld [vmem:[#allocation5 + $0xd4] sm:$0xf]
    %v310 = vld [vmem:[#allocation5 + $0xd8] sm:$0xff]
    %v311 = vld [vmem:[#allocation5 + $0xe0] sm:$0xf]
    %v312 = vld [vmem:[#allocation5 + $0xe4] sm:$0xff]
    %v313 = vld [vmem:[#allocation5 + $0xec] sm:$0xf]
    %v314 = vunpack.c.l.bf16 %v274
    %v315 = vunpack.c.h.bf16 %v274
    %v316 = vunpack.c.l.bf16 %v275
    %v317 = vunpack.c.l.bf16 %v276
    %v318 = vunpack.c.h.bf16 %v276
    %v319 = vunpack.c.l.bf16 %v277
    %v320 = vunpack.c.l.bf16 %v278
    %v321 = vunpack.c.h.bf16 %v278
    %v322 = vunpack.c.l.bf16 %v279
    %v323 = vunpack.c.l.bf16 %v280
    %v324 = vunpack.c.h.bf16 %v280
    %v325 = vunpack.c.l.bf16 %v281
    %v326 = vunpack.c.l.bf16 %v282
    %v327 = vunpack.c.h.bf16 %v282
    %v328 = vunpack.c.l.bf16 %v283
    %v329 = vunpack.c.l.bf16 %v284
    %v330 = vunpack.c.h.bf16 %v284
    %v331 = vunpack.c.l.bf16 %v285
    %v332 = vunpack.c.l.bf16 %v286
    %v333 = vunpack.c.h.bf16 %v286
    %v334 = vunpack.c.l.bf16 %v287
    %v335 = vunpack.c.l.bf16 %v288
    %v336 = vunpack.c.h.bf16 %v288
    %v337 = vunpack.c.l.bf16 %v289
    %v338 = vunpack.c.l.bf16 %v290
    %v339 = vunpack.c.h.bf16 %v290
    %v340 = vunpack.c.l.bf16 %v291
    %v341 = vunpack.c.l.bf16 %v292
    %v342 = vunpack.c.h.bf16 %v292
    %v343 = vunpack.c.l.bf16 %v293
    %v344 = vunpack.c.l.bf16 %v294
    %v345 = vunpack.c.h.bf16 %v294
    %v346 = vunpack.c.l.bf16 %v295
    %v347 = vunpack.c.l.bf16 %v296
    %v348 = vunpack.c.h.bf16 %v296
    %v349 = vunpack.c.l.bf16 %v297
    %v350 = vunpack.c.l.bf16 %v298
    %v351 = vunpack.c.h.bf16 %v298
    %v352 = vunpack.c.l.bf16 %v299
    %v353 = vunpack.c.l.bf16 %v300
    %v354 = vunpack.c.h.bf16 %v300
    %v355 = vunpack.c.l.bf16 %v301
    %v356 = vunpack.c.l.bf16 %v302
    %v357 = vunpack.c.h.bf16 %v302
    %v358 = vunpack.c.l.bf16 %v303
    %v359 = vunpack.c.l.bf16 %v304
    %v360 = vunpack.c.h.bf16 %v304
    %v361 = vunpack.c.l.bf16 %v305
    %v362 = vunpack.c.l.bf16 %v306
    %v363 = vunpack.c.h.bf16 %v306
    %v364 = vunpack.c.l.bf16 %v307
    %v365 = vunpack.c.l.bf16 %v308
    %v366 = vunpack.c.h.bf16 %v308
    %v367 = vunpack.c.l.bf16 %v309
    %v368 = vunpack.c.l.bf16 %v310
    %v369 = vunpack.c.h.bf16 %v310
    %v370 = vunpack.c.l.bf16 %v311
    %v371 = vunpack.c.l.bf16 %v312
    %v372 = vunpack.c.h.bf16 %v312
    %v373 = vunpack.c.l.bf16 %v313
    %vm374 = vcmask 261120
    %v376 = vsel %vm374, %v272, 0
    %378 = vmatprep.subr.mxu0 %v315
    %379 = vmatpush1.msra.mxu0 %v314
    %380 = vmatprep.subr.mxu0 %v318
    %381 = vmatpush1.msra.mxu0 %v317
    %382 = vmatprep.subr.mxu0 %v321
    %383 = vmatpush1.msra.mxu0 %v320
    %384 = vmatprep.subr.mxu0 %v324
    %385 = vmatpush1.msra.mxu0 %v323
    %386 = vmatprep.subr.mxu0 %v327
    %387 = vmatpush1.msra.mxu0 %v326
    %388 = vmatprep.subr.mxu0 %v330
    %389 = vmatpush1.msra.mxu0 %v329
    %390 = vmatprep.subr.mxu0 %v333
    %391 = vmatpush1.msra.mxu0 %v332
    %392 = vmatprep.subr.mxu0 %v336
    %393 = vmatpush1.msra.mxu0 %v335
    %394 = vmatprep.subr.mxu0 %v339
    %395 = vmatpush1.msra.mxu0 %v338
    %396 = vmatprep.subr.mxu0 %v342
    %397 = vmatpush1.msra.mxu0 %v341
    %398 = vmatprep.subr.mxu0 %v345
    %399 = vmatpush1.msra.mxu0 %v344
    %400 = vmatprep.subr.mxu0 %v348
    %401 = vmatpush1.msra.mxu0 %v347
    %402 = vmatprep.subr.mxu0 %v351
    %403 = vmatpush1.msra.mxu0 %v350
    %404 = vmatprep.subr.mxu0 %v354
    %405 = vmatpush1.msra.mxu0 %v353
    %406 = vmatprep.subr.mxu0 %v357
    %407 = vmatpush1.msra.mxu0 %v356
    %408 = vmatprep.subr.mxu0 %v360
    %409 = vmatpush1.msra.mxu0 %v359
    %410 = vmatprep.subr.mxu0 %v363
    %411 = vmatpush1.msra.mxu0 %v362
    %412 = vmatprep.subr.mxu0 %v366
    %413 = vmatpush1.msra.mxu0 %v365
    %414 = vmatprep.subr.mxu0 %v369
    %415 = vmatpush1.msra.mxu0 %v368
    %416 = vmatprep.subr.mxu0 %v372
    %417 = vmatpush1.msra.mxu0 %v371
    %418 = vmatprep.subr.mxu0 0.0
    %419 = vmatpush1.msra.mxu0 0.0
    %420 = vmatprep.subr.mxu0 0.0
    %421 = vmatpush1.msra.mxu0 0.0
    %422 = vmatprep.subr.mxu0 0.0
    %423 = vmatpush1.msra.mxu0 0.0
    %424 = vmatprep.subr.mxu0 0.0
    %425 = vmatpush1.msra.mxu0 0.0
    %426 = vmatprep.subr.mxu0 0.0
    %427 = vmatpush1.msra.mxu0 0.0
    %428 = vmatprep.subr.mxu0 0.0
    %429 = vmatpush1.msra.mxu0 0.0
    %430 = vmatprep.subr.mxu0 0.0
    %431 = vmatpush1.msra.mxu0 0.0
    %432 = vmatprep.subr.mxu0 0.0
    %433 = vmatpush1.msra.mxu0 0.0
    %434 = vmatprep.subr.mxu0 0.0
    %435 = vmatpush1.msra.mxu0 0.0
    %436 = vmatprep.subr.mxu0 0.0
    %437 = vmatpush1.msra.mxu0 0.0
    %438 = vmatprep.subr.mxu0 0.0
    %439 = vmatpush1.msra.mxu0 0.0
    %440 = vmatprep.subr.mxu0 0.0
    %441 = vmatpush1.msra.mxu0 0.0
    %442 = vmatprep.mubr.f32.mxu0 %v376
    %443 = vmatmul.mubr.f32.gmra.mrb[0].mxu0 %v271
    %v444 = vpop.f32.mrb[0].mxu0
    %v445 = vadd.f32 0.0, %v444
    %v446 = vpop.f32.mrb[0].mxu0
    %v447 = vadd.f32 0.0, %v446
    %448 = vdwg.mxu0
    %449 = vmatprep.subr.mxu0 0.0
    %450 = vmatpush1.msra.mxu0 %v316
    %451 = vmatprep.subr.mxu0 0.0
    %452 = vmatpush1.msra.mxu0 %v319
    %453 = vmatprep.subr.mxu0 0.0
    %454 = vmatpush1.msra.mxu0 %v322
    %455 = vmatprep.subr.mxu0 0.0
    %456 = vmatpush1.msra.mxu0 %v325
    %457 = vmatprep.subr.mxu0 0.0
    %458 = vmatpush1.msra.mxu0 %v328
    %459 = vmatprep.subr.mxu0 0.0
    %460 = vmatpush1.msra.mxu0 %v331
    %461 = vmatprep.subr.mxu0 0.0
    %462 = vmatpush1.msra.mxu0 %v334
    %463 = vmatprep.subr.mxu0 0.0
    %464 = vmatpush1.msra.mxu0 %v337
    %465 = vmatprep.subr.mxu0 0.0
    %466 = vmatpush1.msra.mxu0 %v340
    %467 = vmatprep.subr.mxu0 0.0
    %468 = vmatpush1.msra.mxu0 %v343
    %469 = vmatprep.subr.mxu0 0.0
    %470 = vmatpush1.msra.mxu0 %v346
    %471 = vmatprep.subr.mxu0 0.0
    %472 = vmatpush1.msra.mxu0 %v349
    %473 = vmatprep.subr.mxu0 0.0
    %474 = vmatpush1.msra.mxu0 %v352
    %475 = vmatprep.subr.mxu0 0.0
    %476 = vmatpush1.msra.mxu0 %v355
    %477 = vmatprep.subr.mxu0 0.0
    %478 = vmatpush1.msra.mxu0 %v358
    %479 = vmatprep.subr.mxu0 0.0
    %480 = vmatpush1.msra.mxu0 %v361
    %481 = vmatprep.subr.mxu0 0.0
    %482 = vmatpush1.msra.mxu0 %v364
    %483 = vmatprep.subr.mxu0 0.0
    %484 = vmatpush1.msra.mxu0 %v367
    %485 = vmatprep.subr.mxu0 0.0
    %486 = vmatpush1.msra.mxu0 %v370
    %487 = vmatprep.subr.mxu0 0.0
    %488 = vmatpush1.msra.mxu0 %v373
    %489 = vmatprep.subr.mxu0 0.0
    %490 = vmatpush1.msra.mxu0 0.0
    %491 = vmatprep.subr.mxu0 0.0
    %492 = vmatpush1.msra.mxu0 0.0
    %493 = vmatprep.subr.mxu0 0.0
    %494 = vmatpush1.msra.mxu0 0.0
    %495 = vmatprep.subr.mxu0 0.0
    %496 = vmatpush1.msra.mxu0 0.0
    %497 = vmatprep.subr.mxu0 0.0
    %498 = vmatpush1.msra.mxu0 0.0
    %499 = vmatprep.subr.mxu0 0.0
    %500 = vmatpush1.msra.mxu0 0.0
    %501 = vmatprep.subr.mxu0 0.0
    %502 = vmatpush1.msra.mxu0 0.0
    %503 = vmatprep.subr.mxu0 0.0
    %504 = vmatpush1.msra.mxu0 0.0
    %505 = vmatprep.subr.mxu0 0.0
    %506 = vmatpush1.msra.mxu0 0.0
    %507 = vmatprep.subr.mxu0 0.0
    %508 = vmatpush1.msra.mxu0 0.0
    %509 = vmatprep.subr.mxu0 0.0
    %510 = vmatpush1.msra.mxu0 0.0
    %511 = vmatprep.subr.mxu0 0.0
    %512 = vmatpush1.msra.mxu0 0.0
    %513 = vmatprep.mubr.f32.mxu0 %v376
    %514 = vmatmul.mubr.f32.gmra.mrb[0].mxu0 %v271
    %v515 = vpop.f32.mrb[0].mxu0
    %v516 = vadd.f32 0.0, %v515
    %v517 = vpop.f32.mrb[0].mxu0
    %518 = vdwg.mxu0
    %v520 = vlaneseq
    %v521 = vshrl.u32 %v520, 7
    %v522 = vsub.s32 0, %v521
    %v523 = vrot.slane %v273, %v522
    %v524 = vlaneseq
    %v525 = vshrl.u32 %v524, 7
    %v526 = vsub.s32 1, %v525
    %v527 = vrot.slane %v273, %v526
    %v528 = vlaneseq
    %v529 = vshrl.u32 %v528, 7
    %v530 = vsub.s32 2, %v529
    %v531 = vrot.slane %v273, %v530
    %v535 = vadd.f32 %v523, %v445
    %v536 = vadd.f32 %v527, %v447
    %v537 = vadd.f32 %v531, %v516
    %539 = vrot.lane.b32.xlu0 %v152, 64
    %v540 = vpop.permute.xlu0 %539
    %v542 = vsel %vm124, %v152, %v540
    %544 = vrot.lane.b32.xlu0 %v163, 64
    %v545 = vpop.permute.xlu0 %544
    %v547 = vsel %vm124, %v163, %v545
    %v548 = vmul.f32 %v535, %v547
    %v549 = vmul.f32 %v536, %v547
    %v550 = vmul.f32 %v537, %v163
    %v551 = vadd.f32 %v542, %v548
    %v552 = vadd.f32 %v542, %v549
    %v553 = vadd.f32 %v152, %v550
    %v554 = vld [vmem:[%s10] sm:$0xff]
    %v555 = vld [vmem:[%s10 + $0x8] sm:$0xf]
    %v556 = vld [vmem:[%s10 + $0xc] sm:$0xff]
    %v557 = vld [vmem:[%s10 + $0x14] sm:$0xf]
    %v558 = vld [vmem:[%s10 + $0x18] sm:$0xff]
    %v559 = vld [vmem:[%s10 + $0x20] sm:$0xf]
    %v560 = vld [vmem:[%s10 + $0x24] sm:$0xff]
    %v561 = vld [vmem:[%s10 + $0x2c] sm:$0xf]
    %v562 = vld [vmem:[%s10 + $0x30] sm:$0xff]
    %v563 = vld [vmem:[%s10 + $0x38] sm:$0xf]
    %v564 = vld [vmem:[%s10 + $0x3c] sm:$0xff]
    %v565 = vld [vmem:[%s10 + $0x44] sm:$0xf]
    %v566 = vld [vmem:[%s10 + $0x48] sm:$0xff]
    %v567 = vld [vmem:[%s10 + $0x50] sm:$0xf]
    %v568 = vld [vmem:[%s10 + $0x54] sm:$0xff]
    %v569 = vld [vmem:[%s10 + $0x5c] sm:$0xf]
    %v570 = vld [vmem:[%s10 + $0x60] sm:$0xff]
    %v571 = vld [vmem:[%s10 + $0x68] sm:$0xf]
    %v572 = vld [vmem:[%s10 + $0x6c] sm:$0xff]
    %v573 = vld [vmem:[%s10 + $0x74] sm:$0xf]
    %v574 = vld [vmem:[%s10 + $0x78] sm:$0xff]
    %v575 = vld [vmem:[%s10 + $0x80] sm:$0xf]
    %v576 = vld [vmem:[%s10 + $0x84] sm:$0xff]
    %v577 = vld [vmem:[%s10 + $0x8c] sm:$0xf]
    %v578 = vld [vmem:[%s10 + $0x90] sm:$0xff]
    %v579 = vld [vmem:[%s10 + $0x98] sm:$0xf]
    %v580 = vld [vmem:[%s10 + $0x9c] sm:$0xff]
    %v581 = vld [vmem:[%s10 + $0xa4] sm:$0xf]
    %v582 = vld [vmem:[%s10 + $0xa8] sm:$0xff]
    %v583 = vld [vmem:[%s10 + $0xb0] sm:$0xf]
    %v584 = vld [vmem:[%s10 + $0xb4] sm:$0xff]
    %v585 = vld [vmem:[%s10 + $0xbc] sm:$0xf]
    %v586 = vld [vmem:[%s10 + $0xc0] sm:$0xff]
    %v587 = vld [vmem:[%s10 + $0xc8] sm:$0xf]
    %v588 = vld [vmem:[%s10 + $0xcc] sm:$0xff]
    %v589 = vld [vmem:[%s10 + $0xd4] sm:$0xf]
    %v590 = vld [vmem:[%s10 + $0xd8] sm:$0xff]
    %v591 = vld [vmem:[%s10 + $0xe0] sm:$0xf]
    %v592 = vld [vmem:[%s10 + $0xe4] sm:$0xff]
    %v593 = vld [vmem:[%s10 + $0xec] sm:$0xf]
    %v594 = vld [vmem:[%s10 + $0xf0] sm:$0xff]
    %v595 = vld [vmem:[%s10 + $0xf8] sm:$0xf]
    %v596 = vld [vmem:[%s10 + $0xfc] sm:$0xff]
    %v597 = vld [vmem:[%s10 + $0x104] sm:$0xf]
    %v598 = vld [vmem:[%s10 + $0x108] sm:$0xff]
    %v599 = vld [vmem:[%s10 + $0x110] sm:$0xf]
    %v600 = vld [vmem:[%s10 + $0x114] sm:$0xff]
    %v601 = vld [vmem:[%s10 + $0x11c] sm:$0xf]
    %v602 = vld [vmem:[%s10 + $0x120] sm:$0xff]
    %v603 = vld [vmem:[%s10 + $0x128] sm:$0xf]
    %v604 = vld [vmem:[%s10 + $0x12c] sm:$0xff]
    %v605 = vld [vmem:[%s10 + $0x134] sm:$0xf]
    %v606 = vld [vmem:[%s10 + $0x138] sm:$0xff]
    %v607 = vld [vmem:[%s10 + $0x140] sm:$0xf]
    %v608 = vld [vmem:[%s10 + $0x144] sm:$0xff]
    %v609 = vld [vmem:[%s10 + $0x14c] sm:$0xf]
    %v610 = vld [vmem:[%s10 + $0x150] sm:$0xff]
    %v611 = vld [vmem:[%s10 + $0x158] sm:$0xf]
    %v612 = vld [vmem:[%s10 + $0x15c] sm:$0xff]
    %v613 = vld [vmem:[%s10 + $0x164] sm:$0xf]
    %v614 = vld [vmem:[%s10 + $0x168] sm:$0xff]
    %v615 = vld [vmem:[%s10 + $0x170] sm:$0xf]
    %v616 = vld [vmem:[%s10 + $0x174] sm:$0xff]
    %v617 = vld [vmem:[%s10 + $0x17c] sm:$0xf]
    %v618 = vld [vmem:[%s10 + $0x180] sm:$0xff]
    %v619 = vld [vmem:[%s10 + $0x188] sm:$0xf]
    %v620 = vld [vmem:[%s10 + $0x18c] sm:$0xff]
    %v621 = vld [vmem:[%s10 + $0x194] sm:$0xf]
    %v622 = vld [vmem:[%s10 + $0x198] sm:$0xff]
    %v623 = vld [vmem:[%s10 + $0x1a0] sm:$0xf]
    %v624 = vld [vmem:[%s10 + $0x1a4] sm:$0xff]
    %v625 = vld [vmem:[%s10 + $0x1ac] sm:$0xf]
    %v626 = vld [vmem:[%s10 + $0x1b0] sm:$0xff]
    %v627 = vld [vmem:[%s10 + $0x1b8] sm:$0xf]
    %v628 = vld [vmem:[%s10 + $0x1bc] sm:$0xff]
    %v629 = vld [vmem:[%s10 + $0x1c4] sm:$0xf]
    %v630 = vld [vmem:[%s10 + $0x1c8] sm:$0xff]
    %v631 = vld [vmem:[%s10 + $0x1d0] sm:$0xf]
    %v632 = vld [vmem:[%s10 + $0x1d4] sm:$0xff]
    %v633 = vld [vmem:[%s10 + $0x1dc] sm:$0xf]
    %v634 = vunpack.c.l.bf16 %v554
    %v635 = vunpack.c.h.bf16 %v554
    %v636 = vunpack.c.l.bf16 %v555
    %v637 = vunpack.c.l.bf16 %v556
    %v638 = vunpack.c.h.bf16 %v556
    %v639 = vunpack.c.l.bf16 %v557
    %v640 = vunpack.c.l.bf16 %v558
    %v641 = vunpack.c.h.bf16 %v558
    %v642 = vunpack.c.l.bf16 %v559
    %v643 = vunpack.c.l.bf16 %v560
    %v644 = vunpack.c.h.bf16 %v560
    %v645 = vunpack.c.l.bf16 %v561
    %v646 = vunpack.c.l.bf16 %v562
    %v647 = vunpack.c.h.bf16 %v562
    %v648 = vunpack.c.l.bf16 %v563
    %v649 = vunpack.c.l.bf16 %v564
    %v650 = vunpack.c.h.bf16 %v564
    %v651 = vunpack.c.l.bf16 %v565
    %v652 = vunpack.c.l.bf16 %v566
    %v653 = vunpack.c.h.bf16 %v566
    %v654 = vunpack.c.l.bf16 %v567
    %v655 = vunpack.c.l.bf16 %v568
    %v656 = vunpack.c.h.bf16 %v568
    %v657 = vunpack.c.l.bf16 %v569
    %v658 = vunpack.c.l.bf16 %v570
    %v659 = vunpack.c.h.bf16 %v570
    %v660 = vunpack.c.l.bf16 %v571
    %v661 = vunpack.c.l.bf16 %v572
    %v662 = vunpack.c.h.bf16 %v572
    %v663 = vunpack.c.l.bf16 %v573
    %v664 = vunpack.c.l.bf16 %v574
    %v665 = vunpack.c.h.bf16 %v574
    %v666 = vunpack.c.l.bf16 %v575
    %v667 = vunpack.c.l.bf16 %v576
    %v668 = vunpack.c.h.bf16 %v576
    %v669 = vunpack.c.l.bf16 %v577
    %v670 = vunpack.c.l.bf16 %v578
    %v671 = vunpack.c.h.bf16 %v578
    %v672 = vunpack.c.l.bf16 %v579
    %v673 = vunpack.c.l.bf16 %v580
    %v674 = vunpack.c.h.bf16 %v580
    %v675 = vunpack.c.l.bf16 %v581
    %v676 = vunpack.c.l.bf16 %v582
    %v677 = vunpack.c.h.bf16 %v582
    %v678 = vunpack.c.l.bf16 %v583
    %v679 = vunpack.c.l.bf16 %v584
    %v680 = vunpack.c.h.bf16 %v584
    %v681 = vunpack.c.l.bf16 %v585
    %v682 = vunpack.c.l.bf16 %v586
    %v683 = vunpack.c.h.bf16 %v586
    %v684 = vunpack.c.l.bf16 %v587
    %v685 = vunpack.c.l.bf16 %v588
    %v686 = vunpack.c.h.bf16 %v588
    %v687 = vunpack.c.l.bf16 %v589
    %v688 = vunpack.c.l.bf16 %v590
    %v689 = vunpack.c.h.bf16 %v590
    %v690 = vunpack.c.l.bf16 %v591
    %v691 = vunpack.c.l.bf16 %v592
    %v692 = vunpack.c.h.bf16 %v592
    %v693 = vunpack.c.l.bf16 %v593
    %v694 = vunpack.c.l.bf16 %v594
    %v695 = vunpack.c.h.bf16 %v594
    %v696 = vunpack.c.l.bf16 %v595
    %v697 = vunpack.c.l.bf16 %v596
    %v698 = vunpack.c.h.bf16 %v596
    %v699 = vunpack.c.l.bf16 %v597
    %v700 = vunpack.c.l.bf16 %v598
    %v701 = vunpack.c.h.bf16 %v598
    %v702 = vunpack.c.l.bf16 %v599
    %v703 = vunpack.c.l.bf16 %v600
    %v704 = vunpack.c.h.bf16 %v600
    %v705 = vunpack.c.l.bf16 %v601
    %v706 = vunpack.c.l.bf16 %v602
    %v707 = vunpack.c.h.bf16 %v602
    %v708 = vunpack.c.l.bf16 %v603
    %v709 = vunpack.c.l.bf16 %v604
    %v710 = vunpack.c.h.bf16 %v604
    %v711 = vunpack.c.l.bf16 %v605
    %v712 = vunpack.c.l.bf16 %v606
    %v713 = vunpack.c.h.bf16 %v606
    %v714 = vunpack.c.l.bf16 %v607
    %v715 = vunpack.c.l.bf16 %v608
    %v716 = vunpack.c.h.bf16 %v608
    %v717 = vunpack.c.l.bf16 %v609
    %v718 = vunpack.c.l.bf16 %v610
    %v719 = vunpack.c.h.bf16 %v610
    %v720 = vunpack.c.l.bf16 %v611
    %v721 = vunpack.c.l.bf16 %v612
    %v722 = vunpack.c.h.bf16 %v612
    %v723 = vunpack.c.l.bf16 %v613
    %v724 = vunpack.c.l.bf16 %v614
    %v725 = vunpack.c.h.bf16 %v614
    %v726 = vunpack.c.l.bf16 %v615
    %v727 = vunpack.c.l.bf16 %v616
    %v728 = vunpack.c.h.bf16 %v616
    %v729 = vunpack.c.l.bf16 %v617
    %v730 = vunpack.c.l.bf16 %v618
    %v731 = vunpack.c.h.bf16 %v618
    %v732 = vunpack.c.l.bf16 %v619
    %v733 = vunpack.c.l.bf16 %v620
    %v734 = vunpack.c.h.bf16 %v620
    %v735 = vunpack.c.l.bf16 %v621
    %v736 = vunpack.c.l.bf16 %v622
    %v737 = vunpack.c.h.bf16 %v622
    %v738 = vunpack.c.l.bf16 %v623
    %v739 = vunpack.c.l.bf16 %v624
    %v740 = vunpack.c.h.bf16 %v624
    %v741 = vunpack.c.l.bf16 %v625
    %v742 = vunpack.c.l.bf16 %v626
    %v743 = vunpack.c.h.bf16 %v626
    %v744 = vunpack.c.l.bf16 %v627
    %v745 = vunpack.c.l.bf16 %v628
    %v746 = vunpack.c.h.bf16 %v628
    %v747 = vunpack.c.l.bf16 %v629
    %v748 = vunpack.c.l.bf16 %v630
    %v749 = vunpack.c.h.bf16 %v630
    %v750 = vunpack.c.l.bf16 %v631
    %v751 = vunpack.c.l.bf16 %v632
    %v752 = vunpack.c.h.bf16 %v632
    %v753 = vunpack.c.l.bf16 %v633
    %v755 = vsel %vm124, %v553, 0
    %757 = vmatprep.subr.mxu0 %v635
    %758 = vmatpush1.msra.mxu0 %v634
    %759 = vmatprep.subr.mxu0 %v638
    %760 = vmatpush1.msra.mxu0 %v637
    %761 = vmatprep.subr.mxu0 %v641
    %762 = vmatpush1.msra.mxu0 %v640
    %763 = vmatprep.subr.mxu0 %v644
    %764 = vmatpush1.msra.mxu0 %v643
    %765 = vmatprep.subr.mxu0 %v647
    %766 = vmatpush1.msra.mxu0 %v646
    %767 = vmatprep.subr.mxu0 %v650
    %768 = vmatpush1.msra.mxu0 %v649
    %769 = vmatprep.subr.mxu0 %v653
    %770 = vmatpush1.msra.mxu0 %v652
    %771 = vmatprep.subr.mxu0 %v656
    %772 = vmatpush1.msra.mxu0 %v655
    %773 = vmatprep.subr.mxu0 %v659
    %774 = vmatpush1.msra.mxu0 %v658
    %775 = vmatprep.subr.mxu0 %v662
    %776 = vmatpush1.msra.mxu0 %v661
    %777 = vmatprep.subr.mxu0 %v665
    %778 = vmatpush1.msra.mxu0 %v664
    %779 = vmatprep.subr.mxu0 %v668
    %780 = vmatpush1.msra.mxu0 %v667
    %781 = vmatprep.subr.mxu0 %v671
    %782 = vmatpush1.msra.mxu0 %v670
    %783 = vmatprep.subr.mxu0 %v674
    %784 = vmatpush1.msra.mxu0 %v673
    %785 = vmatprep.subr.mxu0 %v677
    %786 = vmatpush1.msra.mxu0 %v676
    %787 = vmatprep.subr.mxu0 %v680
    %788 = vmatpush1.msra.mxu0 %v679
    %789 = vmatprep.subr.mxu0 %v683
    %790 = vmatpush1.msra.mxu0 %v682
    %791 = vmatprep.subr.mxu0 %v686
    %792 = vmatpush1.msra.mxu0 %v685
    %793 = vmatprep.subr.mxu0 %v689
    %794 = vmatpush1.msra.mxu0 %v688
    %795 = vmatprep.subr.mxu0 %v692
    %796 = vmatpush1.msra.mxu0 %v691
    %797 = vmatprep.subr.mxu0 %v695
    %798 = vmatpush1.msra.mxu0 %v694
    %799 = vmatprep.subr.mxu0 %v698
    %800 = vmatpush1.msra.mxu0 %v697
    %801 = vmatprep.subr.mxu0 %v701
    %802 = vmatpush1.msra.mxu0 %v700
    %803 = vmatprep.subr.mxu0 %v704
    %804 = vmatpush1.msra.mxu0 %v703
    %805 = vmatprep.subr.mxu0 %v707
    %806 = vmatpush1.msra.mxu0 %v706
    %807 = vmatprep.subr.mxu0 %v710
    %808 = vmatpush1.msra.mxu0 %v709
    %809 = vmatprep.subr.mxu0 %v713
    %810 = vmatpush1.msra.mxu0 %v712
    %811 = vmatprep.subr.mxu0 %v716
    %812 = vmatpush1.msra.mxu0 %v715
    %813 = vmatprep.subr.mxu0 %v719
    %814 = vmatpush1.msra.mxu0 %v718
    %815 = vmatprep.subr.mxu0 %v722
    %816 = vmatpush1.msra.mxu0 %v721
    %817 = vmatprep.subr.mxu0 %v725
    %818 = vmatpush1.msra.mxu0 %v724
    %819 = vmatprep.subr.mxu0 %v728
    %820 = vmatpush1.msra.mxu0 %v727
    %821 = vmatprep.mubr.f32.mxu0 %v552
    %822 = vmatmul.mubr.f32.gmra.mrb[0].mxu0 %v551
    %v823 = vpop.f32.mrb[0].mxu0
    %v824 = vadd.f32 0.0, %v823
    %v825 = vpop.f32.mrb[0].mxu0
    %v826 = vadd.f32 0.0, %v825
    %827 = vdwg.mxu0
    %828 = vmatprep.subr.mxu0 %v731
    %829 = vmatpush1.msra.mxu0 %v730
    %830 = vmatprep.subr.mxu0 %v734
    %831 = vmatpush1.msra.mxu0 %v733
    %832 = vmatprep.subr.mxu0 %v737
    %833 = vmatpush1.msra.mxu0 %v736
    %834 = vmatprep.subr.mxu0 %v740
    %835 = vmatpush1.msra.mxu0 %v739
    %836 = vmatprep.subr.mxu0 %v743
    %837 = vmatpush1.msra.mxu0 %v742
    %838 = vmatprep.subr.mxu0 %v746
    %839 = vmatpush1.msra.mxu0 %v745
    %840 = vmatprep.subr.mxu0 %v749
    %841 = vmatpush1.msra.mxu0 %v748
    %842 = vmatprep.subr.mxu0 %v752
    %843 = vmatpush1.msra.mxu0 %v751
    %844 = vmatprep.subr.mxu0 0.0
    %845 = vmatpush1.msra.mxu0 0.0
    %846 = vmatprep.subr.mxu0 0.0
    %847 = vmatpush1.msra.mxu0 0.0
    %848 = vmatprep.subr.mxu0 0.0
    %849 = vmatpush1.msra.mxu0 0.0
    %850 = vmatprep.subr.mxu0 0.0
    %851 = vmatpush1.msra.mxu0 0.0
    %852 = vmatprep.subr.mxu0 0.0
    %853 = vmatpush1.msra.mxu0 0.0
    %854 = vmatprep.subr.mxu0 0.0
    %855 = vmatpush1.msra.mxu0 0.0
    %856 = vmatprep.subr.mxu0 0.0
    %857 = vmatpush1.msra.mxu0 0.0
    %858 = vmatprep.subr.mxu0 0.0
    %859 = vmatpush1.msra.mxu0 0.0
    %860 = vmatprep.subr.mxu0 0.0
    %861 = vmatpush1.msra.mxu0 0.0
    %862 = vmatprep.subr.mxu0 0.0
    %863 = vmatpush1.msra.mxu0 0.0
    %864 = vmatprep.subr.mxu0 0.0
    %865 = vmatpush1.msra.mxu0 0.0
    %866 = vmatprep.subr.mxu0 0.0
    %867 = vmatpush1.msra.mxu0 0.0
    %868 = vmatprep.subr.mxu0 0.0
    %869 = vmatpush1.msra.mxu0 0.0
    %870 = vmatprep.subr.mxu0 0.0
    %871 = vmatpush1.msra.mxu0 0.0
    %872 = vmatprep.subr.mxu0 0.0
    %873 = vmatpush1.msra.mxu0 0.0
    %874 = vmatprep.subr.mxu0 0.0
    %875 = vmatpush1.msra.mxu0 0.0
    %876 = vmatprep.subr.mxu0 0.0
    %877 = vmatpush1.msra.mxu0 0.0
    %878 = vmatprep.subr.mxu0 0.0
    %879 = vmatpush1.msra.mxu0 0.0
    %880 = vmatprep.subr.mxu0 0.0
    %881 = vmatpush1.msra.mxu0 0.0
    %882 = vmatprep.subr.mxu0 0.0
    %883 = vmatpush1.msra.mxu0 0.0
    %884 = vmatprep.subr.mxu0 0.0
    %885 = vmatpush1.msra.mxu0 0.0
    %886 = vmatprep.subr.mxu0 0.0
    %887 = vmatpush1.msra.mxu0 0.0
    %888 = vmatprep.subr.mxu0 0.0
    %889 = vmatpush1.msra.mxu0 0.0
    %890 = vmatprep.subr.mxu0 0.0
    %891 = vmatpush1.msra.mxu0 0.0
    %892 = vmatprep.mubr.f32.mxu0 0.0
    %893 = vmatmul.mubr.f32.gmra.mrb[0].mxu0 %v755
    %v894 = vpop.f32.mrb[0].mxu0
    %v895 = vadd.f32 %v824, %v894
    %v896 = vpop.f32.mrb[0].mxu0
    %v897 = vadd.f32 %v826, %v896
    %898 = vdwg.mxu0
    %899 = vmatprep.subr.mxu0 0.0
    %900 = vmatpush1.msra.mxu0 %v636
    %901 = vmatprep.subr.mxu0 0.0
    %902 = vmatpush1.msra.mxu0 %v639
    %903 = vmatprep.subr.mxu0 0.0
    %904 = vmatpush1.msra.mxu0 %v642
    %905 = vmatprep.subr.mxu0 0.0
    %906 = vmatpush1.msra.mxu0 %v645
    %907 = vmatprep.subr.mxu0 0.0
    %908 = vmatpush1.msra.mxu0 %v648
    %909 = vmatprep.subr.mxu0 0.0
    %910 = vmatpush1.msra.mxu0 %v651
    %911 = vmatprep.subr.mxu0 0.0
    %912 = vmatpush1.msra.mxu0 %v654
    %913 = vmatprep.subr.mxu0 0.0
    %914 = vmatpush1.msra.mxu0 %v657
    %915 = vmatprep.subr.mxu0 0.0
    %916 = vmatpush1.msra.mxu0 %v660
    %917 = vmatprep.subr.mxu0 0.0
    %918 = vmatpush1.msra.mxu0 %v663
    %919 = vmatprep.subr.mxu0 0.0
    %920 = vmatpush1.msra.mxu0 %v666
    %921 = vmatprep.subr.mxu0 0.0
    %922 = vmatpush1.msra.mxu0 %v669
    %923 = vmatprep.subr.mxu0 0.0
    %924 = vmatpush1.msra.mxu0 %v672
    %925 = vmatprep.subr.mxu0 0.0
    %926 = vmatpush1.msra.mxu0 %v675
    %927 = vmatprep.subr.mxu0 0.0
    %928 = vmatpush1.msra.mxu0 %v678
    %929 = vmatprep.subr.mxu0 0.0
    %930 = vmatpush1.msra.mxu0 %v681
    %931 = vmatprep.subr.mxu0 0.0
    %932 = vmatpush1.msra.mxu0 %v684
    %933 = vmatprep.subr.mxu0 0.0
    %934 = vmatpush1.msra.mxu0 %v687
    %935 = vmatprep.subr.mxu0 0.0
    %936 = vmatpush1.msra.mxu0 %v690
    %937 = vmatprep.subr.mxu0 0.0
    %938 = vmatpush1.msra.mxu0 %v693
    %939 = vmatprep.subr.mxu0 0.0
    %940 = vmatpush1.msra.mxu0 %v696
    %941 = vmatprep.subr.mxu0 0.0
    %942 = vmatpush1.msra.mxu0 %v699
    %943 = vmatprep.subr.mxu0 0.0
    %944 = vmatpush1.msra.mxu0 %v702
    %945 = vmatprep.subr.mxu0 0.0
    %946 = vmatpush1.msra.mxu0 %v705
    %947 = vmatprep.subr.mxu0 0.0
    %948 = vmatpush1.msra.mxu0 %v708
    %949 = vmatprep.subr.mxu0 0.0
    %950 = vmatpush1.msra.mxu0 %v711
    %951 = vmatprep.subr.mxu0 0.0
    %952 = vmatpush1.msra.mxu0 %v714
    %953 = vmatprep.subr.mxu0 0.0
    %954 = vmatpush1.msra.mxu0 %v717
    %955 = vmatprep.subr.mxu0 0.0
    %956 = vmatpush1.msra.mxu0 %v720
    %957 = vmatprep.subr.mxu0 0.0
    %958 = vmatpush1.msra.mxu0 %v723
    %959 = vmatprep.subr.mxu0 0.0
    %960 = vmatpush1.msra.mxu0 %v726
    %961 = vmatprep.subr.mxu0 0.0
    %962 = vmatpush1.msra.mxu0 %v729
    %963 = vmatprep.mubr.f32.mxu0 %v552
    %964 = vmatmul.mubr.f32.gmra.mrb[0].mxu0 %v551
    %v965 = vpop.f32.mrb[0].mxu0
    %v966 = vadd.f32 0.0, %v965
    %v967 = vpop.f32.mrb[0].mxu0
    %968 = vdwg.mxu0
    %969 = vmatprep.subr.mxu0 0.0
    %970 = vmatpush1.msra.mxu0 %v732
    %971 = vmatprep.subr.mxu0 0.0
    %972 = vmatpush1.msra.mxu0 %v735
    %973 = vmatprep.subr.mxu0 0.0
    %974 = vmatpush1.msra.mxu0 %v738
    %975 = vmatprep.subr.mxu0 0.0
    %976 = vmatpush1.msra.mxu0 %v741
    %977 = vmatprep.subr.mxu0 0.0
    %978 = vmatpush1.msra.mxu0 %v744
    %979 = vmatprep.subr.mxu0 0.0
    %980 = vmatpush1.msra.mxu0 %v747
    %981 = vmatprep.subr.mxu0 0.0
    %982 = vmatpush1.msra.mxu0 %v750
    %983 = vmatprep.subr.mxu0 0.0
    %984 = vmatpush1.msra.mxu0 %v753
    %985 = vmatprep.subr.mxu0 0.0
    %986 = vmatpush1.msra.mxu0 0.0
    %987 = vmatprep.subr.mxu0 0.0
    %988 = vmatpush1.msra.mxu0 0.0
    %989 = vmatprep.subr.mxu0 0.0
    %990 = vmatpush1.msra.mxu0 0.0
    %991 = vmatprep.subr.mxu0 0.0
    %992 = vmatpush1.msra.mxu0 0.0
    %993 = vmatprep.subr.mxu0 0.0
    %994 = vmatpush1.msra.mxu0 0.0
    %995 = vmatprep.subr.mxu0 0.0
    %996 = vmatpush1.msra.mxu0 0.0
    %997 = vmatprep.subr.mxu0 0.0
    %998 = vmatpush1.msra.mxu0 0.0
    %999 = vmatprep.subr.mxu0 0.0
    %1000 = vmatpush1.msra.mxu0 0.0
    %1001 = vmatprep.subr.mxu0 0.0
    %1002 = vmatpush1.msra.mxu0 0.0
    %1003 = vmatprep.subr.mxu0 0.0
    %1004 = vmatpush1.msra.mxu0 0.0
    %1005 = vmatprep.subr.mxu0 0.0
    %1006 = vmatpush1.msra.mxu0 0.0
    %1007 = vmatprep.subr.mxu0 0.0
    %1008 = vmatpush1.msra.mxu0 0.0
    %1009 = vmatprep.subr.mxu0 0.0
    %1010 = vmatpush1.msra.mxu0 0.0
    %1011 = vmatprep.subr.mxu0 0.0
    %1012 = vmatpush1.msra.mxu0 0.0
    %1013 = vmatprep.subr.mxu0 0.0
    %1014 = vmatpush1.msra.mxu0 0.0
    %1015 = vmatprep.subr.mxu0 0.0
    %1016 = vmatpush1.msra.mxu0 0.0
    %1017 = vmatprep.subr.mxu0 0.0
    %1018 = vmatpush1.msra.mxu0 0.0
    %1019 = vmatprep.subr.mxu0 0.0
    %1020 = vmatpush1.msra.mxu0 0.0
    %1021 = vmatprep.subr.mxu0 0.0
    %1022 = vmatpush1.msra.mxu0 0.0
    %1023 = vmatprep.subr.mxu0 0.0
    %1024 = vmatpush1.msra.mxu0 0.0
    %1025 = vmatprep.subr.mxu0 0.0
    %1026 = vmatpush1.msra.mxu0 0.0
    %1027 = vmatprep.subr.mxu0 0.0
    %1028 = vmatpush1.msra.mxu0 0.0
    %1029 = vmatprep.subr.mxu0 0.0
    %1030 = vmatpush1.msra.mxu0 0.0
    %1031 = vmatprep.subr.mxu0 0.0
    %1032 = vmatpush1.msra.mxu0 0.0
    %1033 = vmatprep.mubr.f32.mxu0 0.0
    %1034 = vmatmul.mubr.f32.gmra.mrb[0].mxu0 %v755
    %v1035 = vpop.f32.mrb[0].mxu0
    %v1036 = vadd.f32 %v966, %v1035
    %v1037 = vpop.f32.mrb[0].mxu0
    %1038 = vdwg.mxu0
    %v1039 = vtanh.pop %v1036
    %v1040 = vld [vmem:[%s12] sm:$0x1]
    %v1041 = vld [vmem:[%s11] sm:$0xf]
    %v1042 = vld [vmem:[%s11 + $0x4] sm:$0xf]
    %v1043 = vld [vmem:[%s11 + $0x8] sm:$0xf]
    %v1044 = vld [vmem:[%s11 + $0xc] sm:$0xf]
    %v1045 = vld [vmem:[%s11 + $0x10] sm:$0xf]
    %v1046 = vld [vmem:[%s11 + $0x14] sm:$0xf]
    %v1047 = vld [vmem:[%s11 + $0x18] sm:$0xf]
    %v1048 = vld [vmem:[%s11 + $0x1c] sm:$0xf]
    %v1049 = vunpack.c.l.bf16 %v1041
    %v1050 = vunpack.c.l.bf16 %v1042
    %v1051 = vunpack.c.l.bf16 %v1043
    %v1052 = vunpack.c.l.bf16 %v1044
    %v1053 = vunpack.c.l.bf16 %v1045
    %v1054 = vunpack.c.l.bf16 %v1046
    %v1055 = vunpack.c.l.bf16 %v1047
    %v1056 = vunpack.c.l.bf16 %v1048
    %v1058 = vsel %vm124, %v1039, 0
    %1060 = vmatprep.subr.mxu0 0.0
    %1061 = vmatpush1.msra.mxu0 %v1049
    %1062 = vmatprep.subr.mxu0 0.0
    %1063 = vmatpush1.msra.mxu0 %v1050
    %1064 = vmatprep.subr.mxu0 0.0
    %1065 = vmatpush1.msra.mxu0 %v1051
    %1066 = vmatprep.subr.mxu0 0.0
    %1067 = vmatpush1.msra.mxu0 %v1052
    %1068 = vmatprep.subr.mxu0 0.0
    %1069 = vmatpush1.msra.mxu0 %v1053
    %1070 = vmatprep.subr.mxu0 0.0
    %1071 = vmatpush1.msra.mxu0 %v1054
    %1072 = vmatprep.subr.mxu0 0.0
    %1073 = vmatpush1.msra.mxu0 %v1055
    %1074 = vmatprep.subr.mxu0 0.0
    %1075 = vmatpush1.msra.mxu0 %v1056
    %1076 = vmatprep.subr.mxu0 0.0
    %1077 = vmatpush1.msra.mxu0 0.0
    %1078 = vmatprep.subr.mxu0 0.0
    %1079 = vmatpush1.msra.mxu0 0.0
    %1080 = vmatprep.subr.mxu0 0.0
    %1081 = vmatpush1.msra.mxu0 0.0
    %1082 = vmatprep.subr.mxu0 0.0
    %1083 = vmatpush1.msra.mxu0 0.0
    %1084 = vmatprep.subr.mxu0 0.0
    %1085 = vmatpush1.msra.mxu0 0.0
    %1086 = vmatprep.subr.mxu0 0.0
    %1087 = vmatpush1.msra.mxu0 0.0
    %1088 = vmatprep.subr.mxu0 0.0
    %1089 = vmatpush1.msra.mxu0 0.0
    %1090 = vmatprep.subr.mxu0 0.0
    %1091 = vmatpush1.msra.mxu0 0.0
    %1092 = vmatprep.subr.mxu0 0.0
    %1093 = vmatpush1.msra.mxu0 0.0
    %1094 = vmatprep.subr.mxu0 0.0
    %1095 = vmatpush1.msra.mxu0 0.0
    %1096 = vmatprep.subr.mxu0 0.0
    %1097 = vmatpush1.msra.mxu0 0.0
    %1098 = vmatprep.subr.mxu0 0.0
    %1099 = vmatpush1.msra.mxu0 0.0
    %1100 = vmatprep.subr.mxu0 0.0
    %1101 = vmatpush1.msra.mxu0 0.0
    %1102 = vmatprep.subr.mxu0 0.0
    %1103 = vmatpush1.msra.mxu0 0.0
    %1104 = vmatprep.subr.mxu0 0.0
    %1105 = vmatpush1.msra.mxu0 0.0
    %1106 = vmatprep.subr.mxu0 0.0
    %1107 = vmatpush1.msra.mxu0 0.0
    %1108 = vmatprep.subr.mxu0 0.0
    %1109 = vmatpush1.msra.mxu0 0.0
    %1110 = vmatprep.subr.mxu0 0.0
    %1111 = vmatpush1.msra.mxu0 0.0
    %1112 = vmatprep.subr.mxu0 0.0
    %1113 = vmatpush1.msra.mxu0 0.0
    %1114 = vmatprep.subr.mxu0 0.0
    %1115 = vmatpush1.msra.mxu0 0.0
    %1116 = vmatprep.subr.mxu0 0.0
    %1117 = vmatpush1.msra.mxu0 0.0
    %1118 = vmatprep.subr.mxu0 0.0
    %1119 = vmatpush1.msra.mxu0 0.0
    %1120 = vmatprep.subr.mxu0 0.0
    %1121 = vmatpush1.msra.mxu0 0.0
    %1122 = vmatprep.subr.mxu0 0.0
    %1123 = vmatpush1.msra.mxu0 0.0
    %1124 = vmatprep.mubr.f32.mxu0 0.0
    %1125 = vmatmul.mubr.f32.gmra.mrb[0].mxu0 %v1058
    %v1126 = vpop.f32.mrb[0].mxu0
    %v1127 = vadd.f32 0.0, %v1126
    %v1128 = vpop.f32.mrb[0].mxu0
    %1129 = vdwg.mxu0
    %v1131 = vlaneseq
    %v1132 = vshrl.u32 %v1131, 7
    %v1133 = vsub.s32 0, %v1132
    %v1134 = vrot.slane %v1040, %v1133
    %v1136 = vadd.f32 %v1134, %v1127
    %v1137 = vmul.f32 %v1136, 1.442695
    %v1138 = vpow.pop %v1137
    %v1139 = vlaneseq
    %v1140 = vand.u32 %v1139, 127
    %vm1141 = vcmp.lt.s32.totalorder %v1140, %v120
    %v1142 = vsel %vm1141, 1, 0
    %v1143 = vcvt.s32.f32 %v1142
    %vm1144 = vcmask 64512
    %v1146 = vsel %vm1144, %v1143, 0
    %1148 = vmatprep.subr.mxu0 0.0
    %1149 = vmatpush1.msra.mxu0 %v1138
    %1150 = vmatprep.subr.mxu0 0.0
    %1151 = vmatpush1.msra.mxu0 0.0
    %1152 = vmatprep.subr.mxu0 0.0
    %1153 = vmatpush1.msra.mxu0 0.0
    %1154 = vmatprep.subr.mxu0 0.0
    %1155 = vmatpush1.msra.mxu0 0.0
    %1156 = vmatprep.subr.mxu0 0.0
    %1157 = vmatpush1.msra.mxu0 0.0
    %1158 = vmatprep.subr.mxu0 0.0
    %1159 = vmatpush1.msra.mxu0 0.0
    %1160 = vmatprep.subr.mxu0 0.0
    %1161 = vmatpush1.msra.mxu0 0.0
    %1162 = vmatprep.subr.mxu0 0.0
    %1163 = vmatpush1.msra.mxu0 0.0
    %1164 = vmatprep.subr.mxu0 0.0
    %1165 = vmatpush1.msra.mxu0 0.0
    %1166 = vmatprep.subr.mxu0 0.0
    %1167 = vmatpush1.msra.mxu0 0.0
    %1168 = vmatprep.subr.mxu0 0.0
    %1169 = vmatpush1.msra.mxu0 0.0
    %1170 = vmatprep.subr.mxu0 0.0
    %1171 = vmatpush1.msra.mxu0 0.0
    %1172 = vmatprep.subr.mxu0 0.0
    %1173 = vmatpush1.msra.mxu0 0.0
    %1174 = vmatprep.subr.mxu0 0.0
    %1175 = vmatpush1.msra.mxu0 0.0
    %1176 = vmatprep.subr.mxu0 0.0
    %1177 = vmatpush1.msra.mxu0 0.0
    %1178 = vmatprep.subr.mxu0 0.0
    %1179 = vmatpush1.msra.mxu0 0.0
    %1180 = vmatprep.subr.mxu0 0.0
    %1181 = vmatpush1.msra.mxu0 0.0
    %1182 = vmatprep.subr.mxu0 0.0
    %1183 = vmatpush1.msra.mxu0 0.0
    %1184 = vmatprep.subr.mxu0 0.0
    %1185 = vmatpush1.msra.mxu0 0.0
    %1186 = vmatprep.subr.mxu0 0.0
    %1187 = vmatpush1.msra.mxu0 0.0
    %1188 = vmatprep.subr.mxu0 0.0
    %1189 = vmatpush1.msra.mxu0 0.0
    %1190 = vmatprep.subr.mxu0 0.0
    %1191 = vmatpush1.msra.mxu0 0.0
    %1192 = vmatprep.subr.mxu0 0.0
    %1193 = vmatpush1.msra.mxu0 0.0
    %1194 = vmatprep.subr.mxu0 0.0
    %1195 = vmatpush1.msra.mxu0 0.0
    %1196 = vmatprep.subr.mxu0 0.0
    %1197 = vmatpush1.msra.mxu0 0.0
    %1198 = vmatprep.subr.mxu0 0.0
    %1199 = vmatpush1.msra.mxu0 0.0
    %1200 = vmatprep.subr.mxu0 0.0
    %1201 = vmatpush1.msra.mxu0 0.0
    %1202 = vmatprep.subr.mxu0 0.0
    %1203 = vmatpush1.msra.mxu0 0.0
    %1204 = vmatprep.subr.mxu0 0.0
    %1205 = vmatpush1.msra.mxu0 0.0
    %1206 = vmatprep.subr.mxu0 0.0
    %1207 = vmatpush1.msra.mxu0 0.0
    %1208 = vmatprep.subr.mxu0 0.0
    %1209 = vmatpush1.msra.mxu0 0.0
    %1210 = vmatprep.subr.mxu0 0.0
    %1211 = vmatpush1.msra.mxu0 0.0
    %1212 = vmatprep.mubr.f32.mxu0 0.0
    %1213 = vmatmul.mubr.f32.gmra.mrb[0].mxu0 %v1146
    %v1214 = vpop.f32.mrb[0].mxu0
    %v1215 = vadd.f32 0.0, %v1214
    %v1216 = vpop.f32.mrb[0].mxu0
    %1217 = vdwg.mxu0
    %v1218 = vadd.f32 %v1215, %v1138
    %v1219 = vsub.f32 0.0, %v1215
    %v1220 = vmul.f32 %v1219, 1.442695
    %v1221 = vpow.pop %v1220
    %v1222 = vsub.f32 0.0, %v1218
    %v1223 = vmul.f32 %v1222, 1.442695
    %v1224 = vpow.pop %v1223
    %v1225 = vmul.f32 %v895, %v1221
    %v1226 = vmul.f32 %v1218, 1.442695
    %v1227 = vpow.pop %v1226
    %1229 = vrot.lane.b32.xlu0 %v1227, 64
    %v1230 = vpop.permute.xlu0 %1229
    %v1232 = vmul.f32 %v895, %v1230
    %v1233 = vlaneseq
    %v1234 = vshrl.u32 %v1233, 7
    %v1235 = vsub.s32 7, %v1234
    %v1236 = vrot.slane %v1224, %v1235
    %1238 = vrot.lane.b32.xlu0 %v1236, 64
    %v1239 = vpop.permute.xlu0 %1238
    %v1241 = vmul.f32 %v1232, %v1239
    %1243 = vrot.lane.b32.xlu0 %v1241, 64
    %v1244 = vpop.permute.xlu0 %1243
    %1246 = vxpose.xlu0.b32.start [1/16] %v1244, 128
    %1247 = vxpose.xlu0.b32.cont [2/16] 0.0, 128
    %1248 = vxpose.xlu0.b32.cont [3/16] 0.0, 128
    %1249 = vxpose.xlu0.b32.cont [4/16] 0.0, 128
    %1250 = vxpose.xlu0.b32.cont [5/16] 0.0, 128
    %1251 = vxpose.xlu0.b32.cont [6/16] 0.0, 128
    %1252 = vxpose.xlu0.b32.cont [7/16] 0.0, 128
    %1253 = vxpose.xlu0.b32.cont [8/16] 0.0, 128
    %1254 = vxpose.xlu0.b32.cont [9/16] 0.0, 128
    %1255 = vxpose.xlu0.b32.cont [10/16] 0.0, 128
    %1256 = vxpose.xlu0.b32.cont [11/16] 0.0, 128
    %1257 = vxpose.xlu0.b32.cont [12/16] 0.0, 128
    %1258 = vxpose.xlu0.b32.cont [13/16] 0.0, 128
    %1259 = vxpose.xlu0.b32.cont [14/16] 0.0, 128
    %1260 = vxpose.xlu0.b32.cont [15/16] 0.0, 128
    %1261 = vxpose.xlu0.b32.end [16/16] 0.0, 128
    %v1262 = vpop.trf.xlu0
    %v1263 = vpop.trf.xlu0
    %v1264 = vpop.trf.xlu0
    %v1265 = vpop.trf.xlu0
    %v1266 = vpop.trf.xlu0
    %v1267 = vpop.trf.xlu0
    %v1268 = vpop.trf.xlu0
    %v1269 = vpop.trf.xlu0
    %v1270 = vpop.trf.xlu0
    %v1271 = vpop.trf.xlu0
    %v1272 = vpop.trf.xlu0
    %v1273 = vpop.trf.xlu0
    %v1274 = vpop.trf.xlu0
    %v1275 = vpop.trf.xlu0
    %v1276 = vpop.trf.xlu0
    %v1277 = vpop.trf.xlu0
    %1279 = vrot.lane.b32.xlu0 %v895, 64
    %v1280 = vpop.permute.xlu0 %1279
    %v1282 = vmul.f32 %v895, %v1280
    %v1283 = vld [vmem:[%s13] sm:$0x1]
    %v1285 = vlaneseq
    %v1286 = vshrl.u32 %v1285, 7
    %v1287 = vsub.s32 0, %v1286
    %v1288 = vrot.slane %v1283, %v1287
    %v1290 = vmul.f32 %v1282, %v1288
    %1292 = vbcast.lane.b32.xlu0 %v1236, 256
    %v1293 = vpop.permute.xlu0 %1292
    %s1295 = sor.u32 256, 8
    %1296 = vbcast.lane.b32.xlu0 %v1236, %s1295
    %v1297 = vpop.permute.xlu0 %1296
    %s1299 = sor.u32 256, 16
    %1300 = vbcast.lane.b32.xlu0 %v1236, %s1299
    %v1301 = vpop.permute.xlu0 %1300
    %s1303 = sor.u32 256, 24
    %1304 = vbcast.lane.b32.xlu0 %v1236, %s1303
    %v1305 = vpop.permute.xlu0 %1304
    %s1307 = sor.u32 256, 32
    %1308 = vbcast.lane.b32.xlu0 %v1236, %s1307
    %v1309 = vpop.permute.xlu0 %1308
    %s1311 = sor.u32 256, 40
    %1312 = vbcast.lane.b32.xlu0 %v1236, %s1311
    %v1313 = vpop.permute.xlu0 %1312
    %s1315 = sor.u32 256, 48
    %1316 = vbcast.lane.b32.xlu0 %v1236, %s1315
    %v1317 = vpop.permute.xlu0 %1316
    %s1319 = sor.u32 256, 56
    %1320 = vbcast.lane.b32.xlu0 %v1236, %s1319
    %v1321 = vpop.permute.xlu0 %1320
    %v1322 = vld [vmem:[%s2] sm:$0xff]
    %v1323 = vld [vmem:[%s2 + $0x8] sm:$0xff]
    %v1324 = vld [vmem:[%s2 + $0x10] sm:$0xff]
    %v1325 = vld [vmem:[%s2 + $0x18] sm:$0xff]
    %1327 = vrot.lane.b32.xlu0 %v1232, 64
    %v1328 = vpop.permute.xlu0 %1327
    %v1330 = vsel %vm374, %v1225, 0
    %v1332 = vsel %vm374, %v1328, 0
    %1334 = vmatprep.subr.mxu0 0.0
    %1335 = vmatpush1.xpose.msra.mxu0 %v1332
    %1336 = vmatprep.subr.mxu0 0.0
    %1337 = vmatpush1.xpose.msra.mxu0 0.0
    %1338 = vmatprep.subr.mxu0 0.0
    %1339 = vmatpush1.xpose.msra.mxu0 0.0
    %1340 = vmatprep.subr.mxu0 0.0
    %1341 = vmatpush1.xpose.msra.mxu0 0.0
    %1342 = vmatprep.subr.mxu0 0.0
    %1343 = vmatpush1.xpose.msra.mxu0 0.0
    %1344 = vmatprep.subr.mxu0 0.0
    %1345 = vmatpush1.xpose.msra.mxu0 0.0
    %1346 = vmatprep.subr.mxu0 0.0
    %1347 = vmatpush1.xpose.msra.mxu0 0.0
    %1348 = vmatprep.subr.mxu0 0.0
    %1349 = vmatpush1.xpose.msra.mxu0 0.0
    %1350 = vmatprep.subr.mxu0 0.0
    %1351 = vmatpush1.xpose.msra.mxu0 0.0
    %1352 = vmatprep.subr.mxu0 0.0
    %1353 = vmatpush1.xpose.msra.mxu0 0.0
    %1354 = vmatprep.subr.mxu0 0.0
    %1355 = vmatpush1.xpose.msra.mxu0 0.0
    %1356 = vmatprep.subr.mxu0 0.0
    %1357 = vmatpush1.xpose.msra.mxu0 0.0
    %1358 = vmatprep.subr.mxu0 0.0
    %1359 = vmatpush1.xpose.msra.mxu0 0.0
    %1360 = vmatprep.subr.mxu0 0.0
    %1361 = vmatpush1.xpose.msra.mxu0 0.0
    %1362 = vmatprep.subr.mxu0 0.0
    %1363 = vmatpush1.xpose.msra.mxu0 0.0
    %1364 = vmatprep.subr.mxu0 0.0
    %1365 = vmatpush1.xpose.msra.mxu0 0.0
    %1366 = vmatprep.subr.mxu0 0.0
    %1367 = vmatpush1.xpose.msra.mxu0 0.0
    %1368 = vmatprep.subr.mxu0 0.0
    %1369 = vmatpush1.xpose.msra.mxu0 0.0
    %1370 = vmatprep.subr.mxu0 0.0
    %1371 = vmatpush1.xpose.msra.mxu0 0.0
    %1372 = vmatprep.subr.mxu0 0.0
    %1373 = vmatpush1.xpose.msra.mxu0 0.0
    %1374 = vmatprep.subr.mxu0 0.0
    %1375 = vmatpush1.xpose.msra.mxu0 0.0
    %1376 = vmatprep.subr.mxu0 0.0
    %1377 = vmatpush1.xpose.msra.mxu0 0.0
    %1378 = vmatprep.subr.mxu0 0.0
    %1379 = vmatpush1.xpose.msra.mxu0 0.0
    %1380 = vmatprep.subr.mxu0 0.0
    %1381 = vmatpush1.xpose.msra.mxu0 0.0
    %1382 = vmatprep.subr.mxu0 0.0
    %1383 = vmatpush1.xpose.msra.mxu0 0.0
    %1384 = vmatprep.subr.mxu0 0.0
    %1385 = vmatpush1.xpose.msra.mxu0 0.0
    %1386 = vmatprep.subr.mxu0 0.0
    %1387 = vmatpush1.xpose.msra.mxu0 0.0
    %1388 = vmatprep.subr.mxu0 0.0
    %1389 = vmatpush1.xpose.msra.mxu0 0.0
    %1390 = vmatprep.subr.mxu0 0.0
    %1391 = vmatpush1.xpose.msra.mxu0 0.0
    %1392 = vmatprep.subr.mxu0 0.0
    %1393 = vmatpush1.xpose.msra.mxu0 0.0
    %1394 = vmatprep.subr.mxu0 0.0
    %1395 = vmatpush1.xpose.msra.mxu0 0.0
    %1396 = vmatprep.subr.mxu0 0.0
    %1397 = vmatpush1.xpose.msra.mxu0 0.0
    %1398 = vmatprep.mubr.f32.mxu0 0.0
    %1399 = vmatmul.mubr.f32.gmra.mrb[0].mxu0 %v1330
    %v1400 = vpop.f32.mrb[0].mxu0
    %v1401 = vadd.f32 0.0, %v1400
    %v1402 = vpop.f32.mrb[0].mxu0
    %1403 = vdwg.mxu0
    %v1404 = vsel %vm1141, %v1401, 0.0
    %v1405 = vsel %vm374, %v1290, 0.0
    %1406 = vadd.xlane.f32.xlu0 %v1405
    %v1407 = vpop.xlane.xlu0 %1406
    %1408 = vmatprep.subr.mxu0 0.0
    %1409 = vmatpush1.msra.mxu0 %v1322
    %1410 = vmatprep.subr.mxu0 0.0
    %1411 = vmatpush1.msra.mxu0 %v1323
    %1412 = vmatprep.subr.mxu0 0.0
    %1413 = vmatpush1.msra.mxu0 %v1324
    %1414 = vmatprep.subr.mxu0 0.0
    %1415 = vmatpush1.msra.mxu0 %v1325
    %1416 = vmatprep.subr.mxu0 0.0
    %1417 = vmatpush1.msra.mxu0 0.0
    %1418 = vmatprep.subr.mxu0 0.0
    %1419 = vmatpush1.msra.mxu0 0.0
    %1420 = vmatprep.subr.mxu0 0.0
    %1421 = vmatpush1.msra.mxu0 0.0
    %1422 = vmatprep.subr.mxu0 0.0
    %1423 = vmatpush1.msra.mxu0 0.0
    %1424 = vmatprep.subr.mxu0 0.0
    %1425 = vmatpush1.msra.mxu0 0.0
    %1426 = vmatprep.subr.mxu0 0.0
    %1427 = vmatpush1.msra.mxu0 0.0
    %1428 = vmatprep.subr.mxu0 0.0
    %1429 = vmatpush1.msra.mxu0 0.0
    %1430 = vmatprep.subr.mxu0 0.0
    %1431 = vmatpush1.msra.mxu0 0.0
    %1432 = vmatprep.subr.mxu0 0.0
    %1433 = vmatpush1.msra.mxu0 0.0
    %1434 = vmatprep.subr.mxu0 0.0
    %1435 = vmatpush1.msra.mxu0 0.0
    %1436 = vmatprep.subr.mxu0 0.0
    %1437 = vmatpush1.msra.mxu0 0.0
    %1438 = vmatprep.subr.mxu0 0.0
    %1439 = vmatpush1.msra.mxu0 0.0
    %1440 = vmatprep.subr.mxu0 0.0
    %1441 = vmatpush1.msra.mxu0 0.0
    %1442 = vmatprep.subr.mxu0 0.0
    %1443 = vmatpush1.msra.mxu0 0.0
    %1444 = vmatprep.subr.mxu0 0.0
    %1445 = vmatpush1.msra.mxu0 0.0
    %1446 = vmatprep.subr.mxu0 0.0
    %1447 = vmatpush1.msra.mxu0 0.0
    %1448 = vmatprep.subr.mxu0 0.0
    %1449 = vmatpush1.msra.mxu0 0.0
    %1450 = vmatprep.subr.mxu0 0.0
    %1451 = vmatpush1.msra.mxu0 0.0
    %1452 = vmatprep.subr.mxu0 0.0
    %1453 = vmatpush1.msra.mxu0 0.0
    %1454 = vmatprep.subr.mxu0 0.0
    %1455 = vmatpush1.msra.mxu0 0.0
    %1456 = vmatprep.subr.mxu0 0.0
    %1457 = vmatpush1.msra.mxu0 0.0
    %1458 = vmatprep.subr.mxu0 0.0
    %1459 = vmatpush1.msra.mxu0 0.0
    %1460 = vmatprep.subr.mxu0 0.0
    %1461 = vmatpush1.msra.mxu0 0.0
    %1462 = vmatprep.subr.mxu0 0.0
    %1463 = vmatpush1.msra.mxu0 0.0
    %1464 = vmatprep.subr.mxu0 0.0
    %1465 = vmatpush1.msra.mxu0 0.0
    %1466 = vmatprep.subr.mxu0 0.0
    %1467 = vmatpush1.msra.mxu0 0.0
    %1468 = vmatprep.subr.mxu0 0.0
    %1469 = vmatpush1.msra.mxu0 0.0
    %1470 = vmatprep.subr.mxu0 0.0
    %1471 = vmatpush1.msra.mxu0 0.0
    %1472 = vmatprep.mubr.f32.mxu0 0.0
    %1473 = vmatmul.mubr.f32.gmra.mrb[0].mxu0 %v1330
    %v1474 = vpop.f32.mrb[0].mxu0
    %v1475 = vadd.f32 0.0, %v1474
    %v1476 = vpop.f32.mrb[0].mxu0
    %1477 = vdwg.mxu0
    %v1479 = vsel %vm1144, %v1404, 0
    %1481 = vmatprep.subr.mxu0 0.0
    %1482 = vmatpush1.msra.mxu0 %v897
    %1483 = vmatprep.subr.mxu0 0.0
    %1484 = vmatpush1.msra.mxu0 0.0
    %1485 = vmatprep.subr.mxu0 0.0
    %1486 = vmatpush1.msra.mxu0 0.0
    %1487 = vmatprep.subr.mxu0 0.0
    %1488 = vmatpush1.msra.mxu0 0.0
    %1489 = vmatprep.subr.mxu0 0.0
    %1490 = vmatpush1.msra.mxu0 0.0
    %1491 = vmatprep.subr.mxu0 0.0
    %1492 = vmatpush1.msra.mxu0 0.0
    %1493 = vmatprep.subr.mxu0 0.0
    %1494 = vmatpush1.msra.mxu0 0.0
    %1495 = vmatprep.subr.mxu0 0.0
    %1496 = vmatpush1.msra.mxu0 0.0
    %1497 = vmatprep.subr.mxu0 0.0
    %1498 = vmatpush1.msra.mxu0 0.0
    %1499 = vmatprep.subr.mxu0 0.0
    %1500 = vmatpush1.msra.mxu0 0.0
    %1501 = vmatprep.subr.mxu0 0.0
    %1502 = vmatpush1.msra.mxu0 0.0
    %1503 = vmatprep.subr.mxu0 0.0
    %1504 = vmatpush1.msra.mxu0 0.0
    %1505 = vmatprep.subr.mxu0 0.0
    %1506 = vmatpush1.msra.mxu0 0.0
    %1507 = vmatprep.subr.mxu0 0.0
    %1508 = vmatpush1.msra.mxu0 0.0
    %1509 = vmatprep.subr.mxu0 0.0
    %1510 = vmatpush1.msra.mxu0 0.0
    %1511 = vmatprep.subr.mxu0 0.0
    %1512 = vmatpush1.msra.mxu0 0.0
    %1513 = vmatprep.subr.mxu0 0.0
    %1514 = vmatpush1.msra.mxu0 0.0
    %1515 = vmatprep.subr.mxu0 0.0
    %1516 = vmatpush1.msra.mxu0 0.0
    %1517 = vmatprep.subr.mxu0 0.0
    %1518 = vmatpush1.msra.mxu0 0.0
    %1519 = vmatprep.subr.mxu0 0.0
    %1520 = vmatpush1.msra.mxu0 0.0
    %1521 = vmatprep.subr.mxu0 0.0
    %1522 = vmatpush1.msra.mxu0 0.0
    %1523 = vmatprep.subr.mxu0 0.0
    %1524 = vmatpush1.msra.mxu0 0.0
    %1525 = vmatprep.subr.mxu0 0.0
    %1526 = vmatpush1.msra.mxu0 0.0
    %1527 = vmatprep.subr.mxu0 0.0
    %1528 = vmatpush1.msra.mxu0 0.0
    %1529 = vmatprep.subr.mxu0 0.0
    %1530 = vmatpush1.msra.mxu0 0.0
    %1531 = vmatprep.subr.mxu0 0.0
    %1532 = vmatpush1.msra.mxu0 0.0
    %1533 = vmatprep.subr.mxu0 0.0
    %1534 = vmatpush1.msra.mxu0 0.0
    %1535 = vmatprep.subr.mxu0 0.0
    %1536 = vmatpush1.msra.mxu0 0.0
    %1537 = vmatprep.subr.mxu0 0.0
    %1538 = vmatpush1.msra.mxu0 0.0
    %1539 = vmatprep.subr.mxu0 0.0
    %1540 = vmatpush1.msra.mxu0 0.0
    %1541 = vmatprep.subr.mxu0 0.0
    %1542 = vmatpush1.msra.mxu0 0.0
    %1543 = vmatprep.subr.mxu0 0.0
    %1544 = vmatpush1.msra.mxu0 0.0
    %1545 = vmatprep.mubr.f32.mxu0 0.0
    %1546 = vmatmul.mubr.f32.gmra.mrb[0].mxu0 %v1479
    %v1547 = vpop.f32.mrb[0].mxu0
    %v1548 = vadd.f32 %v1475, %v1547
    %v1549 = vpop.f32.mrb[0].mxu0
    %1550 = vdwg.mxu0
    %v1551 = vmul.f32 %v1407, %v897
    %v1552 = vadd.f32 %v1548, %v1551
    %v1553 = vmul.f32 %v1293, %v1322
    %v1554 = vmul.f32 %v1297, %v1323
    %v1555 = vmul.f32 %v1301, %v1324
    %v1556 = vmul.f32 %v1305, %v1325
    %v1558 = vsel %vm1144, %v1262, 0
    %v1561 = vsel %vm1144, %v1263, 0
    %v1564 = vsel %vm1144, %v1264, 0
    %v1567 = vsel %vm1144, %v1265, 0
    %1569 = vmatprep.subr.mxu0 0.0
    %1570 = vmatpush1.msra.mxu0 %v897
    %1571 = vmatprep.subr.mxu0 0.0
    %1572 = vmatpush1.msra.mxu0 0.0
    %1573 = vmatprep.subr.mxu0 0.0
    %1574 = vmatpush1.msra.mxu0 0.0
    %1575 = vmatprep.subr.mxu0 0.0
    %1576 = vmatpush1.msra.mxu0 0.0
    %1577 = vmatprep.subr.mxu0 0.0
    %1578 = vmatpush1.msra.mxu0 0.0
    %1579 = vmatprep.subr.mxu0 0.0
    %1580 = vmatpush1.msra.mxu0 0.0
    %1581 = vmatprep.subr.mxu0 0.0
    %1582 = vmatpush1.msra.mxu0 0.0
    %1583 = vmatprep.subr.mxu0 0.0
    %1584 = vmatpush1.msra.mxu0 0.0
    %1585 = vmatprep.subr.mxu0 0.0
    %1586 = vmatpush1.msra.mxu0 0.0
    %1587 = vmatprep.subr.mxu0 0.0
    %1588 = vmatpush1.msra.mxu0 0.0
    %1589 = vmatprep.subr.mxu0 0.0
    %1590 = vmatpush1.msra.mxu0 0.0
    %1591 = vmatprep.subr.mxu0 0.0
    %1592 = vmatpush1.msra.mxu0 0.0
    %1593 = vmatprep.subr.mxu0 0.0
    %1594 = vmatpush1.msra.mxu0 0.0
    %1595 = vmatprep.subr.mxu0 0.0
    %1596 = vmatpush1.msra.mxu0 0.0
    %1597 = vmatprep.subr.mxu0 0.0
    %1598 = vmatpush1.msra.mxu0 0.0
    %1599 = vmatprep.subr.mxu0 0.0
    %1600 = vmatpush1.msra.mxu0 0.0
    %1601 = vmatprep.subr.mxu0 0.0
    %1602 = vmatpush1.msra.mxu0 0.0
    %1603 = vmatprep.subr.mxu0 0.0
    %1604 = vmatpush1.msra.mxu0 0.0
    %1605 = vmatprep.subr.mxu0 0.0
    %1606 = vmatpush1.msra.mxu0 0.0
    %1607 = vmatprep.subr.mxu0 0.0
    %1608 = vmatpush1.msra.mxu0 0.0
    %1609 = vmatprep.subr.mxu0 0.0
    %1610 = vmatpush1.msra.mxu0 0.0
    %1611 = vmatprep.subr.mxu0 0.0
    %1612 = vmatpush1.msra.mxu0 0.0
    %1613 = vmatprep.subr.mxu0 0.0
    %1614 = vmatpush1.msra.mxu0 0.0
    %1615 = vmatprep.subr.mxu0 0.0
    %1616 = vmatpush1.msra.mxu0 0.0
    %1617 = vmatprep.subr.mxu0 0.0
    %1618 = vmatpush1.msra.mxu0 0.0
    %1619 = vmatprep.subr.mxu0 0.0
    %1620 = vmatpush1.msra.mxu0 0.0
    %1621 = vmatprep.subr.mxu0 0.0
    %1622 = vmatpush1.msra.mxu0 0.0
    %1623 = vmatprep.subr.mxu0 0.0
    %1624 = vmatpush1.msra.mxu0 0.0
    %1625 = vmatprep.subr.mxu0 0.0
    %1626 = vmatpush1.msra.mxu0 0.0
    %1627 = vmatprep.subr.mxu0 0.0
    %1628 = vmatpush1.msra.mxu0 0.0
    %1629 = vmatprep.subr.mxu0 0.0
    %1630 = vmatpush1.msra.mxu0 0.0
    %1631 = vmatprep.subr.mxu0 0.0
    %1632 = vmatpush1.msra.mxu0 0.0
    %1633 = vmatprep.mubr.f32.mxu0 0.0
    %1634 = vmatmul.mubr.f32.gmra.mrb[0].mxu0 %v1558
    %v1635 = vpop.f32.mrb[0].mxu0
    %v1636 = vadd.f32 0.0, %v1635
    %v1637 = vpop.f32.mrb[0].mxu0
    %1638 = vmatprep.mubr.f32.mxu0 0.0
    %1639 = vmatmul.mubr.f32.gmra.mrb[0].mxu0 %v1561
    %v1640 = vpop.f32.mrb[0].mxu0
    %v1641 = vadd.f32 0.0, %v1640
    %v1642 = vpop.f32.mrb[0].mxu0
    %1643 = vmatprep.mubr.f32.mxu0 0.0
    %1644 = vmatmul.mubr.f32.gmra.mrb[0].mxu0 %v1564
    %v1645 = vpop.f32.mrb[0].mxu0
    %v1646 = vadd.f32 0.0, %v1645
    %v1647 = vpop.f32.mrb[0].mxu0
    %1648 = vmatprep.mubr.f32.mxu0 0.0
    %1649 = vmatmul.mubr.f32.gmra.mrb[0].mxu0 %v1567
    %v1650 = vpop.f32.mrb[0].mxu0
    %v1651 = vadd.f32 0.0, %v1650
    %v1652 = vpop.f32.mrb[0].mxu0
    %1653 = vdwg.mxu0
    %v1654 = vadd.f32 %v1553, %v1636
    %v1655 = vadd.f32 %v1554, %v1641
    %v1656 = vadd.f32 %v1555, %v1646
    %v1657 = vadd.f32 %v1556, %v1651
    %1658 = vst.msk [vmem:[#allocation11] sm:$0xff] %vm374, %v1654
    %1659 = vst.msk [vmem:[#allocation11 + $0x8] sm:$0xff] %vm374, %v1655
    %1660 = vst.msk [vmem:[#allocation11 + $0x10] sm:$0xff] %vm374, %v1656
    %1661 = vst.msk [vmem:[#allocation11 + $0x18] sm:$0xff] %vm374, %v1657
    %s1662 = scalar_lea.vmem %s2, 32
    %v1663 = vld [vmem:[%s1662] sm:$0xff]
    %v1664 = vld [vmem:[%s1662 + $0x8] sm:$0xff]
    %v1665 = vld [vmem:[%s1662 + $0x10] sm:$0xff]
    %v1666 = vld [vmem:[%s1662 + $0x18] sm:$0xff]
    %1667 = vrot.lane.b32.xlu0 %v1225, 96
    %v1668 = vpop.permute.xlu0 %1667
    %1669 = vrot.lane.b32.xlu0 %v1232, 32
    %v1670 = vpop.permute.xlu0 %1669
    %v1671 = vsel %vm374, %v1668, 0
    %v1673 = vsel %vm374, %v1670, 0
    %1675 = vmatprep.subr.mxu0 0.0
    %1676 = vmatpush1.xpose.msra.mxu0 %v1673
    %1677 = vmatprep.subr.mxu0 0.0
    %1678 = vmatpush1.xpose.msra.mxu0 0.0
    %1679 = vmatprep.subr.mxu0 0.0
    %1680 = vmatpush1.xpose.msra.mxu0 0.0
    %1681 = vmatprep.subr.mxu0 0.0
    %1682 = vmatpush1.xpose.msra.mxu0 0.0
    %1683 = vmatprep.subr.mxu0 0.0
    %1684 = vmatpush1.xpose.msra.mxu0 0.0
    %1685 = vmatprep.subr.mxu0 0.0
    %1686 = vmatpush1.xpose.msra.mxu0 0.0
    %1687 = vmatprep.subr.mxu0 0.0
    %1688 = vmatpush1.xpose.msra.mxu0 0.0
    %1689 = vmatprep.subr.mxu0 0.0
    %1690 = vmatpush1.xpose.msra.mxu0 0.0
    %1691 = vmatprep.subr.mxu0 0.0
    %1692 = vmatpush1.xpose.msra.mxu0 0.0
    %1693 = vmatprep.subr.mxu0 0.0
    %1694 = vmatpush1.xpose.msra.mxu0 0.0
    %1695 = vmatprep.subr.mxu0 0.0
    %1696 = vmatpush1.xpose.msra.mxu0 0.0
    %1697 = vmatprep.subr.mxu0 0.0
    %1698 = vmatpush1.xpose.msra.mxu0 0.0
    %1699 = vmatprep.subr.mxu0 0.0
    %1700 = vmatpush1.xpose.msra.mxu0 0.0
    %1701 = vmatprep.subr.mxu0 0.0
    %1702 = vmatpush1.xpose.msra.mxu0 0.0
    %1703 = vmatprep.subr.mxu0 0.0
    %1704 = vmatpush1.xpose.msra.mxu0 0.0
    %1705 = vmatprep.subr.mxu0 0.0
    %1706 = vmatpush1.xpose.msra.mxu0 0.0
    %1707 = vmatprep.subr.mxu0 0.0
    %1708 = vmatpush1.xpose.msra.mxu0 0.0
    %1709 = vmatprep.subr.mxu0 0.0
    %1710 = vmatpush1.xpose.msra.mxu0 0.0
    %1711 = vmatprep.subr.mxu0 0.0
    %1712 = vmatpush1.xpose.msra.mxu0 0.0
    %1713 = vmatprep.subr.mxu0 0.0
    %1714 = vmatpush1.xpose.msra.mxu0 0.0
    %1715 = vmatprep.subr.mxu0 0.0
    %1716 = vmatpush1.xpose.msra.mxu0 0.0
    %1717 = vmatprep.subr.mxu0 0.0
    %1718 = vmatpush1.xpose.msra.mxu0 0.0
    %1719 = vmatprep.subr.mxu0 0.0
    %1720 = vmatpush1.xpose.msra.mxu0 0.0
    %1721 = vmatprep.subr.mxu0 0.0
    %1722 = vmatpush1.xpose.msra.mxu0 0.0
    %1723 = vmatprep.subr.mxu0 0.0
    %1724 = vmatpush1.xpose.msra.mxu0 0.0
    %1725 = vmatprep.subr.mxu0 0.0
    %1726 = vmatpush1.xpose.msra.mxu0 0.0
    %1727 = vmatprep.subr.mxu0 0.0
    %1728 = vmatpush1.xpose.msra.mxu0 0.0
    %1729 = vmatprep.subr.mxu0 0.0
    %1730 = vmatpush1.xpose.msra.mxu0 0.0
    %1731 = vmatprep.subr.mxu0 0.0
    %1732 = vmatpush1.xpose.msra.mxu0 0.0
    %1733 = vmatprep.subr.mxu0 0.0
    %1734 = vmatpush1.xpose.msra.mxu0 0.0
    %1735 = vmatprep.subr.mxu0 0.0
    %1736 = vmatpush1.xpose.msra.mxu0 0.0
    %1737 = vmatprep.subr.mxu0 0.0
    %1738 = vmatpush1.xpose.msra.mxu0 0.0
    %1739 = vmatprep.mubr.f32.mxu0 0.0
    %1740 = vmatmul.mubr.f32.gmra.mrb[0].mxu0 %v1671
    %v1741 = vpop.f32.mrb[0].mxu0
    %v1742 = vadd.f32 0.0, %v1741
    %v1743 = vpop.f32.mrb[0].mxu0
    %1744 = vdwg.mxu0
    %v1745 = vsel %vm1141, %v1742, 0.0
    %1747 = vrot.lane.b32.xlu0 %v1290, 96
    %v1748 = vpop.permute.xlu0 %1747
    %v1750 = vsel %vm374, %v1748, 0.0
    %1751 = vadd.xlane.f32.xlu0 %v1750
    %v1752 = vpop.xlane.xlu0 %1751
    %1753 = vmatprep.subr.mxu0 0.0
    %1754 = vmatpush1.msra.mxu0 %v1663
    %1755 = vmatprep.subr.mxu0 0.0
    %1756 = vmatpush1.msra.mxu0 %v1664
    %1757 = vmatprep.subr.mxu0 0.0
    %1758 = vmatpush1.msra.mxu0 %v1665
    %1759 = vmatprep.subr.mxu0 0.0
    %1760 = vmatpush1.msra.mxu0 %v1666
    %1761 = vmatprep.subr.mxu0 0.0
    %1762 = vmatpush1.msra.mxu0 0.0
    %1763 = vmatprep.subr.mxu0 0.0
    %1764 = vmatpush1.msra.mxu0 0.0
    %1765 = vmatprep.subr.mxu0 0.0
    %1766 = vmatpush1.msra.mxu0 0.0
    %1767 = vmatprep.subr.mxu0 0.0
    %1768 = vmatpush1.msra.mxu0 0.0
    %1769 = vmatprep.subr.mxu0 0.0
    %1770 = vmatpush1.msra.mxu0 0.0
    %1771 = vmatprep.subr.mxu0 0.0
    %1772 = vmatpush1.msra.mxu0 0.0
    %1773 = vmatprep.subr.mxu0 0.0
    %1774 = vmatpush1.msra.mxu0 0.0
    %1775 = vmatprep.subr.mxu0 0.0
    %1776 = vmatpush1.msra.mxu0 0.0
    %1777 = vmatprep.subr.mxu0 0.0
    %1778 = vmatpush1.msra.mxu0 0.0
    %1779 = vmatprep.subr.mxu0 0.0
    %1780 = vmatpush1.msra.mxu0 0.0
    %1781 = vmatprep.subr.mxu0 0.0
    %1782 = vmatpush1.msra.mxu0 0.0
    %1783 = vmatprep.subr.mxu0 0.0
    %1784 = vmatpush1.msra.mxu0 0.0
    %1785 = vmatprep.subr.mxu0 0.0
    %1786 = vmatpush1.msra.mxu0 0.0
    %1787 = vmatprep.subr.mxu0 0.0
    %1788 = vmatpush1.msra.mxu0 0.0
    %1789 = vmatprep.subr.mxu0 0.0
    %1790 = vmatpush1.msra.mxu0 0.0
    %1791 = vmatprep.subr.mxu0 0.0
    %1792 = vmatpush1.msra.mxu0 0.0
    %1793 = vmatprep.subr.mxu0 0.0
    %1794 = vmatpush1.msra.mxu0 0.0
    %1795 = vmatprep.subr.mxu0 0.0
    %1796 = vmatpush1.msra.mxu0 0.0
    %1797 = vmatprep.subr.mxu0 0.0
    %1798 = vmatpush1.msra.mxu0 0.0
    %1799 = vmatprep.subr.mxu0 0.0
    %1800 = vmatpush1.msra.mxu0 0.0
    %1801 = vmatprep.subr.mxu0 0.0
    %1802 = vmatpush1.msra.mxu0 0.0
    %1803 = vmatprep.subr.mxu0 0.0
    %1804 = vmatpush1.msra.mxu0 0.0
    %1805 = vmatprep.subr.mxu0 0.0
    %1806 = vmatpush1.msra.mxu0 0.0
    %1807 = vmatprep.subr.mxu0 0.0
    %1808 = vmatpush1.msra.mxu0 0.0
    %1809 = vmatprep.subr.mxu0 0.0
    %1810 = vmatpush1.msra.mxu0 0.0
    %1811 = vmatprep.subr.mxu0 0.0
    %1812 = vmatpush1.msra.mxu0 0.0
    %1813 = vmatprep.subr.mxu0 0.0
    %1814 = vmatpush1.msra.mxu0 0.0
    %1815 = vmatprep.subr.mxu0 0.0
    %1816 = vmatpush1.msra.mxu0 0.0
    %1817 = vmatprep.mubr.f32.mxu0 0.0
    %1818 = vmatmul.mubr.f32.gmra.mrb[0].mxu0 %v1671
    %v1819 = vpop.f32.mrb[0].mxu0
    %v1820 = vadd.f32 0.0, %v1819
    %v1821 = vpop.f32.mrb[0].mxu0
    %1822 = vdwg.mxu0
    %1824 = vrot.lane.b32.xlu0 %v897, 96
    %v1825 = vpop.permute.xlu0 %1824
    %v1828 = vsel %vm1144, %v1745, 0
    %1830 = vmatprep.subr.mxu0 0.0
    %1831 = vmatpush1.msra.mxu0 %v1825
    %1832 = vmatprep.subr.mxu0 0.0
    %1833 = vmatpush1.msra.mxu0 0.0
    %1834 = vmatprep.subr.mxu0 0.0
    %1835 = vmatpush1.msra.mxu0 0.0
    %1836 = vmatprep.subr.mxu0 0.0
    %1837 = vmatpush1.msra.mxu0 0.0
    %1838 = vmatprep.subr.mxu0 0.0
    %1839 = vmatpush1.msra.mxu0 0.0
    %1840 = vmatprep.subr.mxu0 0.0
    %1841 = vmatpush1.msra.mxu0 0.0
    %1842 = vmatprep.subr.mxu0 0.0
    %1843 = vmatpush1.msra.mxu0 0.0
    %1844 = vmatprep.subr.mxu0 0.0
    %1845 = vmatpush1.msra.mxu0 0.0
    %1846 = vmatprep.subr.mxu0 0.0
    %1847 = vmatpush1.msra.mxu0 0.0
    %1848 = vmatprep.subr.mxu0 0.0
    %1849 = vmatpush1.msra.mxu0 0.0
    %1850 = vmatprep.subr.mxu0 0.0
    %1851 = vmatpush1.msra.mxu0 0.0
    %1852 = vmatprep.subr.mxu0 0.0
    %1853 = vmatpush1.msra.mxu0 0.0
    %1854 = vmatprep.subr.mxu0 0.0
    %1855 = vmatpush1.msra.mxu0 0.0
    %1856 = vmatprep.subr.mxu0 0.0
    %1857 = vmatpush1.msra.mxu0 0.0
    %1858 = vmatprep.subr.mxu0 0.0
    %1859 = vmatpush1.msra.mxu0 0.0
    %1860 = vmatprep.subr.mxu0 0.0
    %1861 = vmatpush1.msra.mxu0 0.0
    %1862 = vmatprep.subr.mxu0 0.0
    %1863 = vmatpush1.msra.mxu0 0.0
    %1864 = vmatprep.subr.mxu0 0.0
    %1865 = vmatpush1.msra.mxu0 0.0
    %1866 = vmatprep.subr.mxu0 0.0
    %1867 = vmatpush1.msra.mxu0 0.0
    %1868 = vmatprep.subr.mxu0 0.0
    %1869 = vmatpush1.msra.mxu0 0.0
    %1870 = vmatprep.subr.mxu0 0.0
    %1871 = vmatpush1.msra.mxu0 0.0
    %1872 = vmatprep.subr.mxu0 0.0
    %1873 = vmatpush1.msra.mxu0 0.0
    %1874 = vmatprep.subr.mxu0 0.0
    %1875 = vmatpush1.msra.mxu0 0.0
    %1876 = vmatprep.subr.mxu0 0.0
    %1877 = vmatpush1.msra.mxu0 0.0
    %1878 = vmatprep.subr.mxu0 0.0
    %1879 = vmatpush1.msra.mxu0 0.0
    %1880 = vmatprep.subr.mxu0 0.0
    %1881 = vmatpush1.msra.mxu0 0.0
    %1882 = vmatprep.subr.mxu0 0.0
    %1883 = vmatpush1.msra.mxu0 0.0
    %1884 = vmatprep.subr.mxu0 0.0
    %1885 = vmatpush1.msra.mxu0 0.0
    %1886 = vmatprep.subr.mxu0 0.0
    %1887 = vmatpush1.msra.mxu0 0.0
    %1888 = vmatprep.subr.mxu0 0.0
    %1889 = vmatpush1.msra.mxu0 0.0
    %1890 = vmatprep.subr.mxu0 0.0
    %1891 = vmatpush1.msra.mxu0 0.0
    %1892 = vmatprep.subr.mxu0 0.0
    %1893 = vmatpush1.msra.mxu0 0.0
    %1894 = vmatprep.mubr.f32.mxu0 0.0
    %1895 = vmatmul.mubr.f32.gmra.mrb[0].mxu0 %v1828
    %v1896 = vpop.f32.mrb[0].mxu0
    %v1897 = vadd.f32 %v1820, %v1896
    %v1898 = vpop.f32.mrb[0].mxu0
    %1899 = vdwg.mxu0
    %v1900 = vmul.f32 %v1752, %v897
    %1902 = vrot.lane.b32.xlu0 %v1900, 96
    %v1903 = vpop.permute.xlu0 %1902
    %v1905 = vadd.f32 %v1897, %v1903
    %v1906 = vmul.f32 %v1309, %v1663
    %v1907 = vmul.f32 %v1313, %v1664
    %v1908 = vmul.f32 %v1317, %v1665
    %v1909 = vmul.f32 %v1321, %v1666
    %v1911 = vsel %vm1144, %v1266, 0
    %v1914 = vsel %vm1144, %v1267, 0
    %v1917 = vsel %vm1144, %v1268, 0
    %v1920 = vsel %vm1144, %v1269, 0
    %1922 = vmatprep.subr.mxu0 0.0
    %1923 = vmatpush1.msra.mxu0 %v1825
    %1924 = vmatprep.subr.mxu0 0.0
    %1925 = vmatpush1.msra.mxu0 0.0
    %1926 = vmatprep.subr.mxu0 0.0
    %1927 = vmatpush1.msra.mxu0 0.0
    %1928 = vmatprep.subr.mxu0 0.0
    %1929 = vmatpush1.msra.mxu0 0.0
    %1930 = vmatprep.subr.mxu0 0.0
    %1931 = vmatpush1.msra.mxu0 0.0
    %1932 = vmatprep.subr.mxu0 0.0
    %1933 = vmatpush1.msra.mxu0 0.0
    %1934 = vmatprep.subr.mxu0 0.0
    %1935 = vmatpush1.msra.mxu0 0.0
    %1936 = vmatprep.subr.mxu0 0.0
    %1937 = vmatpush1.msra.mxu0 0.0
    %1938 = vmatprep.subr.mxu0 0.0
    %1939 = vmatpush1.msra.mxu0 0.0
    %1940 = vmatprep.subr.mxu0 0.0
    %1941 = vmatpush1.msra.mxu0 0.0
    %1942 = vmatprep.subr.mxu0 0.0
    %1943 = vmatpush1.msra.mxu0 0.0
    %1944 = vmatprep.subr.mxu0 0.0
    %1945 = vmatpush1.msra.mxu0 0.0
    %1946 = vmatprep.subr.mxu0 0.0
    %1947 = vmatpush1.msra.mxu0 0.0
    %1948 = vmatprep.subr.mxu0 0.0
    %1949 = vmatpush1.msra.mxu0 0.0
    %1950 = vmatprep.subr.mxu0 0.0
    %1951 = vmatpush1.msra.mxu0 0.0
    %1952 = vmatprep.subr.mxu0 0.0
    %1953 = vmatpush1.msra.mxu0 0.0
    %1954 = vmatprep.subr.mxu0 0.0
    %1955 = vmatpush1.msra.mxu0 0.0
    %1956 = vmatprep.subr.mxu0 0.0
    %1957 = vmatpush1.msra.mxu0 0.0
    %1958 = vmatprep.subr.mxu0 0.0
    %1959 = vmatpush1.msra.mxu0 0.0
    %1960 = vmatprep.subr.mxu0 0.0
    %1961 = vmatpush1.msra.mxu0 0.0
    %1962 = vmatprep.subr.mxu0 0.0
    %1963 = vmatpush1.msra.mxu0 0.0
    %1964 = vmatprep.subr.mxu0 0.0
    %1965 = vmatpush1.msra.mxu0 0.0
    %1966 = vmatprep.subr.mxu0 0.0
    %1967 = vmatpush1.msra.mxu0 0.0
    %1968 = vmatprep.subr.mxu0 0.0
    %1969 = vmatpush1.msra.mxu0 0.0
    %1970 = vmatprep.subr.mxu0 0.0
    %1971 = vmatpush1.msra.mxu0 0.0
    %1972 = vmatprep.subr.mxu0 0.0
    %1973 = vmatpush1.msra.mxu0 0.0
    %1974 = vmatprep.subr.mxu0 0.0
    %1975 = vmatpush1.msra.mxu0 0.0
    %1976 = vmatprep.subr.mxu0 0.0
    %1977 = vmatpush1.msra.mxu0 0.0
    %1978 = vmatprep.subr.mxu0 0.0
    %1979 = vmatpush1.msra.mxu0 0.0
    %1980 = vmatprep.subr.mxu0 0.0
    %1981 = vmatpush1.msra.mxu0 0.0
    %1982 = vmatprep.subr.mxu0 0.0
    %1983 = vmatpush1.msra.mxu0 0.0
    %1984 = vmatprep.subr.mxu0 0.0
    %1985 = vmatpush1.msra.mxu0 0.0
    %1986 = vmatprep.mubr.f32.mxu0 0.0
    %1987 = vmatmul.mubr.f32.gmra.mrb[0].mxu0 %v1911
    %v1988 = vpop.f32.mrb[0].mxu0
    %v1989 = vadd.f32 0.0, %v1988
    %v1990 = vpop.f32.mrb[0].mxu0
    %1991 = vmatprep.mubr.f32.mxu0 0.0
    %1992 = vmatmul.mubr.f32.gmra.mrb[0].mxu0 %v1914
    %v1993 = vpop.f32.mrb[0].mxu0
    %v1994 = vadd.f32 0.0, %v1993
    %v1995 = vpop.f32.mrb[0].mxu0
    %1996 = vmatprep.mubr.f32.mxu0 0.0
    %1997 = vmatmul.mubr.f32.gmra.mrb[0].mxu0 %v1917
    %v1998 = vpop.f32.mrb[0].mxu0
    %v1999 = vadd.f32 0.0, %v1998
    %v2000 = vpop.f32.mrb[0].mxu0
    %2001 = vmatprep.mubr.f32.mxu0 0.0
    %2002 = vmatmul.mubr.f32.gmra.mrb[0].mxu0 %v1920
    %v2003 = vpop.f32.mrb[0].mxu0
    %v2004 = vadd.f32 0.0, %v2003
    %v2005 = vpop.f32.mrb[0].mxu0
    %2006 = vdwg.mxu0
    %v2007 = vadd.f32 %v1906, %v1989
    %v2008 = vadd.f32 %v1907, %v1994
    %v2009 = vadd.f32 %v1908, %v1999
    %v2010 = vadd.f32 %v1909, %v2004
    %s2011 = scalar_lea.vmem [#allocation11], 32
    %2012 = vst.msk [vmem:[%s2011] sm:$0xff] %vm374, %v2007
    %2013 = vst.msk [vmem:[%s2011 + $0x8] sm:$0xff] %vm374, %v2008
    %2014 = vst.msk [vmem:[%s2011 + $0x10] sm:$0xff] %vm374, %v2009
    %2015 = vst.msk [vmem:[%s2011 + $0x18] sm:$0xff] %vm374, %v2010
    %2017 = vrot.lane.b32.xlu0 %v1905, 32
    %v2018 = vpop.permute.xlu0 %2017
    %v2020 = vsel %vm374, %v1552, %v2018
    %v2021 = vsel %vm374, %v2020, 0.0
    %2022 = vadd.xlane.f32.xlu0 %v2021
    %v2023 = vpop.xlane.xlu0 %2022
    %v2024 = vrcp.pop 32.0
    %v2025 = vmul.f32 %v2023, %v2024
    %v2026 = vsub.f32 %v2020, %v2025
    %v2027 = vmul.f32 %v2026, %v2026
    %v2028 = vsel %vm374, %v2027, 0.0
    %2029 = vadd.xlane.f32.xlu0 %v2028
    %v2030 = vpop.xlane.xlu0 %2029
    %v2031 = vmul.f32 %v2030, %v2024
    %v2032 = vadd.f32 %v2031, 0.00064
    %v2033 = vrsqrt.pop %v2032
    %v2034 = vmul.f32 %v2026, %v2033
    %2036 = vrot.lane.b32.xlu0 %v2020, 96
    %v2037 = vpop.permute.xlu0 %2036
    %v2039 = vsel %vm374, %v2037, 0.0
    %2040 = vadd.xlane.f32.xlu0 %v2039
    %v2041 = vpop.xlane.xlu0 %2040
    %v2042 = vmul.f32 %v2041, %v2024
    %v2043 = vsub.f32 %v2020, %v2042
    %v2044 = vmul.f32 %v2043, %v2043
    %2046 = vrot.lane.b32.xlu0 %v2044, 96
    %v2047 = vpop.permute.xlu0 %2046
    %v2049 = vsel %vm374, %v2047, 0.0
    %2050 = vadd.xlane.f32.xlu0 %v2049
    %v2051 = vpop.xlane.xlu0 %2050
    %v2052 = vmul.f32 %v2051, %v2024
    %v2053 = vadd.f32 %v2052, 0.00064
    %v2054 = vrsqrt.pop %v2053
    %v2055 = vmul.f32 %v2043, %v2054
    %v2056 = vsel %vm374, %v2034, %v2055
    %v2057 = vld [vmem:[%s14] sm:$0x1]
    %v2059 = vlaneseq
    %v2060 = vshrl.u32 %v2059, 7
    %v2061 = vsub.s32 0, %v2060
    %v2062 = vrot.slane %v2057, %v2061
    %v2064 = vmul.f32 %v2056, %v2062
    %v2065 = vld [vmem:[%s15] sm:$0x1]
    %v2067 = vlaneseq
    %v2068 = vshrl.u32 %v2067, 7
    %v2069 = vsub.s32 0, %v2068
    %v2070 = vrot.slane %v2065, %v2069
    %v2072 = vadd.f32 %v2064, %v2070
    %v2073 = vsub.f32 0.0, %v897
    %v2074 = vmul.f32 %v2073, 1.442695
    %v2075 = vpow.pop %v2074
    %v2076 = vadd.f32 %v2075, 1.0
    %v2077 = vrcp.pop %v2076
    %v2078 = vmul.f32 %v897, %v2077
    %2080 = vrot.lane.b32.xlu0 %v2078, 64
    %v2081 = vpop.permute.xlu0 %2080
    %v2083 = vmul.f32 %v2072, %v2081
    %v2084 = vld [vmem:[#allocation7] sm:$0xf]
    %v2085 = vld [vmem:[#allocation7 + $0x4] sm:$0xf]
    %v2086 = vld [vmem:[#allocation7 + $0x8] sm:$0xf]
    %v2087 = vld [vmem:[#allocation7 + $0xc] sm:$0xf]
    %v2088 = vld [vmem:[#allocation7 + $0x10] sm:$0xf]
    %v2089 = vld [vmem:[#allocation7 + $0x14] sm:$0xf]
    %v2090 = vld [vmem:[#allocation7 + $0x18] sm:$0xf]
    %v2091 = vld [vmem:[#allocation7 + $0x1c] sm:$0xf]
    %v2092 = vunpack.c.l.bf16 %v2084
    %v2093 = vunpack.c.l.bf16 %v2085
    %v2094 = vunpack.c.l.bf16 %v2086
    %v2095 = vunpack.c.l.bf16 %v2087
    %v2096 = vunpack.c.l.bf16 %v2088
    %v2097 = vunpack.c.l.bf16 %v2089
    %v2098 = vunpack.c.l.bf16 %v2090
    %v2099 = vunpack.c.l.bf16 %v2091
    %v2101 = vsel %vm124, %v2083, 0
    %2103 = vmatprep.subr.mxu0 0.0
    %2104 = vmatpush1.msra.mxu0 %v2092
    %2105 = vmatprep.subr.mxu0 0.0
    %2106 = vmatpush1.msra.mxu0 %v2093
    %2107 = vmatprep.subr.mxu0 0.0
    %2108 = vmatpush1.msra.mxu0 %v2094
    %2109 = vmatprep.subr.mxu0 0.0
    %2110 = vmatpush1.msra.mxu0 %v2095
    %2111 = vmatprep.subr.mxu0 0.0
    %2112 = vmatpush1.msra.mxu0 %v2096
    %2113 = vmatprep.subr.mxu0 0.0
    %2114 = vmatpush1.msra.mxu0 %v2097
    %2115 = vmatprep.subr.mxu0 0.0
    %2116 = vmatpush1.msra.mxu0 %v2098
    %2117 = vmatprep.subr.mxu0 0.0
    %2118 = vmatpush1.msra.mxu0 %v2099
    %2119 = vmatprep.subr.mxu0 0.0
    %2120 = vmatpush1.msra.mxu0 0.0
    %2121 = vmatprep.subr.mxu0 0.0
    %2122 = vmatpush1.msra.mxu0 0.0
    %2123 = vmatprep.subr.mxu0 0.0
    %2124 = vmatpush1.msra.mxu0 0.0
    %2125 = vmatprep.subr.mxu0 0.0
    %2126 = vmatpush1.msra.mxu0 0.0
    %2127 = vmatprep.subr.mxu0 0.0
    %2128 = vmatpush1.msra.mxu0 0.0
    %2129 = vmatprep.subr.mxu0 0.0
    %2130 = vmatpush1.msra.mxu0 0.0
    %2131 = vmatprep.subr.mxu0 0.0
    %2132 = vmatpush1.msra.mxu0 0.0
    %2133 = vmatprep.subr.mxu0 0.0
    %2134 = vmatpush1.msra.mxu0 0.0
    %2135 = vmatprep.subr.mxu0 0.0
    %2136 = vmatpush1.msra.mxu0 0.0
    %2137 = vmatprep.subr.mxu0 0.0
    %2138 = vmatpush1.msra.mxu0 0.0
    %2139 = vmatprep.subr.mxu0 0.0
    %2140 = vmatpush1.msra.mxu0 0.0
    %2141 = vmatprep.subr.mxu0 0.0
    %2142 = vmatpush1.msra.mxu0 0.0
    %2143 = vmatprep.subr.mxu0 0.0
    %2144 = vmatpush1.msra.mxu0 0.0
    %2145 = vmatprep.subr.mxu0 0.0
    %2146 = vmatpush1.msra.mxu0 0.0
    %2147 = vmatprep.subr.mxu0 0.0
    %2148 = vmatpush1.msra.mxu0 0.0
    %2149 = vmatprep.subr.mxu0 0.0
    %2150 = vmatpush1.msra.mxu0 0.0
    %2151 = vmatprep.subr.mxu0 0.0
    %2152 = vmatpush1.msra.mxu0 0.0
    %2153 = vmatprep.subr.mxu0 0.0
    %2154 = vmatpush1.msra.mxu0 0.0
    %2155 = vmatprep.subr.mxu0 0.0
    %2156 = vmatpush1.msra.mxu0 0.0
    %2157 = vmatprep.subr.mxu0 0.0
    %2158 = vmatpush1.msra.mxu0 0.0
    %2159 = vmatprep.subr.mxu0 0.0
    %2160 = vmatpush1.msra.mxu0 0.0
    %2161 = vmatprep.subr.mxu0 0.0
    %2162 = vmatpush1.msra.mxu0 0.0
    %2163 = vmatprep.subr.mxu0 0.0
    %2164 = vmatpush1.msra.mxu0 0.0
    %2165 = vmatprep.subr.mxu0 0.0
    %2166 = vmatpush1.msra.mxu0 0.0
    %2167 = vmatprep.mubr.f32.mxu0 0.0
    %2168 = vmatmul.mubr.f32.gmra.mrb[0].mxu0 %v2101
    %v2169 = vpop.f32.mrb[0].mxu0
    %v2170 = vadd.f32 0.0, %v2169
    %v2171 = vpop.f32.mrb[0].mxu0
    %2172 = vdwg.mxu0
    %v2173 = vadd.f32 %v152, %v2170
    %vm2174 = vcmask 523271
    %2175 = vst.msk [vmem:[#allocation9 - $0x7] sm:$0x80] %vm2174, %v152
    %v2176 = vld [vmem:[%s17] sm:$0x1]
    %v2177 = vld [vmem:[%s18] sm:$0x1]
    %v2178 = vsel %vm124, %v2173, 0.0
    %2179 = vadd.xlane.f32.xlu0 %v2178
    %v2180 = vpop.xlane.xlu0 %2179
    %v2181 = vmul.f32 %v2180, %v128
    %v2182 = vsub.f32 %v2173, %v2181
    %v2183 = vmul.f32 %v2182, %v2182
    %v2184 = vsel %vm124, %v2183, 0.0
    %2185 = vadd.xlane.f32.xlu0 %v2184
    %v2186 = vpop.xlane.xlu0 %2185
    %v2187 = vmul.f32 %v2186, %v128
    %v2188 = vadd.f32 %v2187, 1e-05
    %v2189 = vrsqrt.pop %v2188
    %v2190 = vmul.f32 %v2182, %v2189
    %v2192 = vlaneseq
    %v2193 = vshrl.u32 %v2192, 7
    %v2194 = vsub.s32 0, %v2193
    %v2195 = vrot.slane %v2176, %v2194
    %v2197 = vmul.f32 %v2190, %v2195
    %v2199 = vlaneseq
    %v2200 = vshrl.u32 %v2199, 7
    %v2201 = vsub.s32 0, %v2200
    %v2202 = vrot.slane %v2177, %v2201
    %v2204 = vadd.f32 %v2197, %v2202
    %v2205 = vld [vmem:[%s3] sm:$0x1]
    %v2206 = vrot.slane %v2204, 7
    %v2208 = vlaneseq
    %v2209 = vshrl.u32 %v2208, 7
    %v2210 = vsub.s32 0, %v2209
    %v2211 = vrot.slane %v2205, %v2210
    %v2213 = vsel %vm153, %v2211, %v2206
    %v2214 = vsub.f32 %v2213, %v2204
    %2216 = vrot.lane.b32.xlu0 %v2204, 64
    %v2217 = vpop.permute.xlu0 %2216
    %v2219 = vsel %vm124, %v2204, %v2217
    %v2220 = vld [vmem:[%s19] sm:$0x1]
    %2222 = vrot.lane.b32.xlu0 %v2214, 64
    %v2223 = vpop.permute.xlu0 %2222
    %v2225 = vsel %vm124, %v2214, %v2223
    %v2227 = vlaneseq
    %v2228 = vshrl.u32 %v2227, 7
    %v2229 = vsub.s32 0, %v2228
    %v2230 = vrot.slane %v2220, %v2229
    %v2232 = vmul.f32 %v2230, %v2225
    %v2233 = vadd.f32 %v2219, %v2232
    %v2234 = vld [vmem:[%s20] sm:$0xff]
    %v2235 = vld [vmem:[%s20 + $0x8] sm:$0xf]
    %v2236 = vld [vmem:[%s20 + $0xc] sm:$0xff]
    %v2237 = vld [vmem:[%s20 + $0x14] sm:$0xf]
    %v2238 = vld [vmem:[%s20 + $0x18] sm:$0xff]
    %v2239 = vld [vmem:[%s20 + $0x20] sm:$0xf]
    %v2240 = vld [vmem:[%s20 + $0x24] sm:$0xff]
    %v2241 = vld [vmem:[%s20 + $0x2c] sm:$0xf]
    %v2242 = vld [vmem:[%s20 + $0x30] sm:$0xff]
    %v2243 = vld [vmem:[%s20 + $0x38] sm:$0xf]
    %v2244 = vld [vmem:[%s20 + $0x3c] sm:$0xff]
    %v2245 = vld [vmem:[%s20 + $0x44] sm:$0xf]
    %v2246 = vld [vmem:[%s20 + $0x48] sm:$0xff]
    %v2247 = vld [vmem:[%s20 + $0x50] sm:$0xf]
    %v2248 = vld [vmem:[%s20 + $0x54] sm:$0xff]
    %v2249 = vld [vmem:[%s20 + $0x5c] sm:$0xf]
    %v2250 = vld [vmem:[%s20 + $0x60] sm:$0xff]
    %v2251 = vld [vmem:[%s20 + $0x68] sm:$0xf]
    %v2252 = vld [vmem:[%s20 + $0x6c] sm:$0xff]
    %v2253 = vld [vmem:[%s20 + $0x74] sm:$0xf]
    %v2254 = vld [vmem:[%s20 + $0x78] sm:$0xff]
    %v2255 = vld [vmem:[%s20 + $0x80] sm:$0xf]
    %v2256 = vld [vmem:[%s20 + $0x84] sm:$0xff]
    %v2257 = vld [vmem:[%s20 + $0x8c] sm:$0xf]
    %v2258 = vld [vmem:[%s20 + $0x90] sm:$0xff]
    %v2259 = vld [vmem:[%s20 + $0x98] sm:$0xf]
    %v2260 = vld [vmem:[%s20 + $0x9c] sm:$0xff]
    %v2261 = vld [vmem:[%s20 + $0xa4] sm:$0xf]
    %v2262 = vld [vmem:[%s20 + $0xa8] sm:$0xff]
    %v2263 = vld [vmem:[%s20 + $0xb0] sm:$0xf]
    %v2264 = vld [vmem:[%s20 + $0xb4] sm:$0xff]
    %v2265 = vld [vmem:[%s20 + $0xbc] sm:$0xf]
    %v2266 = vunpack.c.l.bf16 %v2234
    %v2267 = vunpack.c.h.bf16 %v2234
    %v2268 = vunpack.c.l.bf16 %v2235
    %v2269 = vunpack.c.l.bf16 %v2236
    %v2270 = vunpack.c.h.bf16 %v2236
    %v2271 = vunpack.c.l.bf16 %v2237
    %v2272 = vunpack.c.l.bf16 %v2238
    %v2273 = vunpack.c.h.bf16 %v2238
    %v2274 = vunpack.c.l.bf16 %v2239
    %v2275 = vunpack.c.l.bf16 %v2240
    %v2276 = vunpack.c.h.bf16 %v2240
    %v2277 = vunpack.c.l.bf16 %v2241
    %v2278 = vunpack.c.l.bf16 %v2242
    %v2279 = vunpack.c.h.bf16 %v2242
    %v2280 = vunpack.c.l.bf16 %v2243
    %v2281 = vunpack.c.l.bf16 %v2244
    %v2282 = vunpack.c.h.bf16 %v2244
    %v2283 = vunpack.c.l.bf16 %v2245
    %v2284 = vunpack.c.l.bf16 %v2246
    %v2285 = vunpack.c.h.bf16 %v2246
    %v2286 = vunpack.c.l.bf16 %v2247
    %v2287 = vunpack.c.l.bf16 %v2248
    %v2288 = vunpack.c.h.bf16 %v2248
    %v2289 = vunpack.c.l.bf16 %v2249
    %v2290 = vunpack.c.l.bf16 %v2250
    %v2291 = vunpack.c.h.bf16 %v2250
    %v2292 = vunpack.c.l.bf16 %v2251
    %v2293 = vunpack.c.l.bf16 %v2252
    %v2294 = vunpack.c.h.bf16 %v2252
    %v2295 = vunpack.c.l.bf16 %v2253
    %v2296 = vunpack.c.l.bf16 %v2254
    %v2297 = vunpack.c.h.bf16 %v2254
    %v2298 = vunpack.c.l.bf16 %v2255
    %v2299 = vunpack.c.l.bf16 %v2256
    %v2300 = vunpack.c.h.bf16 %v2256
    %v2301 = vunpack.c.l.bf16 %v2257
    %v2302 = vunpack.c.l.bf16 %v2258
    %v2303 = vunpack.c.h.bf16 %v2258
    %v2304 = vunpack.c.l.bf16 %v2259
    %v2305 = vunpack.c.l.bf16 %v2260
    %v2306 = vunpack.c.h.bf16 %v2260
    %v2307 = vunpack.c.l.bf16 %v2261
    %v2308 = vunpack.c.l.bf16 %v2262
    %v2309 = vunpack.c.h.bf16 %v2262
    %v2310 = vunpack.c.l.bf16 %v2263
    %v2311 = vunpack.c.l.bf16 %v2264
    %v2312 = vunpack.c.h.bf16 %v2264
    %v2313 = vunpack.c.l.bf16 %v2265
    %2314 = vmatprep.subr.mxu0 %v2267
    %2315 = vmatpush1.msra.mxu0 %v2266
    %2316 = vmatprep.subr.mxu0 %v2270
    %2317 = vmatpush1.msra.mxu0 %v2269
    %2318 = vmatprep.subr.mxu0 %v2273
    %2319 = vmatpush1.msra.mxu0 %v2272
    %2320 = vmatprep.subr.mxu0 %v2276
    %2321 = vmatpush1.msra.mxu0 %v2275
    %2322 = vmatprep.subr.mxu0 %v2279
    %2323 = vmatpush1.msra.mxu0 %v2278
    %2324 = vmatprep.subr.mxu0 %v2282
    %2325 = vmatpush1.msra.mxu0 %v2281
    %2326 = vmatprep.subr.mxu0 %v2285
    %2327 = vmatpush1.msra.mxu0 %v2284
    %2328 = vmatprep.subr.mxu0 %v2288
    %2329 = vmatpush1.msra.mxu0 %v2287
    %2330 = vmatprep.subr.mxu0 %v2291
    %2331 = vmatpush1.msra.mxu0 %v2290
    %2332 = vmatprep.subr.mxu0 %v2294
    %2333 = vmatpush1.msra.mxu0 %v2293
    %2334 = vmatprep.subr.mxu0 %v2297
    %2335 = vmatpush1.msra.mxu0 %v2296
    %2336 = vmatprep.subr.mxu0 %v2300
    %2337 = vmatpush1.msra.mxu0 %v2299
    %2338 = vmatprep.subr.mxu0 %v2303
    %2339 = vmatpush1.msra.mxu0 %v2302
    %2340 = vmatprep.subr.mxu0 %v2306
    %2341 = vmatpush1.msra.mxu0 %v2305
    %2342 = vmatprep.subr.mxu0 %v2309
    %2343 = vmatpush1.msra.mxu0 %v2308
    %2344 = vmatprep.subr.mxu0 %v2312
    %2345 = vmatpush1.msra.mxu0 %v2311
    %2346 = vmatprep.subr.mxu0 0.0
    %2347 = vmatpush1.msra.mxu0 0.0
    %2348 = vmatprep.subr.mxu0 0.0
    %2349 = vmatpush1.msra.mxu0 0.0
    %2350 = vmatprep.subr.mxu0 0.0
    %2351 = vmatpush1.msra.mxu0 0.0
    %2352 = vmatprep.subr.mxu0 0.0
    %2353 = vmatpush1.msra.mxu0 0.0
    %2354 = vmatprep.subr.mxu0 0.0
    %2355 = vmatpush1.msra.mxu0 0.0
    %2356 = vmatprep.subr.mxu0 0.0
    %2357 = vmatpush1.msra.mxu0 0.0
    %2358 = vmatprep.subr.mxu0 0.0
    %2359 = vmatpush1.msra.mxu0 0.0
    %2360 = vmatprep.subr.mxu0 0.0
    %2361 = vmatpush1.msra.mxu0 0.0
    %2362 = vmatprep.subr.mxu0 0.0
    %2363 = vmatpush1.msra.mxu0 0.0
    %2364 = vmatprep.subr.mxu0 0.0
    %2365 = vmatpush1.msra.mxu0 0.0
    %2366 = vmatprep.subr.mxu0 0.0
    %2367 = vmatpush1.msra.mxu0 0.0
    %2368 = vmatprep.subr.mxu0 0.0
    %2369 = vmatpush1.msra.mxu0 0.0
    %2370 = vmatprep.subr.mxu0 0.0
    %2371 = vmatpush1.msra.mxu0 0.0
    %2372 = vmatprep.subr.mxu0 0.0
    %2373 = vmatpush1.msra.mxu0 0.0
    %2374 = vmatprep.subr.mxu0 0.0
    %2375 = vmatpush1.msra.mxu0 0.0
    %2376 = vmatprep.subr.mxu0 0.0
    %2377 = vmatpush1.msra.mxu0 0.0
    %2378 = vmatprep.mubr.f32.mxu0 0.0
    %2379 = vmatmul.mubr.f32.gmra.mrb[0].mxu0 %v2233
    %v2380 = vpop.f32.mrb[0].mxu0
    %v2381 = vadd.f32 0.0, %v2380
    %v2382 = vpop.f32.mrb[0].mxu0
    %v2383 = vadd.f32 0.0, %v2382
    %2384 = vdwg.mxu0
    %2385 = vmatprep.subr.mxu0 0.0
    %2386 = vmatpush1.msra.mxu0 %v2268
    %2387 = vmatprep.subr.mxu0 0.0
    %2388 = vmatpush1.msra.mxu0 %v2271
    %2389 = vmatprep.subr.mxu0 0.0
    %2390 = vmatpush1.msra.mxu0 %v2274
    %2391 = vmatprep.subr.mxu0 0.0
    %2392 = vmatpush1.msra.mxu0 %v2277
    %2393 = vmatprep.subr.mxu0 0.0
    %2394 = vmatpush1.msra.mxu0 %v2280
    %2395 = vmatprep.subr.mxu0 0.0
    %2396 = vmatpush1.msra.mxu0 %v2283
    %2397 = vmatprep.subr.mxu0 0.0
    %2398 = vmatpush1.msra.mxu0 %v2286
    %2399 = vmatprep.subr.mxu0 0.0
    %2400 = vmatpush1.msra.mxu0 %v2289
    %2401 = vmatprep.subr.mxu0 0.0
    %2402 = vmatpush1.msra.mxu0 %v2292
    %2403 = vmatprep.subr.mxu0 0.0
    %2404 = vmatpush1.msra.mxu0 %v2295
    %2405 = vmatprep.subr.mxu0 0.0
    %2406 = vmatpush1.msra.mxu0 %v2298
    %2407 = vmatprep.subr.mxu0 0.0
    %2408 = vmatpush1.msra.mxu0 %v2301
    %2409 = vmatprep.subr.mxu0 0.0
    %2410 = vmatpush1.msra.mxu0 %v2304
    %2411 = vmatprep.subr.mxu0 0.0
    %2412 = vmatpush1.msra.mxu0 %v2307
    %2413 = vmatprep.subr.mxu0 0.0
    %2414 = vmatpush1.msra.mxu0 %v2310
    %2415 = vmatprep.subr.mxu0 0.0
    %2416 = vmatpush1.msra.mxu0 %v2313
    %2417 = vmatprep.subr.mxu0 0.0
    %2418 = vmatpush1.msra.mxu0 0.0
    %2419 = vmatprep.subr.mxu0 0.0
    %2420 = vmatpush1.msra.mxu0 0.0
    %2421 = vmatprep.subr.mxu0 0.0
    %2422 = vmatpush1.msra.mxu0 0.0
    %2423 = vmatprep.subr.mxu0 0.0
    %2424 = vmatpush1.msra.mxu0 0.0
    %2425 = vmatprep.subr.mxu0 0.0
    %2426 = vmatpush1.msra.mxu0 0.0
    %2427 = vmatprep.subr.mxu0 0.0
    %2428 = vmatpush1.msra.mxu0 0.0
    %2429 = vmatprep.subr.mxu0 0.0
    %2430 = vmatpush1.msra.mxu0 0.0
    %2431 = vmatprep.subr.mxu0 0.0
    %2432 = vmatpush1.msra.mxu0 0.0
    %2433 = vmatprep.subr.mxu0 0.0
    %2434 = vmatpush1.msra.mxu0 0.0
    %2435 = vmatprep.subr.mxu0 0.0
    %2436 = vmatpush1.msra.mxu0 0.0
    %2437 = vmatprep.subr.mxu0 0.0
    %2438 = vmatpush1.msra.mxu0 0.0
    %2439 = vmatprep.subr.mxu0 0.0
    %2440 = vmatpush1.msra.mxu0 0.0
    %2441 = vmatprep.subr.mxu0 0.0
    %2442 = vmatpush1.msra.mxu0 0.0
    %2443 = vmatprep.subr.mxu0 0.0
    %2444 = vmatpush1.msra.mxu0 0.0
    %2445 = vmatprep.subr.mxu0 0.0
    %2446 = vmatpush1.msra.mxu0 0.0
    %2447 = vmatprep.subr.mxu0 0.0
    %2448 = vmatpush1.msra.mxu0 0.0
    %2449 = vmatprep.mubr.f32.mxu0 0.0
    %2450 = vmatmul.mubr.f32.gmra.mrb[0].mxu0 %v2233
    %v2451 = vpop.f32.mrb[0].mxu0
    %v2452 = vadd.f32 0.0, %v2451
    %v2453 = vpop.f32.mrb[0].mxu0
    %2454 = vdwg.mxu0
    %v2455 = vmax.f32 %v2381, 0.0
    %v2456 = vmax.f32 %v2383, 0.0
    %v2457 = vmul.f32 %v2455, %v2455
    %v2458 = vmul.f32 %v2456, %v2456
    %v2459 = vld [vmem:[%s21] sm:$0xf]
    %v2460 = vld [vmem:[%s21 + $0x4] sm:$0xf]
    %v2461 = vld [vmem:[%s21 + $0x8] sm:$0xf]
    %v2462 = vld [vmem:[%s21 + $0xc] sm:$0xf]
    %v2463 = vld [vmem:[%s21 + $0x10] sm:$0xf]
    %v2464 = vld [vmem:[%s21 + $0x14] sm:$0xf]
    %v2465 = vld [vmem:[%s21 + $0x18] sm:$0xf]
    %v2466 = vld [vmem:[%s21 + $0x1c] sm:$0xf]
    %v2467 = vld [vmem:[%s21 + $0x20] sm:$0xf]
    %v2468 = vld [vmem:[%s21 + $0x24] sm:$0xf]
    %v2469 = vld [vmem:[%s21 + $0x28] sm:$0xf]
    %v2470 = vld [vmem:[%s21 + $0x2c] sm:$0xf]
    %v2471 = vld [vmem:[%s21 + $0x30] sm:$0xf]
    %v2472 = vld [vmem:[%s21 + $0x34] sm:$0xf]
    %v2473 = vld [vmem:[%s21 + $0x38] sm:$0xf]
    %v2474 = vld [vmem:[%s21 + $0x3c] sm:$0xf]
    %v2475 = vld [vmem:[%s21 + $0x40] sm:$0xf]
    %v2476 = vld [vmem:[%s21 + $0x44] sm:$0xf]
    %v2477 = vld [vmem:[%s21 + $0x48] sm:$0xf]
    %v2478 = vld [vmem:[%s21 + $0x4c] sm:$0xf]
    %v2479 = vld [vmem:[%s21 + $0x50] sm:$0xf]
    %v2480 = vld [vmem:[%s21 + $0x54] sm:$0xf]
    %v2481 = vld [vmem:[%s21 + $0x58] sm:$0xf]
    %v2482 = vld [vmem:[%s21 + $0x5c] sm:$0xf]
    %v2483 = vld [vmem:[%s21 + $0x60] sm:$0xf]
    %v2484 = vld [vmem:[%s21 + $0x64] sm:$0xf]
    %v2485 = vld [vmem:[%s21 + $0x68] sm:$0xf]
    %v2486 = vld [vmem:[%s21 + $0x6c] sm:$0xf]
    %v2487 = vld [vmem:[%s21 + $0x70] sm:$0xf]
    %v2488 = vld [vmem:[%s21 + $0x74] sm:$0xf]
    %v2489 = vld [vmem:[%s21 + $0x78] sm:$0xf]
    %v2490 = vld [vmem:[%s21 + $0x7c] sm:$0xf]
    %v2491 = vunpack.c.l.bf16 %v2459
    %v2492 = vunpack.c.l.bf16 %v2460
    %v2493 = vunpack.c.l.bf16 %v2461
    %v2494 = vunpack.c.l.bf16 %v2462
    %v2495 = vunpack.c.l.bf16 %v2463
    %v2496 = vunpack.c.l.bf16 %v2464
    %v2497 = vunpack.c.l.bf16 %v2465
    %v2498 = vunpack.c.l.bf16 %v2466
    %v2499 = vunpack.c.l.bf16 %v2467
    %v2500 = vunpack.c.l.bf16 %v2468
    %v2501 = vunpack.c.l.bf16 %v2469
    %v2502 = vunpack.c.l.bf16 %v2470
    %v2503 = vunpack.c.l.bf16 %v2471
    %v2504 = vunpack.c.l.bf16 %v2472
    %v2505 = vunpack.c.l.bf16 %v2473
    %v2506 = vunpack.c.l.bf16 %v2474
    %v2507 = vunpack.c.l.bf16 %v2475
    %v2508 = vunpack.c.l.bf16 %v2476
    %v2509 = vunpack.c.l.bf16 %v2477
    %v2510 = vunpack.c.l.bf16 %v2478
    %v2511 = vunpack.c.l.bf16 %v2479
    %v2512 = vunpack.c.l.bf16 %v2480
    %v2513 = vunpack.c.l.bf16 %v2481
    %v2514 = vunpack.c.l.bf16 %v2482
    %v2515 = vunpack.c.l.bf16 %v2483
    %v2516 = vunpack.c.l.bf16 %v2484
    %v2517 = vunpack.c.l.bf16 %v2485
    %v2518 = vunpack.c.l.bf16 %v2486
    %v2519 = vunpack.c.l.bf16 %v2487
    %v2520 = vunpack.c.l.bf16 %v2488
    %v2521 = vunpack.c.l.bf16 %v2489
    %v2522 = vunpack.c.l.bf16 %v2490
    %2523 = vmatprep.subr.mxu0 0.0
    %2524 = vmatpush1.msra.mxu0 %v2491
    %2525 = vmatprep.subr.mxu0 0.0
    %2526 = vmatpush1.msra.mxu0 %v2492
    %2527 = vmatprep.subr.mxu0 0.0
    %2528 = vmatpush1.msra.mxu0 %v2493
    %2529 = vmatprep.subr.mxu0 0.0
    %2530 = vmatpush1.msra.mxu0 %v2494
    %2531 = vmatprep.subr.mxu0 0.0
    %2532 = vmatpush1.msra.mxu0 %v2495
    %2533 = vmatprep.subr.mxu0 0.0
    %2534 = vmatpush1.msra.mxu0 %v2496
    %2535 = vmatprep.subr.mxu0 0.0
    %2536 = vmatpush1.msra.mxu0 %v2497
    %2537 = vmatprep.subr.mxu0 0.0
    %2538 = vmatpush1.msra.mxu0 %v2498
    %2539 = vmatprep.subr.mxu0 0.0
    %2540 = vmatpush1.msra.mxu0 %v2499
    %2541 = vmatprep.subr.mxu0 0.0
    %2542 = vmatpush1.msra.mxu0 %v2500
    %2543 = vmatprep.subr.mxu0 0.0
    %2544 = vmatpush1.msra.mxu0 %v2501
    %2545 = vmatprep.subr.mxu0 0.0
    %2546 = vmatpush1.msra.mxu0 %v2502
    %2547 = vmatprep.subr.mxu0 0.0
    %2548 = vmatpush1.msra.mxu0 %v2503
    %2549 = vmatprep.subr.mxu0 0.0
    %2550 = vmatpush1.msra.mxu0 %v2504
    %2551 = vmatprep.subr.mxu0 0.0
    %2552 = vmatpush1.msra.mxu0 %v2505
    %2553 = vmatprep.subr.mxu0 0.0
    %2554 = vmatpush1.msra.mxu0 %v2506
    %2555 = vmatprep.subr.mxu0 0.0
    %2556 = vmatpush1.msra.mxu0 %v2507
    %2557 = vmatprep.subr.mxu0 0.0
    %2558 = vmatpush1.msra.mxu0 %v2508
    %2559 = vmatprep.subr.mxu0 0.0
    %2560 = vmatpush1.msra.mxu0 %v2509
    %2561 = vmatprep.subr.mxu0 0.0
    %2562 = vmatpush1.msra.mxu0 %v2510
    %2563 = vmatprep.subr.mxu0 0.0
    %2564 = vmatpush1.msra.mxu0 %v2511
    %2565 = vmatprep.subr.mxu0 0.0
    %2566 = vmatpush1.msra.mxu0 %v2512
    %2567 = vmatprep.subr.mxu0 0.0
    %2568 = vmatpush1.msra.mxu0 %v2513
    %2569 = vmatprep.subr.mxu0 0.0
    %2570 = vmatpush1.msra.mxu0 %v2514
    %2571 = vmatprep.subr.mxu0 0.0
    %2572 = vmatpush1.msra.mxu0 %v2515
    %2573 = vmatprep.subr.mxu0 0.0
    %2574 = vmatpush1.msra.mxu0 %v2516
    %2575 = vmatprep.subr.mxu0 0.0
    %2576 = vmatpush1.msra.mxu0 %v2517
    %2577 = vmatprep.subr.mxu0 0.0
    %2578 = vmatpush1.msra.mxu0 %v2518
    %2579 = vmatprep.subr.mxu0 0.0
    %2580 = vmatpush1.msra.mxu0 %v2519
    %2581 = vmatprep.subr.mxu0 0.0
    %2582 = vmatpush1.msra.mxu0 %v2520
    %2583 = vmatprep.subr.mxu0 0.0
    %2584 = vmatpush1.msra.mxu0 %v2521
    %2585 = vmatprep.subr.mxu0 0.0
    %2586 = vmatpush1.msra.mxu0 %v2522
    %2587 = vmatprep.mubr.f32.mxu0 %v2458
    %2588 = vmatmul.mubr.f32.gmra.mrb[0].mxu0 %v2457
    %v2589 = vpop.f32.mrb[0].mxu0
    %v2590 = vadd.f32 0.0, %v2589
    %v2591 = vpop.f32.mrb[0].mxu0
    %2592 = vdwg.mxu0
    %v2593 = vsub.f32 0.0, %v2452
    %v2594 = vmul.f32 %v2593, 1.442695
    %v2595 = vpow.pop %v2594
    %v2596 = vadd.f32 %v2595, 1.0
    %v2597 = vrcp.pop %v2596
    %v2598 = vmul.f32 %v2597, %v2590
    %v2599 = vadd.f32 %v2204, %v2598
    %2600 = vst.msk [vmem:[#allocation8] sm:$0xff] %vm124, %v2599
    %2601 = vst.msk [vmem:[#allocation12 - $0x7] sm:$0x80] %vm2174, %v2204
    // Predicated region
    $region102: #{layer_forward.1} parent=1 // pred_check
      _
    $region103: #{layer_forward.1} parent=1 // pred_check_branch
      %2603 = sbr.rel (0) target = $region105
    $region104: #{layer_forward.1} parent=1 // pred_region
      %s2605 = ssub.s32 128, 128
      %2606 = vsyncadd [#allocation4], %s2605
      %s2608 = sshll.u32 [#allocation8], 4
      %s2609 = int_to_ptr.vmem [resolvable:$true] %s2608
      %2611 = dma.vmem_to_hbm [thread:$0]  %s2609, 128, %s22, [#allocation4]
    $region105: #{layer_forward.1} parent=1 // pred_fallthru
      _
    // Predicated region
    $region106: #{layer_forward.1} parent=1 // pred_check
      _
    $region107: #{layer_forward.1} parent=1 // pred_check_branch
      %2613 = sbr.rel (0) target = $region109
    $region108: #{layer_forward.1} parent=1 // pred_region
      %s2615 = ssub.s32 16, 16
      %2616 = vsyncadd [#allocation10], %s2615
      %s2618 = sshll.u32 [#allocation9], 4
      %s2619 = int_to_ptr.vmem [resolvable:$true] %s2618
      %2621 = dma.vmem_to_hbm [thread:$0]  %s2619, 16, %s23, [#allocation10]
    $region109: #{layer_forward.1} parent=1 // pred_fallthru
      _
    // Predicated region
    $region110: #{layer_forward.1} parent=1 // pred_check
      _
    $region111: #{layer_forward.1} parent=1 // pred_check_branch
      %2623 = sbr.rel (0) target = $region113
    $region112: #{layer_forward.1} parent=1 // pred_region
      %s2625 = ssub.s32 1024, 1024
      %2626 = vsyncadd [#allocation10], %s2625
      %s2627 = sshll.u32 [#allocation11], 4
      %s2628 = int_to_ptr.vmem [resolvable:$true] %s2627
      %2633 = dma.vmem_to_hbm [thread:$0]  %s2628, 1024, %s24, [#allocation10], 128, 128, 8
    $region113: #{layer_forward.1} parent=1 // pred_fallthru
      _
    // Predicated region
    $region114: #{layer_forward.1} parent=1 // pred_check
      _
    $region115: #{layer_forward.1} parent=1 // pred_check_branch
      %2635 = sbr.rel (0) target = $region117
    $region116: #{layer_forward.1} parent=1 // pred_region
      %s2637 = ssub.s32 16, 16
      %2638 = vsyncadd [#allocation13], %s2637
      %s2640 = sshll.u32 [#allocation12], 4
      %s2641 = int_to_ptr.vmem [resolvable:$true] %s2640
      %2643 = dma.vmem_to_hbm [thread:$0]  %s2641, 16, %s25, [#allocation13]
    $region117: #{layer_forward.1} parent=1 // pred_fallthru
      _
    // Predicated region
    $region118: #{layer_forward.1} parent=1 // pred_check
      _
    $region119: #{layer_forward.1} parent=1 // pred_check_branch
      %2645 = sbr.rel (0) target = $region121
    $region120: #{layer_forward.1} parent=1 // pred_region
      %2646 = dma.done [#allocation4], 128
    $region121: #{layer_forward.1} parent=1 // pred_fallthru
      _
    // Predicated region
    $region122: #{layer_forward.1} parent=1 // pred_check
      _
    $region123: #{layer_forward.1} parent=1 // pred_check_branch
      %2648 = sbr.rel (0) target = $region125
    $region124: #{layer_forward.1} parent=1 // pred_region
      %2649 = dma.done [#allocation10], 16
    $region125: #{layer_forward.1} parent=1 // pred_fallthru
      _
    // Predicated region
    $region126: #{layer_forward.1} parent=1 // pred_check
      _
    $region127: #{layer_forward.1} parent=1 // pred_check_branch
      %2651 = sbr.rel (0) target = $region129
    $region128: #{layer_forward.1} parent=1 // pred_region
      %2652 = dma.done [#allocation10], 1024
    $region129: #{layer_forward.1} parent=1 // pred_fallthru
      _
    // Predicated region
    $region130: #{layer_forward.1} parent=1 // pred_check
      _
    $region131: #{layer_forward.1} parent=1 // pred_check_branch
      %2654 = sbr.rel (0) target = $region133
    $region132: #{layer_forward.1} parent=1 // pred_region
      %2655 = dma.done [#allocation13], 16
    $region133: #{layer_forward.1} parent=1 // pred_fallthru
      _
    %2656 = vsyncpa [#allocation3], 1
    %2657 = vsyncpa [#allocation6], 1
    %2658 = vsyncpa [#allocation4], 1
    %2659 = vsyncpa [#allocation10], 1
    %2660 = vsyncpa [#allocation13], 1

</llo_original>
